<compile_context>
chip_gen: v7x
topology: tpu7x:2x2x1
jax: 0.10.0
libtpu: 0.0.40
codegen_flags: <defaults>
</compile_context>

<pallas_src>
import functools

import jax
import jax.numpy as jnp
from jax.experimental import pallas as pl
from jax.experimental.pallas import tpu as pltpu

LANE = 128      # TPU lane width: output (Cout / Nout) dims padded to this
SUBLANE = 8     # row (M) blocks padded to a multiple of the sublane count


def _round_up(x, m):
    return (x + m - 1) // m * m


def _cdiv(a, b):
    return -(-a // b)


def _pick_row_tile(m, tmax=512):
    """Largest balanced row tile <= tmax (multiple of SUBLANE, minimal padding)."""
    mp = _round_up(m, SUBLANE)
    nblk = _cdiv(mp, tmax)
    return _round_up(_cdiv(mp, nblk), SUBLANE)


# ---------------------------------------------------------------------------
# Pallas kernels
# ---------------------------------------------------------------------------
def _matmul_bias_act_kernel(x_ref, w_ref, b_ref, o_ref, *, relu):
    """One (TM, K) x (K, Np) tile: MXU matmul, f32 accumulate, bias, ReLU."""
    acc = jnp.dot(x_ref[...], w_ref[...], preferred_element_type=jnp.float32)
    acc = acc + b_ref[...]                    # (1, Np) broadcasts over rows
    if relu:
        acc = jnp.maximum(acc, 0.0)
    o_ref[...] = acc.astype(o_ref.dtype)


def _fused_fc_kernel(x_ref, w1_ref, b1_ref, w2_ref, b2_ref, o_ref):
    """fc1 (+ReLU) and fc2 fused in one launch; hidden stays on-chip."""
    h = jnp.dot(x_ref[...], w1_ref[...], preferred_element_type=jnp.float32)
    h = jnp.maximum(h + b1_ref[...], 0.0)
    out = jnp.dot(h.astype(w2_ref.dtype), w2_ref[...],
                  preferred_element_type=jnp.float32)
    o_ref[...] = (out + b2_ref[...]).astype(o_ref.dtype)


_COMPILER_PARAMS = pltpu.CompilerParams(
    dimension_semantics=("parallel",),        # row tiles shard across TCs on v7x
    vmem_limit_bytes=32 * 1024 * 1024,        # explicit cap, safe on v5e/v6e/v7x
)


def pallas_matmul_bias_act(x, w, b, *, relu, out_dtype, tmax=512):
    """out = act(x @ w + b).  x:(M,K) bf16, w:(K,Np) bf16 with Np%128==0,
    b:(1,Np) f32.  M is padded to a multiple of the row tile and sliced back."""
    M, K = x.shape
    Kw, Np = w.shape
    assert K == Kw and Np % LANE == 0
    tm = _pick_row_tile(M, tmax)
    grid_m = _cdiv(_round_up(M, SUBLANE), tm)
    Mp = grid_m * tm
    if Mp != M:
        x = jnp.pad(x, ((0, Mp - M), (0, 0)))
    out = pl.pallas_call(
        functools.partial(_matmul_bias_act_kernel, relu=relu),
        out_shape=jax.ShapeDtypeStruct((Mp, Np), out_dtype),
        grid=(grid_m,),
        in_specs=[
            pl.BlockSpec((tm, K), lambda i: (i, 0)),   # row-tiled, pipelined
            pl.BlockSpec((K, Np), lambda i: (0, 0)),   # weights resident in VMEM
            pl.BlockSpec((1, Np), lambda i: (0, 0)),
        ],
        out_specs=pl.BlockSpec((tm, Np), lambda i: (i, 0)),
        compiler_params=_COMPILER_PARAMS,
    )(x, w, b)
    return out[:M]


def pallas_fused_fc(x, w1, b1, w2, b2, *, out_dtype=jnp.float32, tmax=512):
    """out = (relu(x @ w1 + b1)) @ w2 + b2, single kernel launch."""
    M, K = x.shape
    H = w1.shape[1]
    Np = w2.shape[1]
    tm = _pick_row_tile(M, tmax)
    grid_m = _cdiv(_round_up(M, SUBLANE), tm)
    Mp = grid_m * tm
    if Mp != M:
        x = jnp.pad(x, ((0, Mp - M), (0, 0)))
    out = pl.pallas_call(
        _fused_fc_kernel,
        out_shape=jax.ShapeDtypeStruct((Mp, Np), out_dtype),
        grid=(grid_m,),
        in_specs=[
            pl.BlockSpec((tm, K), lambda i: (i, 0)),
            pl.BlockSpec((K, H), lambda i: (0, 0)),
            pl.BlockSpec((1, H), lambda i: (0, 0)),
            pl.BlockSpec((H, Np), lambda i: (0, 0)),
            pl.BlockSpec((1, Np), lambda i: (0, 0)),
        ],
        out_specs=pl.BlockSpec((tm, Np), lambda i: (i, 0)),
        compiler_params=_COMPILER_PARAMS,
    )(x, w1, b1, w2, b2)
    return out[:M]


# ---------------------------------------------------------------------------
# Conv2d(k=5, stride=1, pad=0) + ReLU: im2col glue (XLA) + Pallas matmul
# ---------------------------------------------------------------------------
def conv2d_relu(x_nhwc, w_pad, b_pad, cout, kh=5, kw=5):
    N, H, W, C = x_nhwc.shape
    Ho, Wo = H - kh + 1, W - kw + 1
    # TODO(synk): fuse the kh*kw shift-accumulation into the Pallas kernel (grid
    # reduction axis over the 25 shifts) to avoid materializing the 25x im2col
    # patches in HBM for large batches; at batch<=O(10) this is negligible.
    cols = [x_nhwc[:, i:i + Ho, j:j + Wo, :]
            for i in range(kh) for j in range(kw)]
    patches = jnp.concatenate(cols, axis=-1).reshape(N * Ho * Wo, kh * kw * C)
    y = pallas_matmul_bias_act(patches, w_pad, b_pad, relu=True,
                               out_dtype=jnp.bfloat16)      # (M, 128)
    return y[:, :cout].reshape(N, Ho, Wo, cout)


# ---------------------------------------------------------------------------
# Parameters: PyTorch-layout init + one-time kernel-layout prep (hoisted)
# ---------------------------------------------------------------------------
def init_params(key):
    def nrm(key, shape, scale=0.05):
        return scale * jax.random.normal(key, shape, dtype=jnp.float32)

    keys = jax.random.split(key, 12)
    return {
        # PyTorch Conv2d weight layout: (Cout, Cin, KH, KW)
        "conv1": (nrm(keys[0], (5, 1, 5, 5)),   nrm(keys[1], (5,))),
        "conv2": (nrm(keys[2], (10, 5, 5, 5)),  nrm(keys[3], (10,))),
        "conv3": (nrm(keys[4], (20, 10, 5, 5)), nrm(keys[5], (20,))),
        "conv4": (nrm(keys[6], (10, 20, 5, 5)), nrm(keys[7], (10,))),
        # PyTorch Linear weight layout: (out_features, in_features)
        "fc1": (nrm(keys[8], (64, 10 * 12 * 12)), nrm(keys[9], (64,))),
        "fc2": (nrm(keys[10], (10, 64)),          nrm(keys[11], (10,))),
    }


def prepare_params(params):
    """One-time layout prep:
    - conv weights (Cout,Cin,KH,KW) -> (KH*KW*Cin, Cout) matching the im2col
      (ki,kj,ci) feature order, zero-padded to 128 output lanes, cast to bf16;
    - fc weights transposed to (K, Nout), zero-padded to 128 lanes, bf16;
      fc1 rows are additionally PERMUTED from PyTorch's (c,h,w) flatten order to
      NHWC (h,w,c) order so the forward needs no NCHW transpose before flatten;
    - biases zero-padded to 128 lanes, kept f32 (added to the f32 accumulator)."""
    def prep_conv(w, b):
        cout, cin, kh, kw = w.shape
        wm = jnp.transpose(w, (2, 3, 1, 0)).reshape(kh * kw * cin, cout)
        pad = _round_up(cout, LANE) - cout
        return (jnp.pad(wm, ((0, 0), (0, pad))).astype(jnp.bfloat16),
                jnp.pad(b, (0, pad)).reshape(1, -1).astype(jnp.float32))

    def prep_fc(w, b, row_perm=None, kpad=None):
        nout, _ = w.shape
        wm = w.T                                        # (K_in, N_out)
        if row_perm is not None:
            wm = wm[row_perm]
        npad = _round_up(nout, LANE) - nout
        wm = jnp.pad(wm, ((0, 0), (0, npad)))
        if kpad is not None:
            wm = jnp.pad(wm, ((0, kpad - wm.shape[0]), (0, 0)))
        bm = jnp.pad(b, (0, npad)).reshape(1, -1)
        return wm.astype(jnp.bfloat16), bm.astype(jnp.float32)

    # NHWC flat index q = (h*12 + w)*10 + c  <->  PyTorch flat index p = c*144 + h*12 + w
    Cf, Hf, Wf = 10, 12, 12
    h_i, w_i, c_i = jnp.meshgrid(jnp.arange(Hf), jnp.arange(Wf), jnp.arange(Cf),
                                 indexing="ij")
    fc1_perm = (c_i * (Hf * Wf) + h_i * Wf + w_i).reshape(-1)

    prep = {name: prep_conv(*params[name])
            for name in ("conv1", "conv2", "conv3", "conv4")}
    prep["fc1"] = prep_fc(*params["fc1"], row_perm=fc1_perm)
    # fc2 consumes fc1's 128-lane-padded hidden (cols 64..127 are exactly 0),
    # so pad its K dimension to 128 with zero rows.
    prep["fc2"] = prep_fc(*params["fc2"], kpad=LANE)
    return prep


# ---------------------------------------------------------------------------
# Full forward pass (matches Net.forward semantics)
# ---------------------------------------------------------------------------
@jax.jit
def net_forward(x_nchw, prep):
    x = jnp.transpose(x_nchw, (0, 2, 3, 1)).astype(jnp.bfloat16)   # NCHW->NHWC
    x = conv2d_relu(x, *prep["conv1"], cout=5)     # (N, 24, 24, 5)
    x = conv2d_relu(x, *prep["conv2"], cout=10)    # (N, 20, 20, 10)
    x = conv2d_relu(x, *prep["conv3"], cout=20)    # (N, 16, 16, 20)
    x = conv2d_relu(x, *prep["conv4"], cout=10)    # (N, 12, 12, 10)
    N = x.shape[0]
    # NHWC-contiguous flatten; fc1 weight rows were pre-permuted to this order,
    # so no transpose back to NCHW is needed in the hot path.
    flat = x.reshape(N, 12 * 12 * 10)
    out = pallas_fused_fc(flat, *prep["fc1"], *prep["fc2"])        # (N, 128)
    return out[:, :10]


if __name__ == "__main__":
    key = jax.random.PRNGKey(0)
    pkey, xkey = jax.random.split(key)
    params = init_params(pkey)
    prep = prepare_params(params)                 # hoisted one-time weight prep
    x = jax.random.normal(xkey, (2, 1, 28, 28), dtype=jnp.float32)  # NCHW input
    out = net_forward(x, prep)
    out = jax.block_until_ready(out)
    assert out.shape == (2, 10)
    assert bool(jnp.all(jnp.isfinite(out)))
    print("KERNEL_OK")
</pallas_src>

<mosaic_0001>
module attributes {stable_mosaic.version = 11 : i64} {
  func.func @_matmul_bias_act_kernel(%arg0: i32, %arg1: memref<384x25xbf16, #tpu.memory_space<vmem>>, %arg2: memref<25x128xbf16, #tpu.memory_space<vmem>>, %arg3: memref<1x128xf32, #tpu.memory_space<vmem>>, %arg4: memref<384x128xbf16, #tpu.memory_space<vmem>>) attributes {dimension_semantics = [#tpu.dimension_semantics<parallel>], iteration_bounds = array<i64: 3>, scalar_prefetch = 0 : i64, scratch_operands = 0 : i64, tpu.core_type = #tpu.core_type<tc>, window_params = [{transform_indices = @transform_0, window_bounds = array<i64: 384, 25>}, {pipeline_mode = #tpu.pipeline_mode<synchronous>, transform_indices = @transform_1, window_bounds = array<i64: 25, 128>}, {pipeline_mode = #tpu.pipeline_mode<synchronous>, transform_indices = @transform_2, window_bounds = array<i64: 1, 128>}, {transform_indices = @transform_3, window_bounds = array<i64: 384, 128>}]} {
    %c0 = arith.constant 0 : index
    %c0_0 = arith.constant 0 : index
    %0 = vector.load %arg1[%c0, %c0_0] : memref<384x25xbf16, #tpu.memory_space<vmem>>, vector<384x25xbf16>
    %c0_1 = arith.constant 0 : index
    %c0_2 = arith.constant 0 : index
    %1 = vector.load %arg2[%c0_1, %c0_2] : memref<25x128xbf16, #tpu.memory_space<vmem>>, vector<25x128xbf16>
    %cst = arith.constant dense<0.000000e+00> : vector<384x128xf32>
    %2 = tpu.matmul %0, %1, %cst {dimension_numbers = #tpu.dot_dimension_numbers<[1], [0], [0], [1], [0, 0, 1, 1], [], []>} : vector<384x25xbf16>, vector<25x128xbf16>, vector<384x128xf32> -> vector<384x128xf32>
    %c0_3 = arith.constant 0 : index
    %c0_4 = arith.constant 0 : index
    %3 = vector.load %arg3[%c0_3, %c0_4] : memref<1x128xf32, #tpu.memory_space<vmem>>, vector<1x128xf32>
    %4 = vector.broadcast %3 : vector<1x128xf32> to vector<384x128xf32>
    %5 = arith.addf %2, %4 : vector<384x128xf32>
    %cst_5 = arith.constant 0.000000e+00 : f32
    %6 = vector.broadcast %cst_5 : f32 to vector<384x128xf32>
    %7 = arith.maximumf %5, %6 : vector<384x128xf32>
    %8 = arith.truncf %7 : vector<384x128xf32> to vector<384x128xbf16>
    %c0_6 = arith.constant 0 : index
    %c0_7 = arith.constant 0 : index
    %9 = vector.load %arg4[%c0_6, %c0_7] : memref<384x128xbf16, #tpu.memory_space<vmem>>, vector<384x128xbf16>
    tpu.vector_store %arg4[%c0_6, %c0_7], %8 {strides = array<i32>} : memref<384x128xbf16, #tpu.memory_space<vmem>>, vector<384x128xbf16>,
    return
  }
  func.func @transform_0(%arg0: i32) -> (i32, i32) {
    %c0_i32 = arith.constant 0 : i32
    %c0_i32_0 = arith.constant 0 : i32
    return %arg0, %c0_i32 : i32, i32
  }
  func.func @transform_1(%arg0: i32) -> (i32, i32) {
    %c0_i32 = arith.constant 0 : i32
    %c0_i32_0 = arith.constant 0 : i32
    %c0_i32_1 = arith.constant 0 : i32
    return %c0_i32, %c0_i32_0 : i32, i32
  }
  func.func @transform_2(%arg0: i32) -> (i32, i32) {
    %c0_i32 = arith.constant 0 : i32
    %c0_i32_0 = arith.constant 0 : i32
    %c0_i32_1 = arith.constant 0 : i32
    return %c0_i32, %c0_i32_0 : i32, i32
  }
  func.func @transform_3(%arg0: i32) -> (i32, i32) {
    %c0_i32 = arith.constant 0 : i32
    %c0_i32_0 = arith.constant 0 : i32
    return %arg0, %c0_i32 : i32, i32
  }
}

module attributes {stable_mosaic.version = 11 : i64} {
  func.func @_matmul_bias_act_kernel(%arg0: i32, %arg1: memref<400x125xbf16, #tpu.memory_space<vmem>>, %arg2: memref<125x128xbf16, #tpu.memory_space<vmem>>, %arg3: memref<1x128xf32, #tpu.memory_space<vmem>>, %arg4: memref<400x128xbf16, #tpu.memory_space<vmem>>) attributes {dimension_semantics = [#tpu.dimension_semantics<parallel>], iteration_bounds = array<i64: 2>, scalar_prefetch = 0 : i64, scratch_operands = 0 : i64, tpu.core_type = #tpu.core_type<tc>, window_params = [{transform_indices = @transform_0, window_bounds = array<i64: 400, 125>}, {pipeline_mode = #tpu.pipeline_mode<synchronous>, transform_indices = @transform_1, window_bounds = array<i64: 125, 128>}, {pipeline_mode = #tpu.pipeline_mode<synchronous>, transform_indices = @transform_2, window_bounds = array<i64: 1, 128>}, {transform_indices = @transform_3, window_bounds = array<i64: 400, 128>}]} {
    %c0 = arith.constant 0 : index
    %c0_0 = arith.constant 0 : index
    %0 = vector.load %arg1[%c0, %c0_0] : memref<400x125xbf16, #tpu.memory_space<vmem>>, vector<400x125xbf16>
    %c0_1 = arith.constant 0 : index
    %c0_2 = arith.constant 0 : index
    %1 = vector.load %arg2[%c0_1, %c0_2] : memref<125x128xbf16, #tpu.memory_space<vmem>>, vector<125x128xbf16>
    %cst = arith.constant dense<0.000000e+00> : vector<400x128xf32>
    %2 = tpu.matmul %0, %1, %cst {dimension_numbers = #tpu.dot_dimension_numbers<[1], [0], [0], [1], [0, 0, 1, 1], [], []>} : vector<400x125xbf16>, vector<125x128xbf16>, vector<400x128xf32> -> vector<400x128xf32>
    %c0_3 = arith.constant 0 : index
    %c0_4 = arith.constant 0 : index
    %3 = vector.load %arg3[%c0_3, %c0_4] : memref<1x128xf32, #tpu.memory_space<vmem>>, vector<1x128xf32>
    %4 = vector.broadcast %3 : vector<1x128xf32> to vector<400x128xf32>
    %5 = arith.addf %2, %4 : vector<400x128xf32>
    %cst_5 = arith.constant 0.000000e+00 : f32
    %6 = vector.broadcast %cst_5 : f32 to vector<400x128xf32>
    %7 = arith.maximumf %5, %6 : vector<400x128xf32>
    %8 = arith.truncf %7 : vector<400x128xf32> to vector<400x128xbf16>
    %c0_6 = arith.constant 0 : index
    %c0_7 = arith.constant 0 : index
    %9 = vector.load %arg4[%c0_6, %c0_7] : memref<400x128xbf16, #tpu.memory_space<vmem>>, vector<400x128xbf16>
    tpu.vector_store %arg4[%c0_6, %c0_7], %8 {strides = array<i32>} : memref<400x128xbf16, #tpu.memory_space<vmem>>, vector<400x128xbf16>,
    return
  }
  func.func @transform_0(%arg0: i32) -> (i32, i32) {
    %c0_i32 = arith.constant 0 : i32
    %c0_i32_0 = arith.constant 0 : i32
    return %arg0, %c0_i32 : i32, i32
  }
  func.func @transform_1(%arg0: i32) -> (i32, i32) {
    %c0_i32 = arith.constant 0 : i32
    %c0_i32_0 = arith.constant 0 : i32
    %c0_i32_1 = arith.constant 0 : i32
    return %c0_i32, %c0_i32_0 : i32, i32
  }
  func.func @transform_2(%arg0: i32) -> (i32, i32) {
    %c0_i32 = arith.constant 0 : i32
    %c0_i32_0 = arith.constant 0 : i32
    %c0_i32_1 = arith.constant 0 : i32
    return %c0_i32, %c0_i32_0 : i32, i32
  }
  func.func @transform_3(%arg0: i32) -> (i32, i32) {
    %c0_i32 = arith.constant 0 : i32
    %c0_i32_0 = arith.constant 0 : i32
    return %arg0, %c0_i32 : i32, i32
  }
}

module attributes {stable_mosaic.version = 11 : i64} {
  func.func @_matmul_bias_act_kernel(%arg0: i32, %arg1: memref<512x250xbf16, #tpu.memory_space<vmem>>, %arg2: memref<250x128xbf16, #tpu.memory_space<vmem>>, %arg3: memref<1x128xf32, #tpu.memory_space<vmem>>, %arg4: memref<512x128xbf16, #tpu.memory_space<vmem>>) attributes {dimension_semantics = [#tpu.dimension_semantics<parallel>], iteration_bounds = array<i64: 1>, scalar_prefetch = 0 : i64, scratch_operands = 0 : i64, tpu.core_type = #tpu.core_type<tc>, window_params = [{transform_indices = @transform_0, window_bounds = array<i64: 512, 250>}, {pipeline_mode = #tpu.pipeline_mode<synchronous>, transform_indices = @transform_1, window_bounds = array<i64: 250, 128>}, {pipeline_mode = #tpu.pipeline_mode<synchronous>, transform_indices = @transform_2, window_bounds = array<i64: 1, 128>}, {transform_indices = @transform_3, window_bounds = array<i64: 512, 128>}]} {
    %c0 = arith.constant 0 : index
    %c0_0 = arith.constant 0 : index
    %0 = vector.load %arg1[%c0, %c0_0] : memref<512x250xbf16, #tpu.memory_space<vmem>>, vector<512x250xbf16>
    %c0_1 = arith.constant 0 : index
    %c0_2 = arith.constant 0 : index
    %1 = vector.load %arg2[%c0_1, %c0_2] : memref<250x128xbf16, #tpu.memory_space<vmem>>, vector<250x128xbf16>
    %cst = arith.constant dense<0.000000e+00> : vector<512x128xf32>
    %2 = tpu.matmul %0, %1, %cst {dimension_numbers = #tpu.dot_dimension_numbers<[1], [0], [0], [1], [0, 0, 1, 1], [], []>} : vector<512x250xbf16>, vector<250x128xbf16>, vector<512x128xf32> -> vector<512x128xf32>
    %c0_3 = arith.constant 0 : index
    %c0_4 = arith.constant 0 : index
    %3 = vector.load %arg3[%c0_3, %c0_4] : memref<1x128xf32, #tpu.memory_space<vmem>>, vector<1x128xf32>
    %4 = vector.broadcast %3 : vector<1x128xf32> to vector<512x128xf32>
    %5 = arith.addf %2, %4 : vector<512x128xf32>
    %cst_5 = arith.constant 0.000000e+00 : f32
    %6 = vector.broadcast %cst_5 : f32 to vector<512x128xf32>
    %7 = arith.maximumf %5, %6 : vector<512x128xf32>
    %8 = arith.truncf %7 : vector<512x128xf32> to vector<512x128xbf16>
    %c0_6 = arith.constant 0 : index
    %c0_7 = arith.constant 0 : index
    %9 = vector.load %arg4[%c0_6, %c0_7] : memref<512x128xbf16, #tpu.memory_space<vmem>>, vector<512x128xbf16>
    tpu.vector_store %arg4[%c0_6, %c0_7], %8 {strides = array<i32>} : memref<512x128xbf16, #tpu.memory_space<vmem>>, vector<512x128xbf16>,
    return
  }
  func.func @transform_0(%arg0: i32) -> (i32, i32) {
    %c0_i32 = arith.constant 0 : i32
    %c0_i32_0 = arith.constant 0 : i32
    return %arg0, %c0_i32 : i32, i32
  }
  func.func @transform_1(%arg0: i32) -> (i32, i32) {
    %c0_i32 = arith.constant 0 : i32
    %c0_i32_0 = arith.constant 0 : i32
    %c0_i32_1 = arith.constant 0 : i32
    return %c0_i32, %c0_i32_0 : i32, i32
  }
  func.func @transform_2(%arg0: i32) -> (i32, i32) {
    %c0_i32 = arith.constant 0 : i32
    %c0_i32_0 = arith.constant 0 : i32
    %c0_i32_1 = arith.constant 0 : i32
    return %c0_i32, %c0_i32_0 : i32, i32
  }
  func.func @transform_3(%arg0: i32) -> (i32, i32) {
    %c0_i32 = arith.constant 0 : i32
    %c0_i32_0 = arith.constant 0 : i32
    return %arg0, %c0_i32 : i32, i32
  }
}

module attributes {stable_mosaic.version = 11 : i64} {
  func.func @_matmul_bias_act_kernel(%arg0: i32, %arg1: memref<288x500xbf16, #tpu.memory_space<vmem>>, %arg2: memref<500x128xbf16, #tpu.memory_space<vmem>>, %arg3: memref<1x128xf32, #tpu.memory_space<vmem>>, %arg4: memref<288x128xbf16, #tpu.memory_space<vmem>>) attributes {dimension_semantics = [#tpu.dimension_semantics<parallel>], iteration_bounds = array<i64: 1>, scalar_prefetch = 0 : i64, scratch_operands = 0 : i64, tpu.core_type = #tpu.core_type<tc>, window_params = [{transform_indices = @transform_0, window_bounds = array<i64: 288, 500>}, {pipeline_mode = #tpu.pipeline_mode<synchronous>, transform_indices = @transform_1, window_bounds = array<i64: 500, 128>}, {pipeline_mode = #tpu.pipeline_mode<synchronous>, transform_indices = @transform_2, window_bounds = array<i64: 1, 128>}, {transform_indices = @transform_3, window_bounds = array<i64: 288, 128>}]} {
    %c0 = arith.constant 0 : index
    %c0_0 = arith.constant 0 : index
    %0 = vector.load %arg1[%c0, %c0_0] : memref<288x500xbf16, #tpu.memory_space<vmem>>, vector<288x500xbf16>
    %c0_1 = arith.constant 0 : index
    %c0_2 = arith.constant 0 : index
    %1 = vector.load %arg2[%c0_1, %c0_2] : memref<500x128xbf16, #tpu.memory_space<vmem>>, vector<500x128xbf16>
    %cst = arith.constant dense<0.000000e+00> : vector<288x128xf32>
    %2 = tpu.matmul %0, %1, %cst {dimension_numbers = #tpu.dot_dimension_numbers<[1], [0], [0], [1], [0, 0, 1, 1], [], []>} : vector<288x500xbf16>, vector<500x128xbf16>, vector<288x128xf32> -> vector<288x128xf32>
    %c0_3 = arith.constant 0 : index
    %c0_4 = arith.constant 0 : index
    %3 = vector.load %arg3[%c0_3, %c0_4] : memref<1x128xf32, #tpu.memory_space<vmem>>, vector<1x128xf32>
    %4 = vector.broadcast %3 : vector<1x128xf32> to vector<288x128xf32>
    %5 = arith.addf %2, %4 : vector<288x128xf32>
    %cst_5 = arith.constant 0.000000e+00 : f32
    %6 = vector.broadcast %cst_5 : f32 to vector<288x128xf32>
    %7 = arith.maximumf %5, %6 : vector<288x128xf32>
    %8 = arith.truncf %7 : vector<288x128xf32> to vector<288x128xbf16>
    %c0_6 = arith.constant 0 : index
    %c0_7 = arith.constant 0 : index
    %9 = vector.load %arg4[%c0_6, %c0_7] : memref<288x128xbf16, #tpu.memory_space<vmem>>, vector<288x128xbf16>
    tpu.vector_store %arg4[%c0_6, %c0_7], %8 {strides = array<i32>} : memref<288x128xbf16, #tpu.memory_space<vmem>>, vector<288x128xbf16>,
    return
  }
  func.func @transform_0(%arg0: i32) -> (i32, i32) {
    %c0_i32 = arith.constant 0 : i32
    %c0_i32_0 = arith.constant 0 : i32
    return %arg0, %c0_i32 : i32, i32
  }
  func.func @transform_1(%arg0: i32) -> (i32, i32) {
    %c0_i32 = arith.constant 0 : i32
    %c0_i32_0 = arith.constant 0 : i32
    %c0_i32_1 = arith.constant 0 : i32
    return %c0_i32, %c0_i32_0 : i32, i32
  }
  func.func @transform_2(%arg0: i32) -> (i32, i32) {
    %c0_i32 = arith.constant 0 : i32
    %c0_i32_0 = arith.constant 0 : i32
    %c0_i32_1 = arith.constant 0 : i32
    return %c0_i32, %c0_i32_0 : i32, i32
  }
  func.func @transform_3(%arg0: i32) -> (i32, i32) {
    %c0_i32 = arith.constant 0 : i32
    %c0_i32_0 = arith.constant 0 : i32
    return %arg0, %c0_i32 : i32, i32
  }
}

module attributes {stable_mosaic.version = 11 : i64} {
  func.func @_fused_fc_kernel(%arg0: i32, %arg1: memref<8x1440xbf16, #tpu.memory_space<vmem>>, %arg2: memref<1440x128xbf16, #tpu.memory_space<vmem>>, %arg3: memref<1x128xf32, #tpu.memory_space<vmem>>, %arg4: memref<128x128xbf16, #tpu.memory_space<vmem>>, %arg5: memref<1x128xf32, #tpu.memory_space<vmem>>, %arg6: memref<8x128xf32, #tpu.memory_space<vmem>>) attributes {dimension_semantics = [#tpu.dimension_semantics<parallel>], iteration_bounds = array<i64: 1>, scalar_prefetch = 0 : i64, scratch_operands = 0 : i64, tpu.core_type = #tpu.core_type<tc>, window_params = [{transform_indices = @transform_0, window_bounds = array<i64: 8, 1440>}, {pipeline_mode = #tpu.pipeline_mode<synchronous>, transform_indices = @transform_1, window_bounds = array<i64: 1440, 128>}, {pipeline_mode = #tpu.pipeline_mode<synchronous>, transform_indices = @transform_2, window_bounds = array<i64: 1, 128>}, {pipeline_mode = #tpu.pipeline_mode<synchronous>, transform_indices = @transform_3, window_bounds = array<i64: 128, 128>}, {pipeline_mode = #tpu.pipeline_mode<synchronous>, transform_indices = @transform_4, window_bounds = array<i64: 1, 128>}, {transform_indices = @transform_5, window_bounds = array<i64: 8, 128>}]} {
    %c0 = arith.constant 0 : index
    %c0_0 = arith.constant 0 : index
    %0 = vector.load %arg1[%c0, %c0_0] : memref<8x1440xbf16, #tpu.memory_space<vmem>>, vector<8x1440xbf16>
    %c0_1 = arith.constant 0 : index
    %c0_2 = arith.constant 0 : index
    %1 = vector.load %arg2[%c0_1, %c0_2] : memref<1440x128xbf16, #tpu.memory_space<vmem>>, vector<1440x128xbf16>
    %cst = arith.constant dense<0.000000e+00> : vector<8x128xf32>
    %2 = tpu.matmul %0, %1, %cst {dimension_numbers = #tpu.dot_dimension_numbers<[1], [0], [0], [1], [0, 0, 1, 1], [], []>} : vector<8x1440xbf16>, vector<1440x128xbf16>, vector<8x128xf32> -> vector<8x128xf32>
    %c0_3 = arith.constant 0 : index
    %c0_4 = arith.constant 0 : index
    %3 = vector.load %arg3[%c0_3, %c0_4] : memref<1x128xf32, #tpu.memory_space<vmem>>, vector<1x128xf32>
    %4 = vector.broadcast %3 : vector<1x128xf32> to vector<8x128xf32>
    %5 = arith.addf %2, %4 : vector<8x128xf32>
    %cst_5 = arith.constant 0.000000e+00 : f32
    %6 = vector.broadcast %cst_5 : f32 to vector<8x128xf32>
    %7 = arith.maximumf %5, %6 : vector<8x128xf32>
    %8 = arith.truncf %7 : vector<8x128xf32> to vector<8x128xbf16>
    %c0_6 = arith.constant 0 : index
    %c0_7 = arith.constant 0 : index
    %9 = vector.load %arg4[%c0_6, %c0_7] : memref<128x128xbf16, #tpu.memory_space<vmem>>, vector<128x128xbf16>
    %cst_8 = arith.constant dense<0.000000e+00> : vector<8x128xf32>
    %10 = tpu.matmul %8, %9, %cst_8 {dimension_numbers = #tpu.dot_dimension_numbers<[1], [0], [0], [1], [0, 0, 1, 1], [], []>} : vector<8x128xbf16>, vector<128x128xbf16>, vector<8x128xf32> -> vector<8x128xf32>
    %c0_9 = arith.constant 0 : index
    %c0_10 = arith.constant 0 : index
    %11 = vector.load %arg5[%c0_9, %c0_10] : memref<1x128xf32, #tpu.memory_space<vmem>>, vector<1x128xf32>
    %12 = vector.broadcast %11 : vector<1x128xf32> to vector<8x128xf32>
    %13 = arith.addf %10, %12 : vector<8x128xf32>
    %c0_11 = arith.constant 0 : index
    %c0_12 = arith.constant 0 : index
    %14 = vector.load %arg6[%c0_11, %c0_12] : memref<8x128xf32, #tpu.memory_space<vmem>>, vector<8x128xf32>
    tpu.vector_store %arg6[%c0_11, %c0_12], %13 {strides = array<i32>} : memref<8x128xf32, #tpu.memory_space<vmem>>, vector<8x128xf32>,
    return
  }
  func.func @transform_0(%arg0: i32) -> (i32, i32) {
    %c0_i32 = arith.constant 0 : i32
    %c0_i32_0 = arith.constant 0 : i32
    return %arg0, %c0_i32 : i32, i32
  }
  func.func @transform_1(%arg0: i32) -> (i32, i32) {
    %c0_i32 = arith.constant 0 : i32
    %c0_i32_0 = arith.constant 0 : i32
    %c0_i32_1 = arith.constant 0 : i32
    return %c0_i32, %c0_i32_0 : i32, i32
  }
  func.func @transform_2(%arg0: i32) -> (i32, i32) {
    %c0_i32 = arith.constant 0 : i32
    %c0_i32_0 = arith.constant 0 : i32
    %c0_i32_1 = arith.constant 0 : i32
    return %c0_i32, %c0_i32_0 : i32, i32
  }
  func.func @transform_3(%arg0: i32) -> (i32, i32) {
    %c0_i32 = arith.constant 0 : i32
    %c0_i32_0 = arith.constant 0 : i32
    %c0_i32_1 = arith.constant 0 : i32
    return %c0_i32, %c0_i32_0 : i32, i32
  }
  func.func @transform_4(%arg0: i32) -> (i32, i32) {
    %c0_i32 = arith.constant 0 : i32
    %c0_i32_0 = arith.constant 0 : i32
    %c0_i32_1 = arith.constant 0 : i32
    return %c0_i32, %c0_i32_0 : i32, i32
  }
  func.func @transform_5(%arg0: i32) -> (i32, i32) {
    %c0_i32 = arith.constant 0 : i32
    %c0_i32_0 = arith.constant 0 : i32
    return %arg0, %c0_i32 : i32, i32
  }
}

</mosaic_0001>

<llo_original>
// kernel: net_forward.5
$region0: #{net_forward.5}
  #allocation0 [shape = 'u32[]', space=smem, size = 0x4, offset = 0x4, fixed_abs, tag = 'smem constant byte address 0x4 - core index']
  #allocation1 [shape = 'u32[144,128]{1,0:T(1,128)}', space=vmem, size = 0x12000, scoped, tag = 'internal scratch']
  %s0 = inlined_call_operand.vmem [shape: bf16[1152,25], index: 0, kind: input, shape index: {}]
  %s1 = inlined_call_operand.vmem [shape: bf16[25,128], index: 1, kind: input, shape index: {}]
  %s2 = inlined_call_operand.vmem [shape: f32[1,128], index: 2, kind: input, shape index: {}]
  %s3 = inlined_call_operand.vmem [shape: bf16[1152,128], index: 3, kind: output, shape index: {}]
  %s4 = sld [smem:[#allocation0]]
  $region45: #{net_forward.5} parent=0
    _
  %s6 = ssub.s32 1, %s4
  %s7 = scalar_select 0, %s6, %s4
  loop: start=0, step=1, limit=5
  $region2: #{net_forward.5} parent=0 // loop_pre_header
    _
  $region3: #{net_forward.5} parent=0 // loop_header
    %s9 = sphi 0, %s13
    %p10 = scmp.ge.s32.totalorder %s9, 5
    %s19 = sphi 0, %s21
    %s22 = sphi 0, %s19
    %s23 = sphi 0, %s22
    %s39 = sphi 0, %s23
    %s43 = sphi 0, %s43
    %s45 = sphi 0, %s43
    %s46 = sphi 0, %s45
    %s60 = sphi 0, %s46
    %s64 = sphi 0, %s64
    %s66 = sphi 0, %s64
    %s67 = sphi 0, %s66
    %s81 = sphi 0, %s67
    %s87 = sphi 0, %s89
    %s90 = sphi 0, %s87
    %s91 = sphi 0, %s90
    %s107 = sphi 0, %s91
  $region4: #{net_forward.5} parent=0 // loop_header_branch
    %12 = sbr.rel (%p10) target = $region8
  $region5: #{net_forward.5} parent=0 // loop_body
    %s14 = ssub.s32 %s9, 1
    %s15 = ssub.s32 %s9, 2
    %s16 = sadd.s32 %s9, 1
    %s17 = ssub.s32 %s9, %s16
    %p18 = scmp.eq.s32.totalorder %s17, 0
    %s20 = sadd.s32 %s19, 1
    %s21 = scalar_select %p18, %s19, %s20
    %p24 = pneg %p18
    %p25 = scmp.eq.s32.totalorder %s9, 2
    %p26 = por %p24, %p25
    %p27 = scmp.ne.s32.totalorder %s19, %s22
    %p28 = scmp.eq.s32.totalorder %s9, 0
    %p29 = por %p27, %p28
    %p30 = scmp.ne.s32.totalorder %s19, %s22
    %p31 = scmp.eq.s32.totalorder %s14, 2
    %p32 = por %p30, %p31
    %p33 = scmp.ne.s32.totalorder %s22, %s23
    %p34 = scmp.eq.s32.totalorder %s14, 0
    %p35 = por %p33, %p34
    %p36 = scmp.ne.s32.totalorder %s22, %s23
    %p37 = scmp.eq.s32.totalorder %s15, 2
    %p38 = por %p36, %p37
    %p40 = scmp.ne.s32.totalorder %s23, %s39
    %p41 = scmp.eq.s32.totalorder %s15, 0
    %p42 = por %p40, %p41
    %s44 = sadd.s32 %s43, 1
    %p47 = scmp.eq.s32.totalorder %s9, 2
    %p48 = scmp.ne.s32.totalorder %s43, %s45
    %p49 = scmp.eq.s32.totalorder %s9, 0
    %p50 = por %p48, %p49
    %p51 = scmp.ne.s32.totalorder %s43, %s45
    %p52 = scmp.eq.s32.totalorder %s14, 2
    %p53 = por %p51, %p52
    %p54 = scmp.ne.s32.totalorder %s45, %s46
    %p55 = scmp.eq.s32.totalorder %s14, 0
    %p56 = por %p54, %p55
    %p57 = scmp.ne.s32.totalorder %s45, %s46
    %p58 = scmp.eq.s32.totalorder %s15, 2
    %p59 = por %p57, %p58
    %p61 = scmp.ne.s32.totalorder %s46, %s60
    %p62 = scmp.eq.s32.totalorder %s15, 0
    %p63 = por %p61, %p62
    %s65 = sadd.s32 %s64, 1
    %p68 = scmp.eq.s32.totalorder %s9, 2
    %p69 = scmp.ne.s32.totalorder %s64, %s66
    %p70 = scmp.eq.s32.totalorder %s9, 0
    %p71 = por %p69, %p70
    %p72 = scmp.ne.s32.totalorder %s64, %s66
    %p73 = scmp.eq.s32.totalorder %s14, 2
    %p74 = por %p72, %p73
    %p75 = scmp.ne.s32.totalorder %s66, %s67
    %p76 = scmp.eq.s32.totalorder %s14, 0
    %p77 = por %p75, %p76
    %p78 = scmp.ne.s32.totalorder %s66, %s67
    %p79 = scmp.eq.s32.totalorder %s15, 2
    %p80 = por %p78, %p79
    %p82 = scmp.ne.s32.totalorder %s67, %s81
    %p83 = scmp.eq.s32.totalorder %s15, 0
    %p84 = por %p82, %p83
    %s85 = ssub.s32 %s9, %s16
    %p86 = scmp.eq.s32.totalorder %s85, 0
    %s88 = sadd.s32 %s87, 1
    %s89 = scalar_select %p86, %s87, %s88
    %p92 = pneg %p86
    %p93 = scmp.eq.s32.totalorder %s9, 2
    %p94 = por %p92, %p93
    %p95 = scmp.ne.s32.totalorder %s87, %s90
    %p96 = scmp.eq.s32.totalorder %s9, 0
    %p97 = por %p95, %p96
    %p98 = scmp.ne.s32.totalorder %s87, %s90
    %p99 = scmp.eq.s32.totalorder %s14, 2
    %p100 = por %p98, %p99
    %p101 = scmp.ne.s32.totalorder %s90, %s91
    %p102 = scmp.eq.s32.totalorder %s14, 0
    %p103 = por %p101, %p102
    %p104 = scmp.ne.s32.totalorder %s90, %s91
    %p105 = scmp.eq.s32.totalorder %s15, 2
    %p106 = por %p104, %p105
    %p108 = scmp.ne.s32.totalorder %s91, %s107
    %p109 = scmp.eq.s32.totalorder %s15, 0
    %p110 = por %p108, %p109
    %p111 = scmp.le.s32.totalorder 1, %s9
    %p112 = scmp.lt.s32.totalorder %s9, 4
    %p113 = pnand %p111, %p112
    %p114 = pneg %p113
    // Predicated region
    $region9: #{net_forward.5} parent=5 // pred_check
      _
    $region10: #{net_forward.5} parent=5 // pred_check_branch
      %116 = sbr.rel (%p113) target = $region12
    $region11: #{net_forward.5} parent=5 // pred_region
      %s117 = ssub.s32 %s9, 1
      // Predicated region
      $region13: #{net_forward.5} parent=11 // pred_check
        %p118 = pneg %p56
      $region14: #{net_forward.5} parent=11 // pred_check_branch
        %120 = sbr.rel (%p118) target = $region16
      $region15: #{net_forward.5} parent=11 // pred_region
        _
      $region16: #{net_forward.5} parent=11 // pred_fallthru
        _
      // Predicated region
      $region17: #{net_forward.5} parent=11 // pred_check
        %p121 = pneg %p77
      $region18: #{net_forward.5} parent=11 // pred_check_branch
        %123 = sbr.rel (%p121) target = $region20
      $region19: #{net_forward.5} parent=11 // pred_region
        _
      $region20: #{net_forward.5} parent=11 // pred_fallthru
        _
    $region12: #{net_forward.5} parent=5 // pred_fallthru
      _
    %p124 = scmp.lt.s32.totalorder %s9, 3
    // Predicated region
    $region21: #{net_forward.5} parent=5 // pred_check
      %p125 = pneg %p124
    $region22: #{net_forward.5} parent=5 // pred_check_branch
      %127 = sbr.rel (%p125) target = $region24
    $region23: #{net_forward.5} parent=5 // pred_region
      // Predicated region
      $region25: #{net_forward.5} parent=23 // pred_check
        %p128 = pneg %p29
      $region26: #{net_forward.5} parent=23 // pred_check_branch
        %130 = sbr.rel (%p128) target = $region28
      $region27: #{net_forward.5} parent=23 // pred_region
        %s131 = smul.u32 48, %s9
        %p132 = scmp.lt.s32.totalorder %s131, 143
        %s133 = scalar_select %p132, %s131, 143
        %s134 = smul.addr %s133, 4
        %s135 = scalar_lea.vmem %s0, %s134
        %s136 = smul.u32 48, %s9
      $region28: #{net_forward.5} parent=23 // pred_fallthru
        _
    $region24: #{net_forward.5} parent=5 // pred_fallthru
      _
    %p137 = scmp.le.s32.totalorder 1, %s9
    %p138 = scmp.lt.s32.totalorder %s9, 4
    %p139 = pnand %p137, %p138
    %p140 = pneg %p139
    // Predicated region
    $region29: #{net_forward.5} parent=5 // pred_check
      _
    $region30: #{net_forward.5} parent=5 // pred_check_branch
      %142 = sbr.rel (%p139) target = $region32
    $region31: #{net_forward.5} parent=5 // pred_region
      %s143 = ssub.s32 %s9, 1
      %s144 = smul.u32 48, %s14
      %p145 = scmp.lt.s32.totalorder %s144, 143
      %s146 = scalar_select %p145, %s144, 143
      %s147 = smul.addr %s146, 4
      %s148 = scalar_lea.vmem %s0, %s147
      %p149 = pneg %p35
      %p150 = pneg %p32
      %p151 = pneg %p56
      %p152 = pneg %p53
      %p153 = pneg %p77
      %p154 = pneg %p74
      %p155 = pneg %p103
      %p156 = pneg %p100
      %s157 = smul.u32 48, %s14
      %p158 = scmp.lt.s32.totalorder %s157, 143
      %s159 = scalar_select %p158, %s157, 143
      %s160 = smul.addr %s159, 4
      %s161 = scalar_lea.vmem %s3, %s160
      %s162 = smul.u32 48, %s14
      %p163 = scmp.lt.s32.totalorder %s162, 143
      %s164 = scalar_select %p163, %s162, 143
      %s165 = smul.addr %s164, 4
      %s166 = scalar_lea.vmem %s0, %s165
      %s167 = smul.u32 48, %s14
      %s168 = smul.u32 48, %s14
      %p169 = scmp.lt.s32.totalorder %s168, 143
      %s170 = scalar_select %p169, %s168, 143
      %s171 = smul.addr %s170, 4
      %s172 = scalar_lea.vmem %s3, %s171
      %s173 = smul.u32 48, %s14
      %v175 = vld [vmem:[%s166] sm:$0xf]
      %v176 = vld [vmem:[%s166 + $0x4] sm:$0xf]
      %v177 = vld [vmem:[%s166 + $0x8] sm:$0xf]
      %v178 = vld [vmem:[%s166 + $0xc] sm:$0xf]
      %v179 = vld [vmem:[%s166 + $0x10] sm:$0xf]
      %v180 = vld [vmem:[%s166 + $0x14] sm:$0xf]
      %v181 = vld [vmem:[%s166 + $0x18] sm:$0xf]
      %v182 = vld [vmem:[%s166 + $0x1c] sm:$0xf]
      %v183 = vld [vmem:[%s166 + $0x20] sm:$0xf]
      %v184 = vld [vmem:[%s166 + $0x24] sm:$0xf]
      %v185 = vld [vmem:[%s166 + $0x28] sm:$0xf]
      %v186 = vld [vmem:[%s166 + $0x2c] sm:$0xf]
      %v187 = vld [vmem:[%s166 + $0x30] sm:$0xf]
      %v188 = vld [vmem:[%s166 + $0x34] sm:$0xf]
      %v189 = vld [vmem:[%s166 + $0x38] sm:$0xf]
      %v190 = vld [vmem:[%s166 + $0x3c] sm:$0xf]
      %v191 = vld [vmem:[%s166 + $0x40] sm:$0xf]
      %v192 = vld [vmem:[%s166 + $0x44] sm:$0xf]
      %v193 = vld [vmem:[%s166 + $0x48] sm:$0xf]
      %v194 = vld [vmem:[%s166 + $0x4c] sm:$0xf]
      %v195 = vld [vmem:[%s166 + $0x50] sm:$0xf]
      %v196 = vld [vmem:[%s166 + $0x54] sm:$0xf]
      %v197 = vld [vmem:[%s166 + $0x58] sm:$0xf]
      %v198 = vld [vmem:[%s166 + $0x5c] sm:$0xf]
      %v199 = vld [vmem:[%s166 + $0x60] sm:$0xf]
      %v200 = vld [vmem:[%s166 + $0x64] sm:$0xf]
      %v201 = vld [vmem:[%s166 + $0x68] sm:$0xf]
      %v202 = vld [vmem:[%s166 + $0x6c] sm:$0xf]
      %v203 = vld [vmem:[%s166 + $0x70] sm:$0xf]
      %v204 = vld [vmem:[%s166 + $0x74] sm:$0xf]
      %v205 = vld [vmem:[%s166 + $0x78] sm:$0xf]
      %v206 = vld [vmem:[%s166 + $0x7c] sm:$0xf]
      %v207 = vld [vmem:[%s166 + $0x80] sm:$0xf]
      %v208 = vld [vmem:[%s166 + $0x84] sm:$0xf]
      %v209 = vld [vmem:[%s166 + $0x88] sm:$0xf]
      %v210 = vld [vmem:[%s166 + $0x8c] sm:$0xf]
      %v211 = vld [vmem:[%s166 + $0x90] sm:$0xf]
      %v212 = vld [vmem:[%s166 + $0x94] sm:$0xf]
      %v213 = vld [vmem:[%s166 + $0x98] sm:$0xf]
      %v214 = vld [vmem:[%s166 + $0x9c] sm:$0xf]
      %v215 = vld [vmem:[%s166 + $0xa0] sm:$0xf]
      %v216 = vld [vmem:[%s166 + $0xa4] sm:$0xf]
      %v217 = vld [vmem:[%s166 + $0xa8] sm:$0xf]
      %v218 = vld [vmem:[%s166 + $0xac] sm:$0xf]
      %v219 = vld [vmem:[%s166 + $0xb0] sm:$0xf]
      %v220 = vld [vmem:[%s166 + $0xb4] sm:$0xf]
      %v221 = vld [vmem:[%s166 + $0xb8] sm:$0xf]
      %v222 = vld [vmem:[%s166 + $0xbc] sm:$0xf]
      %v223 = vld [vmem:[%s1] sm:$0xf]
      %v224 = vld [vmem:[%s1 + $0x4] sm:$0xf]
      %v225 = vld [vmem:[%s1 + $0x8] sm:$0xf]
      %v226 = vld [vmem:[%s1 + $0xc] sm:$0x1]
      %v227 = vld [vmem:[%s2] sm:$0x1]
      %v229 = vlaneseq
      %v230 = vshrl.u32 %v229, 7
      %v231 = vsub.s32 0, %v230
      %v232 = vrot.slane %v227, %v231
      %v282 = vunpack.c.l.b16 %v175
      %v283 = vunpack.c.l.b16 %v176
      %v284 = vunpack.c.l.b16 %v177
      %v285 = vunpack.c.l.b16 %v178
      %v286 = vunpack.c.l.b16 %v179
      %v287 = vunpack.c.l.b16 %v180
      %v288 = vunpack.c.l.b16 %v181
      %v289 = vunpack.c.l.b16 %v182
      %v290 = vunpack.c.l.b16 %v183
      %v291 = vunpack.c.l.b16 %v184
      %v292 = vunpack.c.l.b16 %v185
      %v293 = vunpack.c.l.b16 %v186
      %v294 = vunpack.c.l.b16 %v187
      %v295 = vunpack.c.l.b16 %v188
      %v296 = vunpack.c.l.b16 %v189
      %v297 = vunpack.c.l.b16 %v190
      %v298 = vunpack.c.l.b16 %v191
      %v299 = vunpack.c.l.b16 %v192
      %v300 = vunpack.c.l.b16 %v193
      %v301 = vunpack.c.l.b16 %v194
      %v302 = vunpack.c.l.b16 %v195
      %v303 = vunpack.c.l.b16 %v196
      %v304 = vunpack.c.l.b16 %v197
      %v305 = vunpack.c.l.b16 %v198
      %v306 = vunpack.c.l.b16 %v199
      %v307 = vunpack.c.l.b16 %v200
      %v308 = vunpack.c.l.b16 %v201
      %v309 = vunpack.c.l.b16 %v202
      %v310 = vunpack.c.l.b16 %v203
      %v311 = vunpack.c.l.b16 %v204
      %v312 = vunpack.c.l.b16 %v205
      %v313 = vunpack.c.l.b16 %v206
      %v314 = vunpack.c.l.b16 %v207
      %v315 = vunpack.c.l.b16 %v208
      %v316 = vunpack.c.l.b16 %v209
      %v317 = vunpack.c.l.b16 %v210
      %v318 = vunpack.c.l.b16 %v211
      %v319 = vunpack.c.l.b16 %v212
      %v320 = vunpack.c.l.b16 %v213
      %v321 = vunpack.c.l.b16 %v214
      %v322 = vunpack.c.l.b16 %v215
      %v323 = vunpack.c.l.b16 %v216
      %v324 = vunpack.c.l.b16 %v217
      %v325 = vunpack.c.l.b16 %v218
      %v326 = vunpack.c.l.b16 %v219
      %v327 = vunpack.c.l.b16 %v220
      %v328 = vunpack.c.l.b16 %v221
      %v329 = vunpack.c.l.b16 %v222
      %v330 = vpack.c.b16 %v283, %v282
      %v331 = vpack.c.b16 %v285, %v284
      %v332 = vpack.c.b16 %v287, %v286
      %v333 = vpack.c.b16 %v289, %v288
      %v334 = vpack.c.b16 %v291, %v290
      %v335 = vpack.c.b16 %v293, %v292
      %v336 = vpack.c.b16 %v295, %v294
      %v337 = vpack.c.b16 %v297, %v296
      %v338 = vpack.c.b16 %v299, %v298
      %v339 = vpack.c.b16 %v301, %v300
      %v340 = vpack.c.b16 %v303, %v302
      %v341 = vpack.c.b16 %v305, %v304
      %v342 = vpack.c.b16 %v307, %v306
      %v343 = vpack.c.b16 %v309, %v308
      %v344 = vpack.c.b16 %v311, %v310
      %v345 = vpack.c.b16 %v313, %v312
      %v346 = vpack.c.b16 %v315, %v314
      %v347 = vpack.c.b16 %v317, %v316
      %v348 = vpack.c.b16 %v319, %v318
      %v349 = vpack.c.b16 %v321, %v320
      %v350 = vpack.c.b16 %v323, %v322
      %v351 = vpack.c.b16 %v325, %v324
      %v352 = vpack.c.b16 %v327, %v326
      %v353 = vpack.c.b16 %v329, %v328
      %v358 = vunpack.c.l.b16 %v223
      %v359 = vunpack.c.l.b16 %v224
      %v360 = vunpack.c.l.b16 %v225
      %v361 = vunpack.c.l.b16 %v226
      %v362 = vpack.c.b16 %v359, %v358
      %v363 = vpack.c.b16 %v361, %v360
      %vm365 = vcmask 203776
      %v367 = vsel %vm365, %v330, 0
      %v370 = vsel %vm365, %v331, 0
      %v373 = vsel %vm365, %v332, 0
      %v376 = vsel %vm365, %v333, 0
      %v379 = vsel %vm365, %v334, 0
      %v382 = vsel %vm365, %v335, 0
      %v385 = vsel %vm365, %v336, 0
      %v388 = vsel %vm365, %v337, 0
      %v391 = vsel %vm365, %v338, 0
      %v394 = vsel %vm365, %v339, 0
      %v397 = vsel %vm365, %v340, 0
      %v400 = vsel %vm365, %v341, 0
      %v403 = vsel %vm365, %v342, 0
      %v406 = vsel %vm365, %v343, 0
      %v409 = vsel %vm365, %v344, 0
      %v412 = vsel %vm365, %v345, 0
      %v415 = vsel %vm365, %v346, 0
      %v418 = vsel %vm365, %v347, 0
      %v421 = vsel %vm365, %v348, 0
      %v424 = vsel %vm365, %v349, 0
      %v427 = vsel %vm365, %v350, 0
      %v430 = vsel %vm365, %v351, 0
      %v433 = vsel %vm365, %v352, 0
      %v436 = vsel %vm365, %v353, 0
      %vm438 = vcmask 1043456
      %vm439 = vcmask 1044480
      %v440 = vsel %vm438, 4294967295, 65535
      %v441 = vsel %vm439, %v440, 0
      %v443 = vand.u32 %v363, %v441
      %445 = vmatprep.subr.bf16.mxu0 0
      %446 = vmatpush1.bf16.msra.mxu0 %v362
      %447 = vmatprep.subr.bf16.mxu0 0
      %448 = vmatpush1.bf16.msra.mxu0 %v443
      %449 = vmatprep.subr.bf16.mxu0 0
      %450 = vmatpush1.bf16.msra.mxu0 0
      %451 = vmatprep.subr.bf16.mxu0 0
      %452 = vmatpush1.bf16.msra.mxu0 0
      %453 = vmatprep.subr.bf16.mxu0 0
      %454 = vmatpush1.bf16.msra.mxu0 0
      %455 = vmatprep.subr.bf16.mxu0 0
      %456 = vmatpush1.bf16.msra.mxu0 0
      %457 = vmatprep.subr.bf16.mxu0 0
      %458 = vmatpush1.bf16.msra.mxu0 0
      %459 = vmatprep.subr.bf16.mxu0 0
      %460 = vmatpush1.bf16.msra.mxu0 0
      %461 = vmatprep.subr.bf16.mxu0 0
      %462 = vmatpush1.bf16.msra.mxu0 0
      %463 = vmatprep.subr.bf16.mxu0 0
      %464 = vmatpush1.bf16.msra.mxu0 0
      %465 = vmatprep.subr.bf16.mxu0 0
      %466 = vmatpush1.bf16.msra.mxu0 0
      %467 = vmatprep.subr.bf16.mxu0 0
      %468 = vmatpush1.bf16.msra.mxu0 0
      %469 = vmatprep.subr.bf16.mxu0 0
      %470 = vmatpush1.bf16.msra.mxu0 0
      %471 = vmatprep.subr.bf16.mxu0 0
      %472 = vmatpush1.bf16.msra.mxu0 0
      %473 = vmatprep.subr.bf16.mxu0 0
      %474 = vmatpush1.bf16.msra.mxu0 0
      %475 = vmatprep.subr.bf16.mxu0 0
      %476 = vmatpush1.bf16.msra.mxu0 0
      %477 = vmatprep.mubr.bf16.mxu0 0
      %478 = vmatmul.mubr.bf16.gmra.mrb[0].mxu0 %v367
      %v479 = vpop.f32.mrb[0].mxu0
      %v480 = vadd.f32 %v232, %v479
      %v481 = vpop.f32.mrb[0].mxu0
      %v482 = vpop.f32.mrb[0].mxu0
      %v483 = vadd.f32 %v232, %v482
      %v484 = vpop.f32.mrb[0].mxu0
      %485 = vmatprep.mubr.bf16.mxu0 0
      %486 = vmatmul.mubr.bf16.gmra.mrb[0].mxu0 %v370
      %v487 = vpop.f32.mrb[0].mxu0
      %v488 = vadd.f32 %v232, %v487
      %v489 = vpop.f32.mrb[0].mxu0
      %v490 = vpop.f32.mrb[0].mxu0
      %v491 = vadd.f32 %v232, %v490
      %v492 = vpop.f32.mrb[0].mxu0
      %493 = vmatprep.mubr.bf16.mxu0 0
      %494 = vmatmul.mubr.bf16.gmra.mrb[0].mxu0 %v373
      %v495 = vpop.f32.mrb[0].mxu0
      %v496 = vadd.f32 %v232, %v495
      %v497 = vpop.f32.mrb[0].mxu0
      %v498 = vpop.f32.mrb[0].mxu0
      %v499 = vadd.f32 %v232, %v498
      %v500 = vpop.f32.mrb[0].mxu0
      %501 = vmatprep.mubr.bf16.mxu0 0
      %502 = vmatmul.mubr.bf16.gmra.mrb[0].mxu0 %v376
      %v503 = vpop.f32.mrb[0].mxu0
      %v504 = vadd.f32 %v232, %v503
      %v505 = vpop.f32.mrb[0].mxu0
      %v506 = vpop.f32.mrb[0].mxu0
      %v507 = vadd.f32 %v232, %v506
      %v508 = vpop.f32.mrb[0].mxu0
      %509 = vmatprep.mubr.bf16.mxu0 0
      %510 = vmatmul.mubr.bf16.gmra.mrb[0].mxu0 %v379
      %v511 = vpop.f32.mrb[0].mxu0
      %v512 = vadd.f32 %v232, %v511
      %v513 = vpop.f32.mrb[0].mxu0
      %v514 = vpop.f32.mrb[0].mxu0
      %v515 = vadd.f32 %v232, %v514
      %v516 = vpop.f32.mrb[0].mxu0
      %517 = vmatprep.mubr.bf16.mxu0 0
      %518 = vmatmul.mubr.bf16.gmra.mrb[0].mxu0 %v382
      %v519 = vpop.f32.mrb[0].mxu0
      %v520 = vadd.f32 %v232, %v519
      %v521 = vpop.f32.mrb[0].mxu0
      %v522 = vpop.f32.mrb[0].mxu0
      %v523 = vadd.f32 %v232, %v522
      %v524 = vpop.f32.mrb[0].mxu0
      %525 = vmatprep.mubr.bf16.mxu0 0
      %526 = vmatmul.mubr.bf16.gmra.mrb[0].mxu0 %v385
      %v527 = vpop.f32.mrb[0].mxu0
      %v528 = vadd.f32 %v232, %v527
      %v529 = vpop.f32.mrb[0].mxu0
      %v530 = vpop.f32.mrb[0].mxu0
      %v531 = vadd.f32 %v232, %v530
      %v532 = vpop.f32.mrb[0].mxu0
      %533 = vmatprep.mubr.bf16.mxu0 0
      %534 = vmatmul.mubr.bf16.gmra.mrb[0].mxu0 %v388
      %v535 = vpop.f32.mrb[0].mxu0
      %v536 = vadd.f32 %v232, %v535
      %v537 = vpop.f32.mrb[0].mxu0
      %v538 = vpop.f32.mrb[0].mxu0
      %v539 = vadd.f32 %v232, %v538
      %v540 = vpop.f32.mrb[0].mxu0
      %541 = vmatprep.mubr.bf16.mxu0 0
      %542 = vmatmul.mubr.bf16.gmra.mrb[0].mxu0 %v391
      %v543 = vpop.f32.mrb[0].mxu0
      %v544 = vadd.f32 %v232, %v543
      %v545 = vpop.f32.mrb[0].mxu0
      %v546 = vpop.f32.mrb[0].mxu0
      %v547 = vadd.f32 %v232, %v546
      %v548 = vpop.f32.mrb[0].mxu0
      %549 = vmatprep.mubr.bf16.mxu0 0
      %550 = vmatmul.mubr.bf16.gmra.mrb[0].mxu0 %v394
      %v551 = vpop.f32.mrb[0].mxu0
      %v552 = vadd.f32 %v232, %v551
      %v553 = vpop.f32.mrb[0].mxu0
      %v554 = vpop.f32.mrb[0].mxu0
      %v555 = vadd.f32 %v232, %v554
      %v556 = vpop.f32.mrb[0].mxu0
      %557 = vmatprep.mubr.bf16.mxu0 0
      %558 = vmatmul.mubr.bf16.gmra.mrb[0].mxu0 %v397
      %v559 = vpop.f32.mrb[0].mxu0
      %v560 = vadd.f32 %v232, %v559
      %v561 = vpop.f32.mrb[0].mxu0
      %v562 = vpop.f32.mrb[0].mxu0
      %v563 = vadd.f32 %v232, %v562
      %v564 = vpop.f32.mrb[0].mxu0
      %565 = vmatprep.mubr.bf16.mxu0 0
      %566 = vmatmul.mubr.bf16.gmra.mrb[0].mxu0 %v400
      %v567 = vpop.f32.mrb[0].mxu0
      %v568 = vadd.f32 %v232, %v567
      %v569 = vpop.f32.mrb[0].mxu0
      %v570 = vpop.f32.mrb[0].mxu0
      %v571 = vadd.f32 %v232, %v570
      %v572 = vpop.f32.mrb[0].mxu0
      %573 = vmatprep.mubr.bf16.mxu0 0
      %574 = vmatmul.mubr.bf16.gmra.mrb[0].mxu0 %v403
      %v575 = vpop.f32.mrb[0].mxu0
      %v576 = vadd.f32 %v232, %v575
      %v577 = vpop.f32.mrb[0].mxu0
      %v578 = vpop.f32.mrb[0].mxu0
      %v579 = vadd.f32 %v232, %v578
      %v580 = vpop.f32.mrb[0].mxu0
      %581 = vmatprep.mubr.bf16.mxu0 0
      %582 = vmatmul.mubr.bf16.gmra.mrb[0].mxu0 %v406
      %v583 = vpop.f32.mrb[0].mxu0
      %v584 = vadd.f32 %v232, %v583
      %v585 = vpop.f32.mrb[0].mxu0
      %v586 = vpop.f32.mrb[0].mxu0
      %v587 = vadd.f32 %v232, %v586
      %v588 = vpop.f32.mrb[0].mxu0
      %589 = vmatprep.mubr.bf16.mxu0 0
      %590 = vmatmul.mubr.bf16.gmra.mrb[0].mxu0 %v409
      %v591 = vpop.f32.mrb[0].mxu0
      %v592 = vadd.f32 %v232, %v591
      %v593 = vpop.f32.mrb[0].mxu0
      %v594 = vpop.f32.mrb[0].mxu0
      %v595 = vadd.f32 %v232, %v594
      %v596 = vpop.f32.mrb[0].mxu0
      %597 = vmatprep.mubr.bf16.mxu0 0
      %598 = vmatmul.mubr.bf16.gmra.mrb[0].mxu0 %v412
      %v599 = vpop.f32.mrb[0].mxu0
      %v600 = vadd.f32 %v232, %v599
      %v601 = vpop.f32.mrb[0].mxu0
      %v602 = vpop.f32.mrb[0].mxu0
      %v603 = vadd.f32 %v232, %v602
      %v604 = vpop.f32.mrb[0].mxu0
      %605 = vmatprep.mubr.bf16.mxu0 0
      %606 = vmatmul.mubr.bf16.gmra.mrb[0].mxu0 %v415
      %v607 = vpop.f32.mrb[0].mxu0
      %v608 = vadd.f32 %v232, %v607
      %v609 = vpop.f32.mrb[0].mxu0
      %v610 = vpop.f32.mrb[0].mxu0
      %v611 = vadd.f32 %v232, %v610
      %v612 = vpop.f32.mrb[0].mxu0
      %613 = vmatprep.mubr.bf16.mxu0 0
      %614 = vmatmul.mubr.bf16.gmra.mrb[0].mxu0 %v418
      %v615 = vpop.f32.mrb[0].mxu0
      %v616 = vadd.f32 %v232, %v615
      %v617 = vpop.f32.mrb[0].mxu0
      %v618 = vpop.f32.mrb[0].mxu0
      %v619 = vadd.f32 %v232, %v618
      %v620 = vpop.f32.mrb[0].mxu0
      %621 = vmatprep.mubr.bf16.mxu0 0
      %622 = vmatmul.mubr.bf16.gmra.mrb[0].mxu0 %v421
      %v623 = vpop.f32.mrb[0].mxu0
      %v624 = vadd.f32 %v232, %v623
      %v625 = vpop.f32.mrb[0].mxu0
      %v626 = vpop.f32.mrb[0].mxu0
      %v627 = vadd.f32 %v232, %v626
      %v628 = vpop.f32.mrb[0].mxu0
      %629 = vmatprep.mubr.bf16.mxu0 0
      %630 = vmatmul.mubr.bf16.gmra.mrb[0].mxu0 %v424
      %v631 = vpop.f32.mrb[0].mxu0
      %v632 = vadd.f32 %v232, %v631
      %v633 = vpop.f32.mrb[0].mxu0
      %v634 = vpop.f32.mrb[0].mxu0
      %v635 = vadd.f32 %v232, %v634
      %v636 = vpop.f32.mrb[0].mxu0
      %637 = vmatprep.mubr.bf16.mxu0 0
      %638 = vmatmul.mubr.bf16.gmra.mrb[0].mxu0 %v427
      %v639 = vpop.f32.mrb[0].mxu0
      %v640 = vadd.f32 %v232, %v639
      %v641 = vpop.f32.mrb[0].mxu0
      %v642 = vpop.f32.mrb[0].mxu0
      %v643 = vadd.f32 %v232, %v642
      %v644 = vpop.f32.mrb[0].mxu0
      %645 = vmatprep.mubr.bf16.mxu0 0
      %646 = vmatmul.mubr.bf16.gmra.mrb[0].mxu0 %v430
      %v647 = vpop.f32.mrb[0].mxu0
      %v648 = vadd.f32 %v232, %v647
      %v649 = vpop.f32.mrb[0].mxu0
      %v650 = vpop.f32.mrb[0].mxu0
      %v651 = vadd.f32 %v232, %v650
      %v652 = vpop.f32.mrb[0].mxu0
      %653 = vmatprep.mubr.bf16.mxu0 0
      %654 = vmatmul.mubr.bf16.gmra.mrb[0].mxu0 %v433
      %v655 = vpop.f32.mrb[0].mxu0
      %v656 = vadd.f32 %v232, %v655
      %v657 = vpop.f32.mrb[0].mxu0
      %v658 = vpop.f32.mrb[0].mxu0
      %v659 = vadd.f32 %v232, %v658
      %v660 = vpop.f32.mrb[0].mxu0
      %661 = vmatprep.mubr.bf16.mxu0 0
      %662 = vmatmul.mubr.bf16.gmra.mrb[0].mxu0 %v436
      %v663 = vpop.f32.mrb[0].mxu0
      %v664 = vadd.f32 %v232, %v663
      %v665 = vpop.f32.mrb[0].mxu0
      %v666 = vpop.f32.mrb[0].mxu0
      %v667 = vadd.f32 %v232, %v666
      %v668 = vpop.f32.mrb[0].mxu0
      %669 = vdwg.mxu0
      %v670 = vmax.f32 %v480, 0.0
      %v671 = vmax.f32 %v483, 0.0
      %v672 = vmax.f32 %v488, 0.0
      %v673 = vmax.f32 %v491, 0.0
      %v674 = vmax.f32 %v496, 0.0
      %v675 = vmax.f32 %v499, 0.0
      %v676 = vmax.f32 %v504, 0.0
      %v677 = vmax.f32 %v507, 0.0
      %v678 = vmax.f32 %v512, 0.0
      %v679 = vmax.f32 %v515, 0.0
      %v680 = vmax.f32 %v520, 0.0
      %v681 = vmax.f32 %v523, 0.0
      %v682 = vmax.f32 %v528, 0.0
      %v683 = vmax.f32 %v531, 0.0
      %v684 = vmax.f32 %v536, 0.0
      %v685 = vmax.f32 %v539, 0.0
      %v686 = vmax.f32 %v544, 0.0
      %v687 = vmax.f32 %v547, 0.0
      %v688 = vmax.f32 %v552, 0.0
      %v689 = vmax.f32 %v555, 0.0
      %v690 = vmax.f32 %v560, 0.0
      %v691 = vmax.f32 %v563, 0.0
      %v692 = vmax.f32 %v568, 0.0
      %v693 = vmax.f32 %v571, 0.0
      %v694 = vmax.f32 %v576, 0.0
      %v695 = vmax.f32 %v579, 0.0
      %v696 = vmax.f32 %v584, 0.0
      %v697 = vmax.f32 %v587, 0.0
      %v698 = vmax.f32 %v592, 0.0
      %v699 = vmax.f32 %v595, 0.0
      %v700 = vmax.f32 %v600, 0.0
      %v701 = vmax.f32 %v603, 0.0
      %v702 = vmax.f32 %v608, 0.0
      %v703 = vmax.f32 %v611, 0.0
      %v704 = vmax.f32 %v616, 0.0
      %v705 = vmax.f32 %v619, 0.0
      %v706 = vmax.f32 %v624, 0.0
      %v707 = vmax.f32 %v627, 0.0
      %v708 = vmax.f32 %v632, 0.0
      %v709 = vmax.f32 %v635, 0.0
      %v710 = vmax.f32 %v640, 0.0
      %v711 = vmax.f32 %v643, 0.0
      %v712 = vmax.f32 %v648, 0.0
      %v713 = vmax.f32 %v651, 0.0
      %v714 = vmax.f32 %v656, 0.0
      %v715 = vmax.f32 %v659, 0.0
      %v716 = vmax.f32 %v664, 0.0
      %v717 = vmax.f32 %v667, 0.0
      %v718 = vpack.c.bf16 %v671, %v670
      %v719 = vpack.c.bf16 %v673, %v672
      %v720 = vpack.c.bf16 %v675, %v674
      %v721 = vpack.c.bf16 %v677, %v676
      %v722 = vpack.c.bf16 %v679, %v678
      %v723 = vpack.c.bf16 %v681, %v680
      %v724 = vpack.c.bf16 %v683, %v682
      %v725 = vpack.c.bf16 %v685, %v684
      %v726 = vpack.c.bf16 %v687, %v686
      %v727 = vpack.c.bf16 %v689, %v688
      %v728 = vpack.c.bf16 %v691, %v690
      %v729 = vpack.c.bf16 %v693, %v692
      %v730 = vpack.c.bf16 %v695, %v694
      %v731 = vpack.c.bf16 %v697, %v696
      %v732 = vpack.c.bf16 %v699, %v698
      %v733 = vpack.c.bf16 %v701, %v700
      %v734 = vpack.c.bf16 %v703, %v702
      %v735 = vpack.c.bf16 %v705, %v704
      %v736 = vpack.c.bf16 %v707, %v706
      %v737 = vpack.c.bf16 %v709, %v708
      %v738 = vpack.c.bf16 %v711, %v710
      %v739 = vpack.c.bf16 %v713, %v712
      %v740 = vpack.c.bf16 %v715, %v714
      %v741 = vpack.c.bf16 %v717, %v716
      %v766 = vunpack.c.l.b16 %v718
      %v767 = vunpack.c.h.b16 %v718
      %v768 = vunpack.c.l.b16 %v719
      %v769 = vunpack.c.h.b16 %v719
      %v770 = vunpack.c.l.b16 %v720
      %v771 = vunpack.c.h.b16 %v720
      %v772 = vunpack.c.l.b16 %v721
      %v773 = vunpack.c.h.b16 %v721
      %v774 = vunpack.c.l.b16 %v722
      %v775 = vunpack.c.h.b16 %v722
      %v776 = vunpack.c.l.b16 %v723
      %v777 = vunpack.c.h.b16 %v723
      %v778 = vunpack.c.l.b16 %v724
      %v779 = vunpack.c.h.b16 %v724
      %v780 = vunpack.c.l.b16 %v725
      %v781 = vunpack.c.h.b16 %v725
      %v782 = vunpack.c.l.b16 %v726
      %v783 = vunpack.c.h.b16 %v726
      %v784 = vunpack.c.l.b16 %v727
      %v785 = vunpack.c.h.b16 %v727
      %v786 = vunpack.c.l.b16 %v728
      %v787 = vunpack.c.h.b16 %v728
      %v788 = vunpack.c.l.b16 %v729
      %v789 = vunpack.c.h.b16 %v729
      %v790 = vunpack.c.l.b16 %v730
      %v791 = vunpack.c.h.b16 %v730
      %v792 = vunpack.c.l.b16 %v731
      %v793 = vunpack.c.h.b16 %v731
      %v794 = vunpack.c.l.b16 %v732
      %v795 = vunpack.c.h.b16 %v732
      %v796 = vunpack.c.l.b16 %v733
      %v797 = vunpack.c.h.b16 %v733
      %v798 = vunpack.c.l.b16 %v734
      %v799 = vunpack.c.h.b16 %v734
      %v800 = vunpack.c.l.b16 %v735
      %v801 = vunpack.c.h.b16 %v735
      %v802 = vunpack.c.l.b16 %v736
      %v803 = vunpack.c.h.b16 %v736
      %v804 = vunpack.c.l.b16 %v737
      %v805 = vunpack.c.h.b16 %v737
      %v806 = vunpack.c.l.b16 %v738
      %v807 = vunpack.c.h.b16 %v738
      %v808 = vunpack.c.l.b16 %v739
      %v809 = vunpack.c.h.b16 %v739
      %v810 = vunpack.c.l.b16 %v740
      %v811 = vunpack.c.h.b16 %v740
      %v812 = vunpack.c.l.b16 %v741
      %v813 = vunpack.c.h.b16 %v741
      %v814 = vpack.c.b16 %v766, %v766
      %v815 = vpack.c.b16 %v767, %v767
      %v816 = vpack.c.b16 %v768, %v768
      %v817 = vpack.c.b16 %v769, %v769
      %v818 = vpack.c.b16 %v770, %v770
      %v819 = vpack.c.b16 %v771, %v771
      %v820 = vpack.c.b16 %v772, %v772
      %v821 = vpack.c.b16 %v773, %v773
      %v822 = vpack.c.b16 %v774, %v774
      %v823 = vpack.c.b16 %v775, %v775
      %v824 = vpack.c.b16 %v776, %v776
      %v825 = vpack.c.b16 %v777, %v777
      %v826 = vpack.c.b16 %v778, %v778
      %v827 = vpack.c.b16 %v779, %v779
      %v828 = vpack.c.b16 %v780, %v780
      %v829 = vpack.c.b16 %v781, %v781
      %v830 = vpack.c.b16 %v782, %v782
      %v831 = vpack.c.b16 %v783, %v783
      %v832 = vpack.c.b16 %v784, %v784
      %v833 = vpack.c.b16 %v785, %v785
      %v834 = vpack.c.b16 %v786, %v786
      %v835 = vpack.c.b16 %v787, %v787
      %v836 = vpack.c.b16 %v788, %v788
      %v837 = vpack.c.b16 %v789, %v789
      %v838 = vpack.c.b16 %v790, %v790
      %v839 = vpack.c.b16 %v791, %v791
      %v840 = vpack.c.b16 %v792, %v792
      %v841 = vpack.c.b16 %v793, %v793
      %v842 = vpack.c.b16 %v794, %v794
      %v843 = vpack.c.b16 %v795, %v795
      %v844 = vpack.c.b16 %v796, %v796
      %v845 = vpack.c.b16 %v797, %v797
      %v846 = vpack.c.b16 %v798, %v798
      %v847 = vpack.c.b16 %v799, %v799
      %v848 = vpack.c.b16 %v800, %v800
      %v849 = vpack.c.b16 %v801, %v801
      %v850 = vpack.c.b16 %v802, %v802
      %v851 = vpack.c.b16 %v803, %v803
      %v852 = vpack.c.b16 %v804, %v804
      %v853 = vpack.c.b16 %v805, %v805
      %v854 = vpack.c.b16 %v806, %v806
      %v855 = vpack.c.b16 %v807, %v807
      %v856 = vpack.c.b16 %v808, %v808
      %v857 = vpack.c.b16 %v809, %v809
      %v858 = vpack.c.b16 %v810, %v810
      %v859 = vpack.c.b16 %v811, %v811
      %v860 = vpack.c.b16 %v812, %v812
      %v861 = vpack.c.b16 %v813, %v813
      %910 = vst [vmem:[%s172] sm:$0xf] %v814
      %911 = vst [vmem:[%s172 + $0x4] sm:$0xf] %v815
      %912 = vst [vmem:[%s172 + $0x8] sm:$0xf] %v816
      %913 = vst [vmem:[%s172 + $0xc] sm:$0xf] %v817
      %914 = vst [vmem:[%s172 + $0x10] sm:$0xf] %v818
      %915 = vst [vmem:[%s172 + $0x14] sm:$0xf] %v819
      %916 = vst [vmem:[%s172 + $0x18] sm:$0xf] %v820
      %917 = vst [vmem:[%s172 + $0x1c] sm:$0xf] %v821
      %918 = vst [vmem:[%s172 + $0x20] sm:$0xf] %v822
      %919 = vst [vmem:[%s172 + $0x24] sm:$0xf] %v823
      %920 = vst [vmem:[%s172 + $0x28] sm:$0xf] %v824
      %921 = vst [vmem:[%s172 + $0x2c] sm:$0xf] %v825
      %922 = vst [vmem:[%s172 + $0x30] sm:$0xf] %v826
      %923 = vst [vmem:[%s172 + $0x34] sm:$0xf] %v827
      %924 = vst [vmem:[%s172 + $0x38] sm:$0xf] %v828
      %925 = vst [vmem:[%s172 + $0x3c] sm:$0xf] %v829
      %926 = vst [vmem:[%s172 + $0x40] sm:$0xf] %v830
      %927 = vst [vmem:[%s172 + $0x44] sm:$0xf] %v831
      %928 = vst [vmem:[%s172 + $0x48] sm:$0xf] %v832
      %929 = vst [vmem:[%s172 + $0x4c] sm:$0xf] %v833
      %930 = vst [vmem:[%s172 + $0x50] sm:$0xf] %v834
      %931 = vst [vmem:[%s172 + $0x54] sm:$0xf] %v835
      %932 = vst [vmem:[%s172 + $0x58] sm:$0xf] %v836
      %933 = vst [vmem:[%s172 + $0x5c] sm:$0xf] %v837
      %934 = vst [vmem:[%s172 + $0x60] sm:$0xf] %v838
      %935 = vst [vmem:[%s172 + $0x64] sm:$0xf] %v839
      %936 = vst [vmem:[%s172 + $0x68] sm:$0xf] %v840
      %937 = vst [vmem:[%s172 + $0x6c] sm:$0xf] %v841
      %938 = vst [vmem:[%s172 + $0x70] sm:$0xf] %v842
      %939 = vst [vmem:[%s172 + $0x74] sm:$0xf] %v843
      %940 = vst [vmem:[%s172 + $0x78] sm:$0xf] %v844
      %941 = vst [vmem:[%s172 + $0x7c] sm:$0xf] %v845
      %942 = vst [vmem:[%s172 + $0x80] sm:$0xf] %v846
      %943 = vst [vmem:[%s172 + $0x84] sm:$0xf] %v847
      %944 = vst [vmem:[%s172 + $0x88] sm:$0xf] %v848
      %945 = vst [vmem:[%s172 + $0x8c] sm:$0xf] %v849
      %946 = vst [vmem:[%s172 + $0x90] sm:$0xf] %v850
      %947 = vst [vmem:[%s172 + $0x94] sm:$0xf] %v851
      %948 = vst [vmem:[%s172 + $0x98] sm:$0xf] %v852
      %949 = vst [vmem:[%s172 + $0x9c] sm:$0xf] %v853
      %950 = vst [vmem:[%s172 + $0xa0] sm:$0xf] %v854
      %951 = vst [vmem:[%s172 + $0xa4] sm:$0xf] %v855
      %952 = vst [vmem:[%s172 + $0xa8] sm:$0xf] %v856
      %953 = vst [vmem:[%s172 + $0xac] sm:$0xf] %v857
      %954 = vst [vmem:[%s172 + $0xb0] sm:$0xf] %v858
      %955 = vst [vmem:[%s172 + $0xb4] sm:$0xf] %v859
      %956 = vst [vmem:[%s172 + $0xb8] sm:$0xf] %v860
      %957 = vst [vmem:[%s172 + $0xbc] sm:$0xf] %v861
      %s958 = smul.u32 48, %s14
      %p959 = scmp.lt.s32.totalorder %s958, 143
      %s960 = scalar_select %p959, %s958, 143
      %s961 = smul.addr %s960, 4
      %s962 = scalar_lea.vmem %s3, %s961
      // Predicated region
      $region33: #{net_forward.5} parent=31 // pred_check
        %p963 = pneg %p100
      $region34: #{net_forward.5} parent=31 // pred_check_branch
        %965 = sbr.rel (%p963) target = $region36
      $region35: #{net_forward.5} parent=31 // pred_region
        %s966 = smul.u32 48, %s14
      $region36: #{net_forward.5} parent=31 // pred_fallthru
        _
    $region32: #{net_forward.5} parent=5 // pred_fallthru
      _
    %p967 = scmp.le.s32.totalorder 2, %s9
    // Predicated region
    $region37: #{net_forward.5} parent=5 // pred_check
      %p968 = pneg %p967
    $region38: #{net_forward.5} parent=5 // pred_check_branch
      %970 = sbr.rel (%p968) target = $region40
    $region39: #{net_forward.5} parent=5 // pred_region
      %s971 = ssub.s32 %s9, 2
      // Predicated region
      $region41: #{net_forward.5} parent=39 // pred_check
        %p972 = pneg %p106
      $region42: #{net_forward.5} parent=39 // pred_check_branch
        %974 = sbr.rel (%p972) target = $region44
      $region43: #{net_forward.5} parent=39 // pred_region
        %s975 = smul.u32 48, %s15
        %p976 = scmp.lt.s32.totalorder %s975, 143
        %s977 = scalar_select %p976, %s975, 143
        %s978 = smul.addr %s977, 4
        %s979 = scalar_lea.vmem %s3, %s978
      $region44: #{net_forward.5} parent=39 // pred_fallthru
        _
    $region40: #{net_forward.5} parent=5 // pred_fallthru
      _
  $region6: #{net_forward.5} parent=0 // loop_footer
    %s13 = sadd.s32 1, %s9
  $region7: #{net_forward.5} parent=0 // loop_footer_branch
    %8 = sbr.rel target = $region3
  $region8: #{net_forward.5} parent=0 // loop_exit
    _

// kernel: net_forward.6
$region0: #{net_forward.6}
  #allocation0 [shape = 'u32[]', space=smem, size = 0x4, offset = 0x4, fixed_abs, tag = 'smem constant byte address 0x4 - core index']
  #allocation1 [shape = 'u32[144,128]{1,0:T(1,128)}', space=vmem, size = 0x12000, scoped, tag = 'internal scratch']
  %s0 = inlined_call_operand.vmem [shape: bf16[800,125], index: 0, kind: input, shape index: {}]
  %s1 = inlined_call_operand.vmem [shape: bf16[125,128], index: 1, kind: input, shape index: {}]
  %s2 = inlined_call_operand.vmem [shape: f32[1,128], index: 2, kind: input, shape index: {}]
  %s3 = inlined_call_operand.vmem [shape: bf16[800,128], index: 3, kind: output, shape index: {}]
  %s4 = sld [smem:[#allocation0]]
  $region45: #{net_forward.6} parent=0
    _
  %s6 = ssub.s32 1, %s4
  %s7 = scalar_select 0, %s6, %s4
  loop: start=0, step=1, limit=4
  $region2: #{net_forward.6} parent=0 // loop_pre_header
    _
  $region3: #{net_forward.6} parent=0 // loop_header
    %s9 = sphi 0, %s13
    %p10 = scmp.ge.s32.totalorder %s9, 4
    %s19 = sphi 0, %s21
    %s22 = sphi 0, %s19
    %s23 = sphi 0, %s22
    %s39 = sphi 0, %s23
    %s43 = sphi 0, %s43
    %s45 = sphi 0, %s43
    %s46 = sphi 0, %s45
    %s60 = sphi 0, %s46
    %s64 = sphi 0, %s64
    %s66 = sphi 0, %s64
    %s67 = sphi 0, %s66
    %s81 = sphi 0, %s67
    %s87 = sphi 0, %s89
    %s90 = sphi 0, %s87
    %s91 = sphi 0, %s90
    %s107 = sphi 0, %s91
  $region4: #{net_forward.6} parent=0 // loop_header_branch
    %12 = sbr.rel (%p10) target = $region8
  $region5: #{net_forward.6} parent=0 // loop_body
    %s14 = ssub.s32 %s9, 1
    %s15 = ssub.s32 %s9, 2
    %s16 = sadd.s32 %s9, 1
    %s17 = ssub.s32 %s9, %s16
    %p18 = scmp.eq.s32.totalorder %s17, 0
    %s20 = sadd.s32 %s19, 1
    %s21 = scalar_select %p18, %s19, %s20
    %p24 = pneg %p18
    %p25 = scmp.eq.s32.totalorder %s9, 1
    %p26 = por %p24, %p25
    %p27 = scmp.ne.s32.totalorder %s19, %s22
    %p28 = scmp.eq.s32.totalorder %s9, 0
    %p29 = por %p27, %p28
    %p30 = scmp.ne.s32.totalorder %s19, %s22
    %p31 = scmp.eq.s32.totalorder %s14, 1
    %p32 = por %p30, %p31
    %p33 = scmp.ne.s32.totalorder %s22, %s23
    %p34 = scmp.eq.s32.totalorder %s14, 0
    %p35 = por %p33, %p34
    %p36 = scmp.ne.s32.totalorder %s22, %s23
    %p37 = scmp.eq.s32.totalorder %s15, 1
    %p38 = por %p36, %p37
    %p40 = scmp.ne.s32.totalorder %s23, %s39
    %p41 = scmp.eq.s32.totalorder %s15, 0
    %p42 = por %p40, %p41
    %s44 = sadd.s32 %s43, 1
    %p47 = scmp.eq.s32.totalorder %s9, 1
    %p48 = scmp.ne.s32.totalorder %s43, %s45
    %p49 = scmp.eq.s32.totalorder %s9, 0
    %p50 = por %p48, %p49
    %p51 = scmp.ne.s32.totalorder %s43, %s45
    %p52 = scmp.eq.s32.totalorder %s14, 1
    %p53 = por %p51, %p52
    %p54 = scmp.ne.s32.totalorder %s45, %s46
    %p55 = scmp.eq.s32.totalorder %s14, 0
    %p56 = por %p54, %p55
    %p57 = scmp.ne.s32.totalorder %s45, %s46
    %p58 = scmp.eq.s32.totalorder %s15, 1
    %p59 = por %p57, %p58
    %p61 = scmp.ne.s32.totalorder %s46, %s60
    %p62 = scmp.eq.s32.totalorder %s15, 0
    %p63 = por %p61, %p62
    %s65 = sadd.s32 %s64, 1
    %p68 = scmp.eq.s32.totalorder %s9, 1
    %p69 = scmp.ne.s32.totalorder %s64, %s66
    %p70 = scmp.eq.s32.totalorder %s9, 0
    %p71 = por %p69, %p70
    %p72 = scmp.ne.s32.totalorder %s64, %s66
    %p73 = scmp.eq.s32.totalorder %s14, 1
    %p74 = por %p72, %p73
    %p75 = scmp.ne.s32.totalorder %s66, %s67
    %p76 = scmp.eq.s32.totalorder %s14, 0
    %p77 = por %p75, %p76
    %p78 = scmp.ne.s32.totalorder %s66, %s67
    %p79 = scmp.eq.s32.totalorder %s15, 1
    %p80 = por %p78, %p79
    %p82 = scmp.ne.s32.totalorder %s67, %s81
    %p83 = scmp.eq.s32.totalorder %s15, 0
    %p84 = por %p82, %p83
    %s85 = ssub.s32 %s9, %s16
    %p86 = scmp.eq.s32.totalorder %s85, 0
    %s88 = sadd.s32 %s87, 1
    %s89 = scalar_select %p86, %s87, %s88
    %p92 = pneg %p86
    %p93 = scmp.eq.s32.totalorder %s9, 1
    %p94 = por %p92, %p93
    %p95 = scmp.ne.s32.totalorder %s87, %s90
    %p96 = scmp.eq.s32.totalorder %s9, 0
    %p97 = por %p95, %p96
    %p98 = scmp.ne.s32.totalorder %s87, %s90
    %p99 = scmp.eq.s32.totalorder %s14, 1
    %p100 = por %p98, %p99
    %p101 = scmp.ne.s32.totalorder %s90, %s91
    %p102 = scmp.eq.s32.totalorder %s14, 0
    %p103 = por %p101, %p102
    %p104 = scmp.ne.s32.totalorder %s90, %s91
    %p105 = scmp.eq.s32.totalorder %s15, 1
    %p106 = por %p104, %p105
    %p108 = scmp.ne.s32.totalorder %s91, %s107
    %p109 = scmp.eq.s32.totalorder %s15, 0
    %p110 = por %p108, %p109
    %p111 = scmp.le.s32.totalorder 1, %s9
    %p112 = scmp.lt.s32.totalorder %s9, 3
    %p113 = pnand %p111, %p112
    %p114 = pneg %p113
    // Predicated region
    $region9: #{net_forward.6} parent=5 // pred_check
      _
    $region10: #{net_forward.6} parent=5 // pred_check_branch
      %116 = sbr.rel (%p113) target = $region12
    $region11: #{net_forward.6} parent=5 // pred_region
      %s117 = ssub.s32 %s9, 1
      // Predicated region
      $region13: #{net_forward.6} parent=11 // pred_check
        %p118 = pneg %p56
      $region14: #{net_forward.6} parent=11 // pred_check_branch
        %120 = sbr.rel (%p118) target = $region16
      $region15: #{net_forward.6} parent=11 // pred_region
        _
      $region16: #{net_forward.6} parent=11 // pred_fallthru
        _
      // Predicated region
      $region17: #{net_forward.6} parent=11 // pred_check
        %p121 = pneg %p77
      $region18: #{net_forward.6} parent=11 // pred_check_branch
        %123 = sbr.rel (%p121) target = $region20
      $region19: #{net_forward.6} parent=11 // pred_region
        _
      $region20: #{net_forward.6} parent=11 // pred_fallthru
        _
    $region12: #{net_forward.6} parent=5 // pred_fallthru
      _
    %p124 = scmp.lt.s32.totalorder %s9, 2
    // Predicated region
    $region21: #{net_forward.6} parent=5 // pred_check
      %p125 = pneg %p124
    $region22: #{net_forward.6} parent=5 // pred_check_branch
      %127 = sbr.rel (%p125) target = $region24
    $region23: #{net_forward.6} parent=5 // pred_region
      // Predicated region
      $region25: #{net_forward.6} parent=23 // pred_check
        %p128 = pneg %p29
      $region26: #{net_forward.6} parent=23 // pred_check_branch
        %130 = sbr.rel (%p128) target = $region28
      $region27: #{net_forward.6} parent=23 // pred_region
        %s131 = smul.u32 50, %s9
        %p132 = scmp.lt.s32.totalorder %s131, 99
        %s133 = scalar_select %p132, %s131, 99
        %s134 = smul.addr %s133, 4
        %s135 = scalar_lea.vmem %s0, %s134
        %s136 = smul.u32 50, %s9
      $region28: #{net_forward.6} parent=23 // pred_fallthru
        _
    $region24: #{net_forward.6} parent=5 // pred_fallthru
      _
    %p137 = scmp.le.s32.totalorder 1, %s9
    %p138 = scmp.lt.s32.totalorder %s9, 3
    %p139 = pnand %p137, %p138
    %p140 = pneg %p139
    // Predicated region
    $region29: #{net_forward.6} parent=5 // pred_check
      _
    $region30: #{net_forward.6} parent=5 // pred_check_branch
      %142 = sbr.rel (%p139) target = $region32
    $region31: #{net_forward.6} parent=5 // pred_region
      %s143 = ssub.s32 %s9, 1
      %s144 = smul.u32 50, %s14
      %p145 = scmp.lt.s32.totalorder %s144, 99
      %s146 = scalar_select %p145, %s144, 99
      %s147 = smul.addr %s146, 4
      %s148 = scalar_lea.vmem %s0, %s147
      %p149 = pneg %p35
      %p150 = pneg %p32
      %p151 = pneg %p56
      %p152 = pneg %p53
      %p153 = pneg %p77
      %p154 = pneg %p74
      %p155 = pneg %p103
      %p156 = pneg %p100
      %s157 = smul.u32 50, %s14
      %p158 = scmp.lt.s32.totalorder %s157, 99
      %s159 = scalar_select %p158, %s157, 99
      %s160 = smul.addr %s159, 4
      %s161 = scalar_lea.vmem %s3, %s160
      %s162 = smul.u32 50, %s14
      %p163 = scmp.lt.s32.totalorder %s162, 99
      %s164 = scalar_select %p163, %s162, 99
      %s165 = smul.addr %s164, 4
      %s166 = scalar_lea.vmem %s0, %s165
      %s167 = smul.u32 50, %s14
      %s168 = smul.u32 50, %s14
      %p169 = scmp.lt.s32.totalorder %s168, 99
      %s170 = scalar_select %p169, %s168, 99
      %s171 = smul.addr %s170, 4
      %s172 = scalar_lea.vmem %s3, %s171
      %s173 = smul.u32 50, %s14
      %v175 = vld [vmem:[%s166] sm:$0xf]
      %v176 = vld [vmem:[%s166 + $0x4] sm:$0xf]
      %v177 = vld [vmem:[%s166 + $0x8] sm:$0xf]
      %v178 = vld [vmem:[%s166 + $0xc] sm:$0xf]
      %v179 = vld [vmem:[%s166 + $0x10] sm:$0xf]
      %v180 = vld [vmem:[%s166 + $0x14] sm:$0xf]
      %v181 = vld [vmem:[%s166 + $0x18] sm:$0xf]
      %v182 = vld [vmem:[%s166 + $0x1c] sm:$0xf]
      %v183 = vld [vmem:[%s166 + $0x20] sm:$0xf]
      %v184 = vld [vmem:[%s166 + $0x24] sm:$0xf]
      %v185 = vld [vmem:[%s166 + $0x28] sm:$0xf]
      %v186 = vld [vmem:[%s166 + $0x2c] sm:$0xf]
      %v187 = vld [vmem:[%s166 + $0x30] sm:$0xf]
      %v188 = vld [vmem:[%s166 + $0x34] sm:$0xf]
      %v189 = vld [vmem:[%s166 + $0x38] sm:$0xf]
      %v190 = vld [vmem:[%s166 + $0x3c] sm:$0xf]
      %v191 = vld [vmem:[%s166 + $0x40] sm:$0xf]
      %v192 = vld [vmem:[%s166 + $0x44] sm:$0xf]
      %v193 = vld [vmem:[%s166 + $0x48] sm:$0xf]
      %v194 = vld [vmem:[%s166 + $0x4c] sm:$0xf]
      %v195 = vld [vmem:[%s166 + $0x50] sm:$0xf]
      %v196 = vld [vmem:[%s166 + $0x54] sm:$0xf]
      %v197 = vld [vmem:[%s166 + $0x58] sm:$0xf]
      %v198 = vld [vmem:[%s166 + $0x5c] sm:$0xf]
      %v199 = vld [vmem:[%s166 + $0x60] sm:$0xf]
      %v200 = vld [vmem:[%s166 + $0x64] sm:$0xf]
      %v201 = vld [vmem:[%s166 + $0x68] sm:$0xf]
      %v202 = vld [vmem:[%s166 + $0x6c] sm:$0xf]
      %v203 = vld [vmem:[%s166 + $0x70] sm:$0xf]
      %v204 = vld [vmem:[%s166 + $0x74] sm:$0xf]
      %v205 = vld [vmem:[%s166 + $0x78] sm:$0xf]
      %v206 = vld [vmem:[%s166 + $0x7c] sm:$0xf]
      %v207 = vld [vmem:[%s166 + $0x80] sm:$0xf]
      %v208 = vld [vmem:[%s166 + $0x84] sm:$0xf]
      %v209 = vld [vmem:[%s166 + $0x88] sm:$0xf]
      %v210 = vld [vmem:[%s166 + $0x8c] sm:$0xf]
      %v211 = vld [vmem:[%s166 + $0x90] sm:$0xf]
      %v212 = vld [vmem:[%s166 + $0x94] sm:$0xf]
      %v213 = vld [vmem:[%s166 + $0x98] sm:$0xf]
      %v214 = vld [vmem:[%s166 + $0x9c] sm:$0xf]
      %v215 = vld [vmem:[%s166 + $0xa0] sm:$0xf]
      %v216 = vld [vmem:[%s166 + $0xa4] sm:$0xf]
      %v217 = vld [vmem:[%s166 + $0xa8] sm:$0xf]
      %v218 = vld [vmem:[%s166 + $0xac] sm:$0xf]
      %v219 = vld [vmem:[%s166 + $0xb0] sm:$0xf]
      %v220 = vld [vmem:[%s166 + $0xb4] sm:$0xf]
      %v221 = vld [vmem:[%s166 + $0xb8] sm:$0xf]
      %v222 = vld [vmem:[%s166 + $0xbc] sm:$0xf]
      %v223 = vld [vmem:[%s166 + $0xc0] sm:$0xf]
      %v224 = vld [vmem:[%s166 + $0xc4] sm:$0xf]
      %v225 = vld [vmem:[%s1] sm:$0xf]
      %v226 = vld [vmem:[%s1 + $0x4] sm:$0xf]
      %v227 = vld [vmem:[%s1 + $0x8] sm:$0xf]
      %v228 = vld [vmem:[%s1 + $0xc] sm:$0xf]
      %v229 = vld [vmem:[%s1 + $0x10] sm:$0xf]
      %v230 = vld [vmem:[%s1 + $0x14] sm:$0xf]
      %v231 = vld [vmem:[%s1 + $0x18] sm:$0xf]
      %v232 = vld [vmem:[%s1 + $0x1c] sm:$0xf]
      %v233 = vld [vmem:[%s1 + $0x20] sm:$0xf]
      %v234 = vld [vmem:[%s1 + $0x24] sm:$0xf]
      %v235 = vld [vmem:[%s1 + $0x28] sm:$0xf]
      %v236 = vld [vmem:[%s1 + $0x2c] sm:$0xf]
      %v237 = vld [vmem:[%s1 + $0x30] sm:$0xf]
      %v238 = vld [vmem:[%s1 + $0x34] sm:$0xf]
      %v239 = vld [vmem:[%s1 + $0x38] sm:$0xf]
      %v240 = vld [vmem:[%s1 + $0x3c] sm:$0x7]
      %v241 = vld [vmem:[%s2] sm:$0x1]
      %v243 = vlaneseq
      %v244 = vshrl.u32 %v243, 7
      %v245 = vsub.s32 0, %v244
      %v246 = vrot.slane %v241, %v245
      %v298 = vunpack.c.l.b16 %v175
      %v299 = vunpack.c.l.b16 %v176
      %v300 = vunpack.c.l.b16 %v177
      %v301 = vunpack.c.l.b16 %v178
      %v302 = vunpack.c.l.b16 %v179
      %v303 = vunpack.c.l.b16 %v180
      %v304 = vunpack.c.l.b16 %v181
      %v305 = vunpack.c.l.b16 %v182
      %v306 = vunpack.c.l.b16 %v183
      %v307 = vunpack.c.l.b16 %v184
      %v308 = vunpack.c.l.b16 %v185
      %v309 = vunpack.c.l.b16 %v186
      %v310 = vunpack.c.l.b16 %v187
      %v311 = vunpack.c.l.b16 %v188
      %v312 = vunpack.c.l.b16 %v189
      %v313 = vunpack.c.l.b16 %v190
      %v314 = vunpack.c.l.b16 %v191
      %v315 = vunpack.c.l.b16 %v192
      %v316 = vunpack.c.l.b16 %v193
      %v317 = vunpack.c.l.b16 %v194
      %v318 = vunpack.c.l.b16 %v195
      %v319 = vunpack.c.l.b16 %v196
      %v320 = vunpack.c.l.b16 %v197
      %v321 = vunpack.c.l.b16 %v198
      %v322 = vunpack.c.l.b16 %v199
      %v323 = vunpack.c.l.b16 %v200
      %v324 = vunpack.c.l.b16 %v201
      %v325 = vunpack.c.l.b16 %v202
      %v326 = vunpack.c.l.b16 %v203
      %v327 = vunpack.c.l.b16 %v204
      %v328 = vunpack.c.l.b16 %v205
      %v329 = vunpack.c.l.b16 %v206
      %v330 = vunpack.c.l.b16 %v207
      %v331 = vunpack.c.l.b16 %v208
      %v332 = vunpack.c.l.b16 %v209
      %v333 = vunpack.c.l.b16 %v210
      %v334 = vunpack.c.l.b16 %v211
      %v335 = vunpack.c.l.b16 %v212
      %v336 = vunpack.c.l.b16 %v213
      %v337 = vunpack.c.l.b16 %v214
      %v338 = vunpack.c.l.b16 %v215
      %v339 = vunpack.c.l.b16 %v216
      %v340 = vunpack.c.l.b16 %v217
      %v341 = vunpack.c.l.b16 %v218
      %v342 = vunpack.c.l.b16 %v219
      %v343 = vunpack.c.l.b16 %v220
      %v344 = vunpack.c.l.b16 %v221
      %v345 = vunpack.c.l.b16 %v222
      %v346 = vunpack.c.l.b16 %v223
      %v347 = vunpack.c.l.b16 %v224
      %v348 = vpack.c.b16 %v299, %v298
      %v349 = vpack.c.b16 %v301, %v300
      %v350 = vpack.c.b16 %v303, %v302
      %v351 = vpack.c.b16 %v305, %v304
      %v352 = vpack.c.b16 %v307, %v306
      %v353 = vpack.c.b16 %v309, %v308
      %v354 = vpack.c.b16 %v311, %v310
      %v355 = vpack.c.b16 %v313, %v312
      %v356 = vpack.c.b16 %v315, %v314
      %v357 = vpack.c.b16 %v317, %v316
      %v358 = vpack.c.b16 %v319, %v318
      %v359 = vpack.c.b16 %v321, %v320
      %v360 = vpack.c.b16 %v323, %v322
      %v361 = vpack.c.b16 %v325, %v324
      %v362 = vpack.c.b16 %v327, %v326
      %v363 = vpack.c.b16 %v329, %v328
      %v364 = vpack.c.b16 %v331, %v330
      %v365 = vpack.c.b16 %v333, %v332
      %v366 = vpack.c.b16 %v335, %v334
      %v367 = vpack.c.b16 %v337, %v336
      %v368 = vpack.c.b16 %v339, %v338
      %v369 = vpack.c.b16 %v341, %v340
      %v370 = vpack.c.b16 %v343, %v342
      %v371 = vpack.c.b16 %v345, %v344
      %v372 = vpack.c.b16 %v347, %v346
      %v389 = vunpack.c.l.b16 %v225
      %v390 = vunpack.c.l.b16 %v226
      %v391 = vunpack.c.l.b16 %v227
      %v392 = vunpack.c.l.b16 %v228
      %v393 = vunpack.c.l.b16 %v229
      %v394 = vunpack.c.l.b16 %v230
      %v395 = vunpack.c.l.b16 %v231
      %v396 = vunpack.c.l.b16 %v232
      %v397 = vunpack.c.l.b16 %v233
      %v398 = vunpack.c.l.b16 %v234
      %v399 = vunpack.c.l.b16 %v235
      %v400 = vunpack.c.l.b16 %v236
      %v401 = vunpack.c.l.b16 %v237
      %v402 = vunpack.c.l.b16 %v238
      %v403 = vunpack.c.l.b16 %v239
      %v404 = vunpack.c.l.b16 %v240
      %v405 = vpack.c.b16 %v390, %v389
      %v406 = vpack.c.b16 %v392, %v391
      %v407 = vpack.c.b16 %v394, %v393
      %v408 = vpack.c.b16 %v396, %v395
      %v409 = vpack.c.b16 %v398, %v397
      %v410 = vpack.c.b16 %v400, %v399
      %v411 = vpack.c.b16 %v402, %v401
      %v412 = vpack.c.b16 %v404, %v403
      %vm420 = vcmask 1022976
      %v422 = vsel %vm420, %v348, 0
      %v425 = vsel %vm420, %v349, 0
      %v428 = vsel %vm420, %v350, 0
      %v431 = vsel %vm420, %v351, 0
      %v434 = vsel %vm420, %v352, 0
      %v437 = vsel %vm420, %v353, 0
      %v440 = vsel %vm420, %v354, 0
      %v443 = vsel %vm420, %v355, 0
      %v446 = vsel %vm420, %v356, 0
      %v449 = vsel %vm420, %v357, 0
      %v452 = vsel %vm420, %v358, 0
      %v455 = vsel %vm420, %v359, 0
      %v458 = vsel %vm420, %v360, 0
      %v461 = vsel %vm420, %v361, 0
      %v464 = vsel %vm420, %v362, 0
      %v467 = vsel %vm420, %v363, 0
      %v470 = vsel %vm420, %v364, 0
      %v473 = vsel %vm420, %v365, 0
      %v476 = vsel %vm420, %v366, 0
      %v479 = vsel %vm420, %v367, 0
      %v482 = vsel %vm420, %v368, 0
      %v485 = vsel %vm420, %v369, 0
      %v488 = vsel %vm420, %v370, 0
      %v491 = vsel %vm420, %v371, 0
      %v494 = vsel %vm420, %v372, 0
      %vm496 = vcmask 1045504
      %vm497 = vcmask 1046528
      %v498 = vsel %vm496, 4294967295, 65535
      %v499 = vsel %vm497, %v498, 0
      %v501 = vand.u32 %v412, %v499
      %503 = vmatprep.subr.bf16.mxu0 0
      %504 = vmatpush1.bf16.msra.mxu0 %v405
      %505 = vmatprep.subr.bf16.mxu0 0
      %506 = vmatpush1.bf16.msra.mxu0 %v406
      %507 = vmatprep.subr.bf16.mxu0 0
      %508 = vmatpush1.bf16.msra.mxu0 %v407
      %509 = vmatprep.subr.bf16.mxu0 0
      %510 = vmatpush1.bf16.msra.mxu0 %v408
      %511 = vmatprep.subr.bf16.mxu0 0
      %512 = vmatpush1.bf16.msra.mxu0 %v409
      %513 = vmatprep.subr.bf16.mxu0 0
      %514 = vmatpush1.bf16.msra.mxu0 %v410
      %515 = vmatprep.subr.bf16.mxu0 0
      %516 = vmatpush1.bf16.msra.mxu0 %v411
      %517 = vmatprep.subr.bf16.mxu0 0
      %518 = vmatpush1.bf16.msra.mxu0 %v501
      %519 = vmatprep.subr.bf16.mxu0 0
      %520 = vmatpush1.bf16.msra.mxu0 0
      %521 = vmatprep.subr.bf16.mxu0 0
      %522 = vmatpush1.bf16.msra.mxu0 0
      %523 = vmatprep.subr.bf16.mxu0 0
      %524 = vmatpush1.bf16.msra.mxu0 0
      %525 = vmatprep.subr.bf16.mxu0 0
      %526 = vmatpush1.bf16.msra.mxu0 0
      %527 = vmatprep.subr.bf16.mxu0 0
      %528 = vmatpush1.bf16.msra.mxu0 0
      %529 = vmatprep.subr.bf16.mxu0 0
      %530 = vmatpush1.bf16.msra.mxu0 0
      %531 = vmatprep.subr.bf16.mxu0 0
      %532 = vmatpush1.bf16.msra.mxu0 0
      %533 = vmatprep.subr.bf16.mxu0 0
      %534 = vmatpush1.bf16.msra.mxu0 0
      %535 = vmatprep.mubr.bf16.mxu0 0
      %536 = vmatmul.mubr.bf16.gmra.mrb[0].mxu0 %v422
      %v537 = vpop.f32.mrb[0].mxu0
      %v538 = vadd.f32 %v246, %v537
      %v539 = vpop.f32.mrb[0].mxu0
      %v540 = vpop.f32.mrb[0].mxu0
      %v541 = vadd.f32 %v246, %v540
      %v542 = vpop.f32.mrb[0].mxu0
      %543 = vmatprep.mubr.bf16.mxu0 0
      %544 = vmatmul.mubr.bf16.gmra.mrb[0].mxu0 %v425
      %v545 = vpop.f32.mrb[0].mxu0
      %v546 = vadd.f32 %v246, %v545
      %v547 = vpop.f32.mrb[0].mxu0
      %v548 = vpop.f32.mrb[0].mxu0
      %v549 = vadd.f32 %v246, %v548
      %v550 = vpop.f32.mrb[0].mxu0
      %551 = vmatprep.mubr.bf16.mxu0 0
      %552 = vmatmul.mubr.bf16.gmra.mrb[0].mxu0 %v428
      %v553 = vpop.f32.mrb[0].mxu0
      %v554 = vadd.f32 %v246, %v553
      %v555 = vpop.f32.mrb[0].mxu0
      %v556 = vpop.f32.mrb[0].mxu0
      %v557 = vadd.f32 %v246, %v556
      %v558 = vpop.f32.mrb[0].mxu0
      %559 = vmatprep.mubr.bf16.mxu0 0
      %560 = vmatmul.mubr.bf16.gmra.mrb[0].mxu0 %v431
      %v561 = vpop.f32.mrb[0].mxu0
      %v562 = vadd.f32 %v246, %v561
      %v563 = vpop.f32.mrb[0].mxu0
      %v564 = vpop.f32.mrb[0].mxu0
      %v565 = vadd.f32 %v246, %v564
      %v566 = vpop.f32.mrb[0].mxu0
      %567 = vmatprep.mubr.bf16.mxu0 0
      %568 = vmatmul.mubr.bf16.gmra.mrb[0].mxu0 %v434
      %v569 = vpop.f32.mrb[0].mxu0
      %v570 = vadd.f32 %v246, %v569
      %v571 = vpop.f32.mrb[0].mxu0
      %v572 = vpop.f32.mrb[0].mxu0
      %v573 = vadd.f32 %v246, %v572
      %v574 = vpop.f32.mrb[0].mxu0
      %575 = vmatprep.mubr.bf16.mxu0 0
      %576 = vmatmul.mubr.bf16.gmra.mrb[0].mxu0 %v437
      %v577 = vpop.f32.mrb[0].mxu0
      %v578 = vadd.f32 %v246, %v577
      %v579 = vpop.f32.mrb[0].mxu0
      %v580 = vpop.f32.mrb[0].mxu0
      %v581 = vadd.f32 %v246, %v580
      %v582 = vpop.f32.mrb[0].mxu0
      %583 = vmatprep.mubr.bf16.mxu0 0
      %584 = vmatmul.mubr.bf16.gmra.mrb[0].mxu0 %v440
      %v585 = vpop.f32.mrb[0].mxu0
      %v586 = vadd.f32 %v246, %v585
      %v587 = vpop.f32.mrb[0].mxu0
      %v588 = vpop.f32.mrb[0].mxu0
      %v589 = vadd.f32 %v246, %v588
      %v590 = vpop.f32.mrb[0].mxu0
      %591 = vmatprep.mubr.bf16.mxu0 0
      %592 = vmatmul.mubr.bf16.gmra.mrb[0].mxu0 %v443
      %v593 = vpop.f32.mrb[0].mxu0
      %v594 = vadd.f32 %v246, %v593
      %v595 = vpop.f32.mrb[0].mxu0
      %v596 = vpop.f32.mrb[0].mxu0
      %v597 = vadd.f32 %v246, %v596
      %v598 = vpop.f32.mrb[0].mxu0
      %599 = vmatprep.mubr.bf16.mxu0 0
      %600 = vmatmul.mubr.bf16.gmra.mrb[0].mxu0 %v446
      %v601 = vpop.f32.mrb[0].mxu0
      %v602 = vadd.f32 %v246, %v601
      %v603 = vpop.f32.mrb[0].mxu0
      %v604 = vpop.f32.mrb[0].mxu0
      %v605 = vadd.f32 %v246, %v604
      %v606 = vpop.f32.mrb[0].mxu0
      %607 = vmatprep.mubr.bf16.mxu0 0
      %608 = vmatmul.mubr.bf16.gmra.mrb[0].mxu0 %v449
      %v609 = vpop.f32.mrb[0].mxu0
      %v610 = vadd.f32 %v246, %v609
      %v611 = vpop.f32.mrb[0].mxu0
      %v612 = vpop.f32.mrb[0].mxu0
      %v613 = vadd.f32 %v246, %v612
      %v614 = vpop.f32.mrb[0].mxu0
      %615 = vmatprep.mubr.bf16.mxu0 0
      %616 = vmatmul.mubr.bf16.gmra.mrb[0].mxu0 %v452
      %v617 = vpop.f32.mrb[0].mxu0
      %v618 = vadd.f32 %v246, %v617
      %v619 = vpop.f32.mrb[0].mxu0
      %v620 = vpop.f32.mrb[0].mxu0
      %v621 = vadd.f32 %v246, %v620
      %v622 = vpop.f32.mrb[0].mxu0
      %623 = vmatprep.mubr.bf16.mxu0 0
      %624 = vmatmul.mubr.bf16.gmra.mrb[0].mxu0 %v455
      %v625 = vpop.f32.mrb[0].mxu0
      %v626 = vadd.f32 %v246, %v625
      %v627 = vpop.f32.mrb[0].mxu0
      %v628 = vpop.f32.mrb[0].mxu0
      %v629 = vadd.f32 %v246, %v628
      %v630 = vpop.f32.mrb[0].mxu0
      %631 = vmatprep.mubr.bf16.mxu0 0
      %632 = vmatmul.mubr.bf16.gmra.mrb[0].mxu0 %v458
      %v633 = vpop.f32.mrb[0].mxu0
      %v634 = vadd.f32 %v246, %v633
      %v635 = vpop.f32.mrb[0].mxu0
      %v636 = vpop.f32.mrb[0].mxu0
      %v637 = vadd.f32 %v246, %v636
      %v638 = vpop.f32.mrb[0].mxu0
      %639 = vmatprep.mubr.bf16.mxu0 0
      %640 = vmatmul.mubr.bf16.gmra.mrb[0].mxu0 %v461
      %v641 = vpop.f32.mrb[0].mxu0
      %v642 = vadd.f32 %v246, %v641
      %v643 = vpop.f32.mrb[0].mxu0
      %v644 = vpop.f32.mrb[0].mxu0
      %v645 = vadd.f32 %v246, %v644
      %v646 = vpop.f32.mrb[0].mxu0
      %647 = vmatprep.mubr.bf16.mxu0 0
      %648 = vmatmul.mubr.bf16.gmra.mrb[0].mxu0 %v464
      %v649 = vpop.f32.mrb[0].mxu0
      %v650 = vadd.f32 %v246, %v649
      %v651 = vpop.f32.mrb[0].mxu0
      %v652 = vpop.f32.mrb[0].mxu0
      %v653 = vadd.f32 %v246, %v652
      %v654 = vpop.f32.mrb[0].mxu0
      %655 = vmatprep.mubr.bf16.mxu0 0
      %656 = vmatmul.mubr.bf16.gmra.mrb[0].mxu0 %v467
      %v657 = vpop.f32.mrb[0].mxu0
      %v658 = vadd.f32 %v246, %v657
      %v659 = vpop.f32.mrb[0].mxu0
      %v660 = vpop.f32.mrb[0].mxu0
      %v661 = vadd.f32 %v246, %v660
      %v662 = vpop.f32.mrb[0].mxu0
      %663 = vmatprep.mubr.bf16.mxu0 0
      %664 = vmatmul.mubr.bf16.gmra.mrb[0].mxu0 %v470
      %v665 = vpop.f32.mrb[0].mxu0
      %v666 = vadd.f32 %v246, %v665
      %v667 = vpop.f32.mrb[0].mxu0
      %v668 = vpop.f32.mrb[0].mxu0
      %v669 = vadd.f32 %v246, %v668
      %v670 = vpop.f32.mrb[0].mxu0
      %671 = vmatprep.mubr.bf16.mxu0 0
      %672 = vmatmul.mubr.bf16.gmra.mrb[0].mxu0 %v473
      %v673 = vpop.f32.mrb[0].mxu0
      %v674 = vadd.f32 %v246, %v673
      %v675 = vpop.f32.mrb[0].mxu0
      %v676 = vpop.f32.mrb[0].mxu0
      %v677 = vadd.f32 %v246, %v676
      %v678 = vpop.f32.mrb[0].mxu0
      %679 = vmatprep.mubr.bf16.mxu0 0
      %680 = vmatmul.mubr.bf16.gmra.mrb[0].mxu0 %v476
      %v681 = vpop.f32.mrb[0].mxu0
      %v682 = vadd.f32 %v246, %v681
      %v683 = vpop.f32.mrb[0].mxu0
      %v684 = vpop.f32.mrb[0].mxu0
      %v685 = vadd.f32 %v246, %v684
      %v686 = vpop.f32.mrb[0].mxu0
      %687 = vmatprep.mubr.bf16.mxu0 0
      %688 = vmatmul.mubr.bf16.gmra.mrb[0].mxu0 %v479
      %v689 = vpop.f32.mrb[0].mxu0
      %v690 = vadd.f32 %v246, %v689
      %v691 = vpop.f32.mrb[0].mxu0
      %v692 = vpop.f32.mrb[0].mxu0
      %v693 = vadd.f32 %v246, %v692
      %v694 = vpop.f32.mrb[0].mxu0
      %695 = vmatprep.mubr.bf16.mxu0 0
      %696 = vmatmul.mubr.bf16.gmra.mrb[0].mxu0 %v482
      %v697 = vpop.f32.mrb[0].mxu0
      %v698 = vadd.f32 %v246, %v697
      %v699 = vpop.f32.mrb[0].mxu0
      %v700 = vpop.f32.mrb[0].mxu0
      %v701 = vadd.f32 %v246, %v700
      %v702 = vpop.f32.mrb[0].mxu0
      %703 = vmatprep.mubr.bf16.mxu0 0
      %704 = vmatmul.mubr.bf16.gmra.mrb[0].mxu0 %v485
      %v705 = vpop.f32.mrb[0].mxu0
      %v706 = vadd.f32 %v246, %v705
      %v707 = vpop.f32.mrb[0].mxu0
      %v708 = vpop.f32.mrb[0].mxu0
      %v709 = vadd.f32 %v246, %v708
      %v710 = vpop.f32.mrb[0].mxu0
      %711 = vmatprep.mubr.bf16.mxu0 0
      %712 = vmatmul.mubr.bf16.gmra.mrb[0].mxu0 %v488
      %v713 = vpop.f32.mrb[0].mxu0
      %v714 = vadd.f32 %v246, %v713
      %v715 = vpop.f32.mrb[0].mxu0
      %v716 = vpop.f32.mrb[0].mxu0
      %v717 = vadd.f32 %v246, %v716
      %v718 = vpop.f32.mrb[0].mxu0
      %719 = vmatprep.mubr.bf16.mxu0 0
      %720 = vmatmul.mubr.bf16.gmra.mrb[0].mxu0 %v491
      %v721 = vpop.f32.mrb[0].mxu0
      %v722 = vadd.f32 %v246, %v721
      %v723 = vpop.f32.mrb[0].mxu0
      %v724 = vpop.f32.mrb[0].mxu0
      %v725 = vadd.f32 %v246, %v724
      %v726 = vpop.f32.mrb[0].mxu0
      %727 = vmatprep.mubr.bf16.mxu0 0
      %728 = vmatmul.mubr.bf16.gmra.mrb[0].mxu0 %v494
      %v729 = vpop.f32.mrb[0].mxu0
      %v730 = vadd.f32 %v246, %v729
      %v731 = vpop.f32.mrb[0].mxu0
      %v732 = vpop.f32.mrb[0].mxu0
      %v733 = vadd.f32 %v246, %v732
      %v734 = vpop.f32.mrb[0].mxu0
      %735 = vdwg.mxu0
      %v736 = vmax.f32 %v538, 0.0
      %v737 = vmax.f32 %v541, 0.0
      %v738 = vmax.f32 %v546, 0.0
      %v739 = vmax.f32 %v549, 0.0
      %v740 = vmax.f32 %v554, 0.0
      %v741 = vmax.f32 %v557, 0.0
      %v742 = vmax.f32 %v562, 0.0
      %v743 = vmax.f32 %v565, 0.0
      %v744 = vmax.f32 %v570, 0.0
      %v745 = vmax.f32 %v573, 0.0
      %v746 = vmax.f32 %v578, 0.0
      %v747 = vmax.f32 %v581, 0.0
      %v748 = vmax.f32 %v586, 0.0
      %v749 = vmax.f32 %v589, 0.0
      %v750 = vmax.f32 %v594, 0.0
      %v751 = vmax.f32 %v597, 0.0
      %v752 = vmax.f32 %v602, 0.0
      %v753 = vmax.f32 %v605, 0.0
      %v754 = vmax.f32 %v610, 0.0
      %v755 = vmax.f32 %v613, 0.0
      %v756 = vmax.f32 %v618, 0.0
      %v757 = vmax.f32 %v621, 0.0
      %v758 = vmax.f32 %v626, 0.0
      %v759 = vmax.f32 %v629, 0.0
      %v760 = vmax.f32 %v634, 0.0
      %v761 = vmax.f32 %v637, 0.0
      %v762 = vmax.f32 %v642, 0.0
      %v763 = vmax.f32 %v645, 0.0
      %v764 = vmax.f32 %v650, 0.0
      %v765 = vmax.f32 %v653, 0.0
      %v766 = vmax.f32 %v658, 0.0
      %v767 = vmax.f32 %v661, 0.0
      %v768 = vmax.f32 %v666, 0.0
      %v769 = vmax.f32 %v669, 0.0
      %v770 = vmax.f32 %v674, 0.0
      %v771 = vmax.f32 %v677, 0.0
      %v772 = vmax.f32 %v682, 0.0
      %v773 = vmax.f32 %v685, 0.0
      %v774 = vmax.f32 %v690, 0.0
      %v775 = vmax.f32 %v693, 0.0
      %v776 = vmax.f32 %v698, 0.0
      %v777 = vmax.f32 %v701, 0.0
      %v778 = vmax.f32 %v706, 0.0
      %v779 = vmax.f32 %v709, 0.0
      %v780 = vmax.f32 %v714, 0.0
      %v781 = vmax.f32 %v717, 0.0
      %v782 = vmax.f32 %v722, 0.0
      %v783 = vmax.f32 %v725, 0.0
      %v784 = vmax.f32 %v730, 0.0
      %v785 = vmax.f32 %v733, 0.0
      %v786 = vpack.c.bf16 %v737, %v736
      %v787 = vpack.c.bf16 %v739, %v738
      %v788 = vpack.c.bf16 %v741, %v740
      %v789 = vpack.c.bf16 %v743, %v742
      %v790 = vpack.c.bf16 %v745, %v744
      %v791 = vpack.c.bf16 %v747, %v746
      %v792 = vpack.c.bf16 %v749, %v748
      %v793 = vpack.c.bf16 %v751, %v750
      %v794 = vpack.c.bf16 %v753, %v752
      %v795 = vpack.c.bf16 %v755, %v754
      %v796 = vpack.c.bf16 %v757, %v756
      %v797 = vpack.c.bf16 %v759, %v758
      %v798 = vpack.c.bf16 %v761, %v760
      %v799 = vpack.c.bf16 %v763, %v762
      %v800 = vpack.c.bf16 %v765, %v764
      %v801 = vpack.c.bf16 %v767, %v766
      %v802 = vpack.c.bf16 %v769, %v768
      %v803 = vpack.c.bf16 %v771, %v770
      %v804 = vpack.c.bf16 %v773, %v772
      %v805 = vpack.c.bf16 %v775, %v774
      %v806 = vpack.c.bf16 %v777, %v776
      %v807 = vpack.c.bf16 %v779, %v778
      %v808 = vpack.c.bf16 %v781, %v780
      %v809 = vpack.c.bf16 %v783, %v782
      %v810 = vpack.c.bf16 %v785, %v784
      %v836 = vunpack.c.l.b16 %v786
      %v837 = vunpack.c.h.b16 %v786
      %v838 = vunpack.c.l.b16 %v787
      %v839 = vunpack.c.h.b16 %v787
      %v840 = vunpack.c.l.b16 %v788
      %v841 = vunpack.c.h.b16 %v788
      %v842 = vunpack.c.l.b16 %v789
      %v843 = vunpack.c.h.b16 %v789
      %v844 = vunpack.c.l.b16 %v790
      %v845 = vunpack.c.h.b16 %v790
      %v846 = vunpack.c.l.b16 %v791
      %v847 = vunpack.c.h.b16 %v791
      %v848 = vunpack.c.l.b16 %v792
      %v849 = vunpack.c.h.b16 %v792
      %v850 = vunpack.c.l.b16 %v793
      %v851 = vunpack.c.h.b16 %v793
      %v852 = vunpack.c.l.b16 %v794
      %v853 = vunpack.c.h.b16 %v794
      %v854 = vunpack.c.l.b16 %v795
      %v855 = vunpack.c.h.b16 %v795
      %v856 = vunpack.c.l.b16 %v796
      %v857 = vunpack.c.h.b16 %v796
      %v858 = vunpack.c.l.b16 %v797
      %v859 = vunpack.c.h.b16 %v797
      %v860 = vunpack.c.l.b16 %v798
      %v861 = vunpack.c.h.b16 %v798
      %v862 = vunpack.c.l.b16 %v799
      %v863 = vunpack.c.h.b16 %v799
      %v864 = vunpack.c.l.b16 %v800
      %v865 = vunpack.c.h.b16 %v800
      %v866 = vunpack.c.l.b16 %v801
      %v867 = vunpack.c.h.b16 %v801
      %v868 = vunpack.c.l.b16 %v802
      %v869 = vunpack.c.h.b16 %v802
      %v870 = vunpack.c.l.b16 %v803
      %v871 = vunpack.c.h.b16 %v803
      %v872 = vunpack.c.l.b16 %v804
      %v873 = vunpack.c.h.b16 %v804
      %v874 = vunpack.c.l.b16 %v805
      %v875 = vunpack.c.h.b16 %v805
      %v876 = vunpack.c.l.b16 %v806
      %v877 = vunpack.c.h.b16 %v806
      %v878 = vunpack.c.l.b16 %v807
      %v879 = vunpack.c.h.b16 %v807
      %v880 = vunpack.c.l.b16 %v808
      %v881 = vunpack.c.h.b16 %v808
      %v882 = vunpack.c.l.b16 %v809
      %v883 = vunpack.c.h.b16 %v809
      %v884 = vunpack.c.l.b16 %v810
      %v885 = vunpack.c.h.b16 %v810
      %v886 = vpack.c.b16 %v836, %v836
      %v887 = vpack.c.b16 %v837, %v837
      %v888 = vpack.c.b16 %v838, %v838
      %v889 = vpack.c.b16 %v839, %v839
      %v890 = vpack.c.b16 %v840, %v840
      %v891 = vpack.c.b16 %v841, %v841
      %v892 = vpack.c.b16 %v842, %v842
      %v893 = vpack.c.b16 %v843, %v843
      %v894 = vpack.c.b16 %v844, %v844
      %v895 = vpack.c.b16 %v845, %v845
      %v896 = vpack.c.b16 %v846, %v846
      %v897 = vpack.c.b16 %v847, %v847
      %v898 = vpack.c.b16 %v848, %v848
      %v899 = vpack.c.b16 %v849, %v849
      %v900 = vpack.c.b16 %v850, %v850
      %v901 = vpack.c.b16 %v851, %v851
      %v902 = vpack.c.b16 %v852, %v852
      %v903 = vpack.c.b16 %v853, %v853
      %v904 = vpack.c.b16 %v854, %v854
      %v905 = vpack.c.b16 %v855, %v855
      %v906 = vpack.c.b16 %v856, %v856
      %v907 = vpack.c.b16 %v857, %v857
      %v908 = vpack.c.b16 %v858, %v858
      %v909 = vpack.c.b16 %v859, %v859
      %v910 = vpack.c.b16 %v860, %v860
      %v911 = vpack.c.b16 %v861, %v861
      %v912 = vpack.c.b16 %v862, %v862
      %v913 = vpack.c.b16 %v863, %v863
      %v914 = vpack.c.b16 %v864, %v864
      %v915 = vpack.c.b16 %v865, %v865
      %v916 = vpack.c.b16 %v866, %v866
      %v917 = vpack.c.b16 %v867, %v867
      %v918 = vpack.c.b16 %v868, %v868
      %v919 = vpack.c.b16 %v869, %v869
      %v920 = vpack.c.b16 %v870, %v870
      %v921 = vpack.c.b16 %v871, %v871
      %v922 = vpack.c.b16 %v872, %v872
      %v923 = vpack.c.b16 %v873, %v873
      %v924 = vpack.c.b16 %v874, %v874
      %v925 = vpack.c.b16 %v875, %v875
      %v926 = vpack.c.b16 %v876, %v876
      %v927 = vpack.c.b16 %v877, %v877
      %v928 = vpack.c.b16 %v878, %v878
      %v929 = vpack.c.b16 %v879, %v879
      %v930 = vpack.c.b16 %v880, %v880
      %v931 = vpack.c.b16 %v881, %v881
      %v932 = vpack.c.b16 %v882, %v882
      %v933 = vpack.c.b16 %v883, %v883
      %v934 = vpack.c.b16 %v884, %v884
      %v935 = vpack.c.b16 %v885, %v885
      %986 = vst [vmem:[%s172] sm:$0xf] %v886
      %987 = vst [vmem:[%s172 + $0x4] sm:$0xf] %v887
      %988 = vst [vmem:[%s172 + $0x8] sm:$0xf] %v888
      %989 = vst [vmem:[%s172 + $0xc] sm:$0xf] %v889
      %990 = vst [vmem:[%s172 + $0x10] sm:$0xf] %v890
      %991 = vst [vmem:[%s172 + $0x14] sm:$0xf] %v891
      %992 = vst [vmem:[%s172 + $0x18] sm:$0xf] %v892
      %993 = vst [vmem:[%s172 + $0x1c] sm:$0xf] %v893
      %994 = vst [vmem:[%s172 + $0x20] sm:$0xf] %v894
      %995 = vst [vmem:[%s172 + $0x24] sm:$0xf] %v895
      %996 = vst [vmem:[%s172 + $0x28] sm:$0xf] %v896
      %997 = vst [vmem:[%s172 + $0x2c] sm:$0xf] %v897
      %998 = vst [vmem:[%s172 + $0x30] sm:$0xf] %v898
      %999 = vst [vmem:[%s172 + $0x34] sm:$0xf] %v899
      %1000 = vst [vmem:[%s172 + $0x38] sm:$0xf] %v900
      %1001 = vst [vmem:[%s172 + $0x3c] sm:$0xf] %v901
      %1002 = vst [vmem:[%s172 + $0x40] sm:$0xf] %v902
      %1003 = vst [vmem:[%s172 + $0x44] sm:$0xf] %v903
      %1004 = vst [vmem:[%s172 + $0x48] sm:$0xf] %v904
      %1005 = vst [vmem:[%s172 + $0x4c] sm:$0xf] %v905
      %1006 = vst [vmem:[%s172 + $0x50] sm:$0xf] %v906
      %1007 = vst [vmem:[%s172 + $0x54] sm:$0xf] %v907
      %1008 = vst [vmem:[%s172 + $0x58] sm:$0xf] %v908
      %1009 = vst [vmem:[%s172 + $0x5c] sm:$0xf] %v909
      %1010 = vst [vmem:[%s172 + $0x60] sm:$0xf] %v910
      %1011 = vst [vmem:[%s172 + $0x64] sm:$0xf] %v911
      %1012 = vst [vmem:[%s172 + $0x68] sm:$0xf] %v912
      %1013 = vst [vmem:[%s172 + $0x6c] sm:$0xf] %v913
      %1014 = vst [vmem:[%s172 + $0x70] sm:$0xf] %v914
      %1015 = vst [vmem:[%s172 + $0x74] sm:$0xf] %v915
      %1016 = vst [vmem:[%s172 + $0x78] sm:$0xf] %v916
      %1017 = vst [vmem:[%s172 + $0x7c] sm:$0xf] %v917
      %1018 = vst [vmem:[%s172 + $0x80] sm:$0xf] %v918
      %1019 = vst [vmem:[%s172 + $0x84] sm:$0xf] %v919
      %1020 = vst [vmem:[%s172 + $0x88] sm:$0xf] %v920
      %1021 = vst [vmem:[%s172 + $0x8c] sm:$0xf] %v921
      %1022 = vst [vmem:[%s172 + $0x90] sm:$0xf] %v922
      %1023 = vst [vmem:[%s172 + $0x94] sm:$0xf] %v923
      %1024 = vst [vmem:[%s172 + $0x98] sm:$0xf] %v924
      %1025 = vst [vmem:[%s172 + $0x9c] sm:$0xf] %v925
      %1026 = vst [vmem:[%s172 + $0xa0] sm:$0xf] %v926
      %1027 = vst [vmem:[%s172 + $0xa4] sm:$0xf] %v927
      %1028 = vst [vmem:[%s172 + $0xa8] sm:$0xf] %v928
      %1029 = vst [vmem:[%s172 + $0xac] sm:$0xf] %v929
      %1030 = vst [vmem:[%s172 + $0xb0] sm:$0xf] %v930
      %1031 = vst [vmem:[%s172 + $0xb4] sm:$0xf] %v931
      %1032 = vst [vmem:[%s172 + $0xb8] sm:$0xf] %v932
      %1033 = vst [vmem:[%s172 + $0xbc] sm:$0xf] %v933
      %1034 = vst [vmem:[%s172 + $0xc0] sm:$0xf] %v934
      %1035 = vst [vmem:[%s172 + $0xc4] sm:$0xf] %v935
      %s1036 = smul.u32 50, %s14
      %p1037 = scmp.lt.s32.totalorder %s1036, 99
      %s1038 = scalar_select %p1037, %s1036, 99
      %s1039 = smul.addr %s1038, 4
      %s1040 = scalar_lea.vmem %s3, %s1039
      // Predicated region
      $region33: #{net_forward.6} parent=31 // pred_check
        %p1041 = pneg %p100
      $region34: #{net_forward.6} parent=31 // pred_check_branch
        %1043 = sbr.rel (%p1041) target = $region36
      $region35: #{net_forward.6} parent=31 // pred_region
        %s1044 = smul.u32 50, %s14
      $region36: #{net_forward.6} parent=31 // pred_fallthru
        _
    $region32: #{net_forward.6} parent=5 // pred_fallthru
      _
    %p1045 = scmp.le.s32.totalorder 2, %s9
    // Predicated region
    $region37: #{net_forward.6} parent=5 // pred_check
      %p1046 = pneg %p1045
    $region38: #{net_forward.6} parent=5 // pred_check_branch
      %1048 = sbr.rel (%p1046) target = $region40
    $region39: #{net_forward.6} parent=5 // pred_region
      %s1049 = ssub.s32 %s9, 2
      // Predicated region
      $region41: #{net_forward.6} parent=39 // pred_check
        %p1050 = pneg %p106
      $region42: #{net_forward.6} parent=39 // pred_check_branch
        %1052 = sbr.rel (%p1050) target = $region44
      $region43: #{net_forward.6} parent=39 // pred_region
        %s1053 = smul.u32 50, %s15
        %p1054 = scmp.lt.s32.totalorder %s1053, 99
        %s1055 = scalar_select %p1054, %s1053, 99
        %s1056 = smul.addr %s1055, 4
        %s1057 = scalar_lea.vmem %s3, %s1056
      $region44: #{net_forward.6} parent=39 // pred_fallthru
        _
    $region40: #{net_forward.6} parent=5 // pred_fallthru
      _
  $region6: #{net_forward.6} parent=0 // loop_footer
    %s13 = sadd.s32 1, %s9
  $region7: #{net_forward.6} parent=0 // loop_footer_branch
    %8 = sbr.rel target = $region3
  $region8: #{net_forward.6} parent=0 // loop_exit
    _

// kernel: net_forward.7
$region0: #{net_forward.7}
  #allocation0 [shape = 'u32[]', space=smem, size = 0x4, offset = 0x4, fixed_abs, tag = 'smem constant byte address 0x4 - core index']
  #allocation1 [shape = 'u32[144,128]{1,0:T(1,128)}', space=vmem, size = 0x12000, scoped, tag = 'internal scratch']
  %s0 = inlined_call_operand.vmem [shape: bf16[512,250], index: 0, kind: input, shape index: {}]
  %s1 = inlined_call_operand.vmem [shape: bf16[250,128], index: 1, kind: input, shape index: {}]
  %s2 = inlined_call_operand.vmem [shape: f32[1,128], index: 2, kind: input, shape index: {}]
  %s3 = inlined_call_operand.vmem [shape: bf16[512,128], index: 3, kind: output, shape index: {}]
  %s4 = sld [smem:[#allocation0]]
  $region22: #{net_forward.7} parent=0
    _
  %s6 = ssub.s32 1, %s4
  %s7 = scalar_select 0, %s6, %s4
  // Predicated region
  $region2: #{net_forward.7} parent=0 // pred_check
    _
  $region3: #{net_forward.7} parent=0 // pred_check_branch
    %9 = sbr.rel (0) target = $region5
  $region4: #{net_forward.7} parent=0 // pred_region
    _
  $region5: #{net_forward.7} parent=0 // pred_fallthru
    _
  // Predicated region
  $region6: #{net_forward.7} parent=0 // pred_check
    _
  $region7: #{net_forward.7} parent=0 // pred_check_branch
    %11 = sbr.rel (0) target = $region9
  $region8: #{net_forward.7} parent=0 // pred_region
    _
  $region9: #{net_forward.7} parent=0 // pred_fallthru
    _
  // Predicated region
  $region10: #{net_forward.7} parent=0 // pred_check
    _
  $region11: #{net_forward.7} parent=0 // pred_check_branch
    %13 = sbr.rel (0) target = $region13
  $region12: #{net_forward.7} parent=0 // pred_region
    _
  $region13: #{net_forward.7} parent=0 // pred_fallthru
    _
  %v15 = vld [vmem:[%s0] sm:$0xff]
  %v16 = vld [vmem:[%s0 + $0x8] sm:$0xff]
  %v17 = vld [vmem:[%s0 + $0x10] sm:$0xff]
  %v18 = vld [vmem:[%s0 + $0x18] sm:$0xff]
  %v19 = vld [vmem:[%s0 + $0x20] sm:$0xff]
  %v20 = vld [vmem:[%s0 + $0x28] sm:$0xff]
  %v21 = vld [vmem:[%s0 + $0x30] sm:$0xff]
  %v22 = vld [vmem:[%s0 + $0x38] sm:$0xff]
  %v23 = vld [vmem:[%s0 + $0x40] sm:$0xff]
  %v24 = vld [vmem:[%s0 + $0x48] sm:$0xff]
  %v25 = vld [vmem:[%s0 + $0x50] sm:$0xff]
  %v26 = vld [vmem:[%s0 + $0x58] sm:$0xff]
  %v27 = vld [vmem:[%s0 + $0x60] sm:$0xff]
  %v28 = vld [vmem:[%s0 + $0x68] sm:$0xff]
  %v29 = vld [vmem:[%s0 + $0x70] sm:$0xff]
  %v30 = vld [vmem:[%s0 + $0x78] sm:$0xff]
  %v31 = vld [vmem:[%s0 + $0x80] sm:$0xff]
  %v32 = vld [vmem:[%s0 + $0x88] sm:$0xff]
  %v33 = vld [vmem:[%s0 + $0x90] sm:$0xff]
  %v34 = vld [vmem:[%s0 + $0x98] sm:$0xff]
  %v35 = vld [vmem:[%s0 + $0xa0] sm:$0xff]
  %v36 = vld [vmem:[%s0 + $0xa8] sm:$0xff]
  %v37 = vld [vmem:[%s0 + $0xb0] sm:$0xff]
  %v38 = vld [vmem:[%s0 + $0xb8] sm:$0xff]
  %v39 = vld [vmem:[%s0 + $0xc0] sm:$0xff]
  %v40 = vld [vmem:[%s0 + $0xc8] sm:$0xff]
  %v41 = vld [vmem:[%s0 + $0xd0] sm:$0xff]
  %v42 = vld [vmem:[%s0 + $0xd8] sm:$0xff]
  %v43 = vld [vmem:[%s0 + $0xe0] sm:$0xff]
  %v44 = vld [vmem:[%s0 + $0xe8] sm:$0xff]
  %v45 = vld [vmem:[%s0 + $0xf0] sm:$0xff]
  %v46 = vld [vmem:[%s0 + $0xf8] sm:$0xff]
  %v47 = vld [vmem:[%s0 + $0x100] sm:$0xff]
  %v48 = vld [vmem:[%s0 + $0x108] sm:$0xff]
  %v49 = vld [vmem:[%s0 + $0x110] sm:$0xff]
  %v50 = vld [vmem:[%s0 + $0x118] sm:$0xff]
  %v51 = vld [vmem:[%s0 + $0x120] sm:$0xff]
  %v52 = vld [vmem:[%s0 + $0x128] sm:$0xff]
  %v53 = vld [vmem:[%s0 + $0x130] sm:$0xff]
  %v54 = vld [vmem:[%s0 + $0x138] sm:$0xff]
  %v55 = vld [vmem:[%s0 + $0x140] sm:$0xff]
  %v56 = vld [vmem:[%s0 + $0x148] sm:$0xff]
  %v57 = vld [vmem:[%s0 + $0x150] sm:$0xff]
  %v58 = vld [vmem:[%s0 + $0x158] sm:$0xff]
  %v59 = vld [vmem:[%s0 + $0x160] sm:$0xff]
  %v60 = vld [vmem:[%s0 + $0x168] sm:$0xff]
  %v61 = vld [vmem:[%s0 + $0x170] sm:$0xff]
  %v62 = vld [vmem:[%s0 + $0x178] sm:$0xff]
  %v63 = vld [vmem:[%s0 + $0x180] sm:$0xff]
  %v64 = vld [vmem:[%s0 + $0x188] sm:$0xff]
  %v65 = vld [vmem:[%s0 + $0x190] sm:$0xff]
  %v66 = vld [vmem:[%s0 + $0x198] sm:$0xff]
  %v67 = vld [vmem:[%s0 + $0x1a0] sm:$0xff]
  %v68 = vld [vmem:[%s0 + $0x1a8] sm:$0xff]
  %v69 = vld [vmem:[%s0 + $0x1b0] sm:$0xff]
  %v70 = vld [vmem:[%s0 + $0x1b8] sm:$0xff]
  %v71 = vld [vmem:[%s0 + $0x1c0] sm:$0xff]
  %v72 = vld [vmem:[%s0 + $0x1c8] sm:$0xff]
  %v73 = vld [vmem:[%s0 + $0x1d0] sm:$0xff]
  %v74 = vld [vmem:[%s0 + $0x1d8] sm:$0xff]
  %v75 = vld [vmem:[%s0 + $0x1e0] sm:$0xff]
  %v76 = vld [vmem:[%s0 + $0x1e8] sm:$0xff]
  %v77 = vld [vmem:[%s0 + $0x1f0] sm:$0xff]
  %v78 = vld [vmem:[%s0 + $0x1f8] sm:$0xff]
  %v79 = vld [vmem:[%s1] sm:$0xf]
  %v80 = vld [vmem:[%s1 + $0x4] sm:$0xf]
  %v81 = vld [vmem:[%s1 + $0x8] sm:$0xf]
  %v82 = vld [vmem:[%s1 + $0xc] sm:$0xf]
  %v83 = vld [vmem:[%s1 + $0x10] sm:$0xf]
  %v84 = vld [vmem:[%s1 + $0x14] sm:$0xf]
  %v85 = vld [vmem:[%s1 + $0x18] sm:$0xf]
  %v86 = vld [vmem:[%s1 + $0x1c] sm:$0xf]
  %v87 = vld [vmem:[%s1 + $0x20] sm:$0xf]
  %v88 = vld [vmem:[%s1 + $0x24] sm:$0xf]
  %v89 = vld [vmem:[%s1 + $0x28] sm:$0xf]
  %v90 = vld [vmem:[%s1 + $0x2c] sm:$0xf]
  %v91 = vld [vmem:[%s1 + $0x30] sm:$0xf]
  %v92 = vld [vmem:[%s1 + $0x34] sm:$0xf]
  %v93 = vld [vmem:[%s1 + $0x38] sm:$0xf]
  %v94 = vld [vmem:[%s1 + $0x3c] sm:$0xf]
  %v95 = vld [vmem:[%s1 + $0x40] sm:$0xf]
  %v96 = vld [vmem:[%s1 + $0x44] sm:$0xf]
  %v97 = vld [vmem:[%s1 + $0x48] sm:$0xf]
  %v98 = vld [vmem:[%s1 + $0x4c] sm:$0xf]
  %v99 = vld [vmem:[%s1 + $0x50] sm:$0xf]
  %v100 = vld [vmem:[%s1 + $0x54] sm:$0xf]
  %v101 = vld [vmem:[%s1 + $0x58] sm:$0xf]
  %v102 = vld [vmem:[%s1 + $0x5c] sm:$0xf]
  %v103 = vld [vmem:[%s1 + $0x60] sm:$0xf]
  %v104 = vld [vmem:[%s1 + $0x64] sm:$0xf]
  %v105 = vld [vmem:[%s1 + $0x68] sm:$0xf]
  %v106 = vld [vmem:[%s1 + $0x6c] sm:$0xf]
  %v107 = vld [vmem:[%s1 + $0x70] sm:$0xf]
  %v108 = vld [vmem:[%s1 + $0x74] sm:$0xf]
  %v109 = vld [vmem:[%s1 + $0x78] sm:$0xf]
  %v110 = vld [vmem:[%s1 + $0x7c] sm:$0x1]
  %v111 = vld [vmem:[%s2] sm:$0x1]
  %v113 = vlaneseq
  %v114 = vshrl.u32 %v113, 7
  %v115 = vsub.s32 0, %v114
  %v116 = vrot.slane %v111, %v115
  %v182 = vunpack.c.l.b16 %v15
  %v183 = vunpack.c.h.b16 %v15
  %v184 = vunpack.c.l.b16 %v16
  %v185 = vunpack.c.h.b16 %v16
  %v186 = vunpack.c.l.b16 %v17
  %v187 = vunpack.c.h.b16 %v17
  %v188 = vunpack.c.l.b16 %v18
  %v189 = vunpack.c.h.b16 %v18
  %v190 = vunpack.c.l.b16 %v19
  %v191 = vunpack.c.h.b16 %v19
  %v192 = vunpack.c.l.b16 %v20
  %v193 = vunpack.c.h.b16 %v20
  %v194 = vunpack.c.l.b16 %v21
  %v195 = vunpack.c.h.b16 %v21
  %v196 = vunpack.c.l.b16 %v22
  %v197 = vunpack.c.h.b16 %v22
  %v198 = vunpack.c.l.b16 %v23
  %v199 = vunpack.c.h.b16 %v23
  %v200 = vunpack.c.l.b16 %v24
  %v201 = vunpack.c.h.b16 %v24
  %v202 = vunpack.c.l.b16 %v25
  %v203 = vunpack.c.h.b16 %v25
  %v204 = vunpack.c.l.b16 %v26
  %v205 = vunpack.c.h.b16 %v26
  %v206 = vunpack.c.l.b16 %v27
  %v207 = vunpack.c.h.b16 %v27
  %v208 = vunpack.c.l.b16 %v28
  %v209 = vunpack.c.h.b16 %v28
  %v210 = vunpack.c.l.b16 %v29
  %v211 = vunpack.c.h.b16 %v29
  %v212 = vunpack.c.l.b16 %v30
  %v213 = vunpack.c.h.b16 %v30
  %v214 = vunpack.c.l.b16 %v31
  %v215 = vunpack.c.h.b16 %v31
  %v216 = vunpack.c.l.b16 %v32
  %v217 = vunpack.c.h.b16 %v32
  %v218 = vunpack.c.l.b16 %v33
  %v219 = vunpack.c.h.b16 %v33
  %v220 = vunpack.c.l.b16 %v34
  %v221 = vunpack.c.h.b16 %v34
  %v222 = vunpack.c.l.b16 %v35
  %v223 = vunpack.c.h.b16 %v35
  %v224 = vunpack.c.l.b16 %v36
  %v225 = vunpack.c.h.b16 %v36
  %v226 = vunpack.c.l.b16 %v37
  %v227 = vunpack.c.h.b16 %v37
  %v228 = vunpack.c.l.b16 %v38
  %v229 = vunpack.c.h.b16 %v38
  %v230 = vunpack.c.l.b16 %v39
  %v231 = vunpack.c.h.b16 %v39
  %v232 = vunpack.c.l.b16 %v40
  %v233 = vunpack.c.h.b16 %v40
  %v234 = vunpack.c.l.b16 %v41
  %v235 = vunpack.c.h.b16 %v41
  %v236 = vunpack.c.l.b16 %v42
  %v237 = vunpack.c.h.b16 %v42
  %v238 = vunpack.c.l.b16 %v43
  %v239 = vunpack.c.h.b16 %v43
  %v240 = vunpack.c.l.b16 %v44
  %v241 = vunpack.c.h.b16 %v44
  %v242 = vunpack.c.l.b16 %v45
  %v243 = vunpack.c.h.b16 %v45
  %v244 = vunpack.c.l.b16 %v46
  %v245 = vunpack.c.h.b16 %v46
  %v246 = vunpack.c.l.b16 %v47
  %v247 = vunpack.c.h.b16 %v47
  %v248 = vunpack.c.l.b16 %v48
  %v249 = vunpack.c.h.b16 %v48
  %v250 = vunpack.c.l.b16 %v49
  %v251 = vunpack.c.h.b16 %v49
  %v252 = vunpack.c.l.b16 %v50
  %v253 = vunpack.c.h.b16 %v50
  %v254 = vunpack.c.l.b16 %v51
  %v255 = vunpack.c.h.b16 %v51
  %v256 = vunpack.c.l.b16 %v52
  %v257 = vunpack.c.h.b16 %v52
  %v258 = vunpack.c.l.b16 %v53
  %v259 = vunpack.c.h.b16 %v53
  %v260 = vunpack.c.l.b16 %v54
  %v261 = vunpack.c.h.b16 %v54
  %v262 = vunpack.c.l.b16 %v55
  %v263 = vunpack.c.h.b16 %v55
  %v264 = vunpack.c.l.b16 %v56
  %v265 = vunpack.c.h.b16 %v56
  %v266 = vunpack.c.l.b16 %v57
  %v267 = vunpack.c.h.b16 %v57
  %v268 = vunpack.c.l.b16 %v58
  %v269 = vunpack.c.h.b16 %v58
  %v270 = vunpack.c.l.b16 %v59
  %v271 = vunpack.c.h.b16 %v59
  %v272 = vunpack.c.l.b16 %v60
  %v273 = vunpack.c.h.b16 %v60
  %v274 = vunpack.c.l.b16 %v61
  %v275 = vunpack.c.h.b16 %v61
  %v276 = vunpack.c.l.b16 %v62
  %v277 = vunpack.c.h.b16 %v62
  %v278 = vunpack.c.l.b16 %v63
  %v279 = vunpack.c.h.b16 %v63
  %v280 = vunpack.c.l.b16 %v64
  %v281 = vunpack.c.h.b16 %v64
  %v282 = vunpack.c.l.b16 %v65
  %v283 = vunpack.c.h.b16 %v65
  %v284 = vunpack.c.l.b16 %v66
  %v285 = vunpack.c.h.b16 %v66
  %v286 = vunpack.c.l.b16 %v67
  %v287 = vunpack.c.h.b16 %v67
  %v288 = vunpack.c.l.b16 %v68
  %v289 = vunpack.c.h.b16 %v68
  %v290 = vunpack.c.l.b16 %v69
  %v291 = vunpack.c.h.b16 %v69
  %v292 = vunpack.c.l.b16 %v70
  %v293 = vunpack.c.h.b16 %v70
  %v294 = vunpack.c.l.b16 %v71
  %v295 = vunpack.c.h.b16 %v71
  %v296 = vunpack.c.l.b16 %v72
  %v297 = vunpack.c.h.b16 %v72
  %v298 = vunpack.c.l.b16 %v73
  %v299 = vunpack.c.h.b16 %v73
  %v300 = vunpack.c.l.b16 %v74
  %v301 = vunpack.c.h.b16 %v74
  %v302 = vunpack.c.l.b16 %v75
  %v303 = vunpack.c.h.b16 %v75
  %v304 = vunpack.c.l.b16 %v76
  %v305 = vunpack.c.h.b16 %v76
  %v306 = vunpack.c.l.b16 %v77
  %v307 = vunpack.c.h.b16 %v77
  %v308 = vunpack.c.l.b16 %v78
  %v309 = vunpack.c.h.b16 %v78
  %v310 = vpack.c.b16 %v184, %v182
  %v311 = vpack.c.b16 %v185, %v183
  %v312 = vpack.c.b16 %v188, %v186
  %v313 = vpack.c.b16 %v189, %v187
  %v314 = vpack.c.b16 %v192, %v190
  %v315 = vpack.c.b16 %v193, %v191
  %v316 = vpack.c.b16 %v196, %v194
  %v317 = vpack.c.b16 %v197, %v195
  %v318 = vpack.c.b16 %v200, %v198
  %v319 = vpack.c.b16 %v201, %v199
  %v320 = vpack.c.b16 %v204, %v202
  %v321 = vpack.c.b16 %v205, %v203
  %v322 = vpack.c.b16 %v208, %v206
  %v323 = vpack.c.b16 %v209, %v207
  %v324 = vpack.c.b16 %v212, %v210
  %v325 = vpack.c.b16 %v213, %v211
  %v326 = vpack.c.b16 %v216, %v214
  %v327 = vpack.c.b16 %v217, %v215
  %v328 = vpack.c.b16 %v220, %v218
  %v329 = vpack.c.b16 %v221, %v219
  %v330 = vpack.c.b16 %v224, %v222
  %v331 = vpack.c.b16 %v225, %v223
  %v332 = vpack.c.b16 %v228, %v226
  %v333 = vpack.c.b16 %v229, %v227
  %v334 = vpack.c.b16 %v232, %v230
  %v335 = vpack.c.b16 %v233, %v231
  %v336 = vpack.c.b16 %v236, %v234
  %v337 = vpack.c.b16 %v237, %v235
  %v338 = vpack.c.b16 %v240, %v238
  %v339 = vpack.c.b16 %v241, %v239
  %v340 = vpack.c.b16 %v244, %v242
  %v341 = vpack.c.b16 %v245, %v243
  %v342 = vpack.c.b16 %v248, %v246
  %v343 = vpack.c.b16 %v249, %v247
  %v344 = vpack.c.b16 %v252, %v250
  %v345 = vpack.c.b16 %v253, %v251
  %v346 = vpack.c.b16 %v256, %v254
  %v347 = vpack.c.b16 %v257, %v255
  %v348 = vpack.c.b16 %v260, %v258
  %v349 = vpack.c.b16 %v261, %v259
  %v350 = vpack.c.b16 %v264, %v262
  %v351 = vpack.c.b16 %v265, %v263
  %v352 = vpack.c.b16 %v268, %v266
  %v353 = vpack.c.b16 %v269, %v267
  %v354 = vpack.c.b16 %v272, %v270
  %v355 = vpack.c.b16 %v273, %v271
  %v356 = vpack.c.b16 %v276, %v274
  %v357 = vpack.c.b16 %v277, %v275
  %v358 = vpack.c.b16 %v280, %v278
  %v359 = vpack.c.b16 %v281, %v279
  %v360 = vpack.c.b16 %v284, %v282
  %v361 = vpack.c.b16 %v285, %v283
  %v362 = vpack.c.b16 %v288, %v286
  %v363 = vpack.c.b16 %v289, %v287
  %v364 = vpack.c.b16 %v292, %v290
  %v365 = vpack.c.b16 %v293, %v291
  %v366 = vpack.c.b16 %v296, %v294
  %v367 = vpack.c.b16 %v297, %v295
  %v368 = vpack.c.b16 %v300, %v298
  %v369 = vpack.c.b16 %v301, %v299
  %v370 = vpack.c.b16 %v304, %v302
  %v371 = vpack.c.b16 %v305, %v303
  %v372 = vpack.c.b16 %v308, %v306
  %v373 = vpack.c.b16 %v309, %v307
  %v438 = vunpack.c.l.b16 %v79
  %v439 = vunpack.c.l.b16 %v80
  %v440 = vunpack.c.l.b16 %v81
  %v441 = vunpack.c.l.b16 %v82
  %v442 = vunpack.c.l.b16 %v83
  %v443 = vunpack.c.l.b16 %v84
  %v444 = vunpack.c.l.b16 %v85
  %v445 = vunpack.c.l.b16 %v86
  %v446 = vunpack.c.l.b16 %v87
  %v447 = vunpack.c.l.b16 %v88
  %v448 = vunpack.c.l.b16 %v89
  %v449 = vunpack.c.l.b16 %v90
  %v450 = vunpack.c.l.b16 %v91
  %v451 = vunpack.c.l.b16 %v92
  %v452 = vunpack.c.l.b16 %v93
  %v453 = vunpack.c.l.b16 %v94
  %v454 = vunpack.c.l.b16 %v95
  %v455 = vunpack.c.l.b16 %v96
  %v456 = vunpack.c.l.b16 %v97
  %v457 = vunpack.c.l.b16 %v98
  %v458 = vunpack.c.l.b16 %v99
  %v459 = vunpack.c.l.b16 %v100
  %v460 = vunpack.c.l.b16 %v101
  %v461 = vunpack.c.l.b16 %v102
  %v462 = vunpack.c.l.b16 %v103
  %v463 = vunpack.c.l.b16 %v104
  %v464 = vunpack.c.l.b16 %v105
  %v465 = vunpack.c.l.b16 %v106
  %v466 = vunpack.c.l.b16 %v107
  %v467 = vunpack.c.l.b16 %v108
  %v468 = vunpack.c.l.b16 %v109
  %v469 = vunpack.c.l.b16 %v110
  %v470 = vpack.c.b16 %v439, %v438
  %v471 = vpack.c.b16 %v441, %v440
  %v472 = vpack.c.b16 %v443, %v442
  %v473 = vpack.c.b16 %v445, %v444
  %v474 = vpack.c.b16 %v447, %v446
  %v475 = vpack.c.b16 %v449, %v448
  %v476 = vpack.c.b16 %v451, %v450
  %v477 = vpack.c.b16 %v453, %v452
  %v478 = vpack.c.b16 %v455, %v454
  %v479 = vpack.c.b16 %v457, %v456
  %v480 = vpack.c.b16 %v459, %v458
  %v481 = vpack.c.b16 %v461, %v460
  %v482 = vpack.c.b16 %v463, %v462
  %v483 = vpack.c.b16 %v465, %v464
  %v484 = vpack.c.b16 %v467, %v466
  %v485 = vpack.c.b16 %v469, %v468
  %vm501 = vcmask 998400
  %v503 = vsel %vm501, %v311, 0
  %v506 = vsel %vm501, %v313, 0
  %v509 = vsel %vm501, %v315, 0
  %v512 = vsel %vm501, %v317, 0
  %v515 = vsel %vm501, %v319, 0
  %v518 = vsel %vm501, %v321, 0
  %v521 = vsel %vm501, %v323, 0
  %v524 = vsel %vm501, %v325, 0
  %v527 = vsel %vm501, %v327, 0
  %v530 = vsel %vm501, %v329, 0
  %v533 = vsel %vm501, %v331, 0
  %v536 = vsel %vm501, %v333, 0
  %v539 = vsel %vm501, %v335, 0
  %v542 = vsel %vm501, %v337, 0
  %v545 = vsel %vm501, %v339, 0
  %v548 = vsel %vm501, %v341, 0
  %v551 = vsel %vm501, %v343, 0
  %v554 = vsel %vm501, %v345, 0
  %v557 = vsel %vm501, %v347, 0
  %v560 = vsel %vm501, %v349, 0
  %v563 = vsel %vm501, %v351, 0
  %v566 = vsel %vm501, %v353, 0
  %v569 = vsel %vm501, %v355, 0
  %v572 = vsel %vm501, %v357, 0
  %v575 = vsel %vm501, %v359, 0
  %v578 = vsel %vm501, %v361, 0
  %v581 = vsel %vm501, %v363, 0
  %v584 = vsel %vm501, %v365, 0
  %v587 = vsel %vm501, %v367, 0
  %v590 = vsel %vm501, %v369, 0
  %v593 = vsel %vm501, %v371, 0
  %v596 = vsel %vm501, %v373, 0
  %vm598 = vcmask 1044480
  %v600 = vsel %vm598, %v485, 0
  %602 = vmatprep.subr.bf16.mxu0 0
  %603 = vmatpush1.bf16.msra.mxu0 %v470
  %604 = vmatprep.subr.bf16.mxu0 0
  %605 = vmatpush1.bf16.msra.mxu0 %v471
  %606 = vmatprep.subr.bf16.mxu0 0
  %607 = vmatpush1.bf16.msra.mxu0 %v472
  %608 = vmatprep.subr.bf16.mxu0 0
  %609 = vmatpush1.bf16.msra.mxu0 %v473
  %610 = vmatprep.subr.bf16.mxu0 0
  %611 = vmatpush1.bf16.msra.mxu0 %v474
  %612 = vmatprep.subr.bf16.mxu0 0
  %613 = vmatpush1.bf16.msra.mxu0 %v475
  %614 = vmatprep.subr.bf16.mxu0 0
  %615 = vmatpush1.bf16.msra.mxu0 %v476
  %616 = vmatprep.subr.bf16.mxu0 0
  %617 = vmatpush1.bf16.msra.mxu0 %v477
  %618 = vmatprep.subr.bf16.mxu0 0
  %619 = vmatpush1.bf16.msra.mxu0 %v478
  %620 = vmatprep.subr.bf16.mxu0 0
  %621 = vmatpush1.bf16.msra.mxu0 %v479
  %622 = vmatprep.subr.bf16.mxu0 0
  %623 = vmatpush1.bf16.msra.mxu0 %v480
  %624 = vmatprep.subr.bf16.mxu0 0
  %625 = vmatpush1.bf16.msra.mxu0 %v481
  %626 = vmatprep.subr.bf16.mxu0 0
  %627 = vmatpush1.bf16.msra.mxu0 %v482
  %628 = vmatprep.subr.bf16.mxu0 0
  %629 = vmatpush1.bf16.msra.mxu0 %v483
  %630 = vmatprep.subr.bf16.mxu0 0
  %631 = vmatpush1.bf16.msra.mxu0 %v484
  %632 = vmatprep.subr.bf16.mxu0 0
  %633 = vmatpush1.bf16.msra.mxu0 %v600
  %634 = vmatprep.mubr.bf16.mxu0 %v503
  %635 = vmatmul.mubr.bf16.gmra.mrb[0].mxu0 %v310
  %v636 = vpop.f32.mrb[0].mxu0
  %v637 = vadd.f32 %v116, %v636
  %v638 = vpop.f32.mrb[0].mxu0
  %v639 = vpop.f32.mrb[0].mxu0
  %v640 = vadd.f32 %v116, %v639
  %v641 = vpop.f32.mrb[0].mxu0
  %642 = vmatprep.mubr.bf16.mxu0 %v506
  %643 = vmatmul.mubr.bf16.gmra.mrb[0].mxu0 %v312
  %v644 = vpop.f32.mrb[0].mxu0
  %v645 = vadd.f32 %v116, %v644
  %v646 = vpop.f32.mrb[0].mxu0
  %v647 = vpop.f32.mrb[0].mxu0
  %v648 = vadd.f32 %v116, %v647
  %v649 = vpop.f32.mrb[0].mxu0
  %650 = vmatprep.mubr.bf16.mxu0 %v509
  %651 = vmatmul.mubr.bf16.gmra.mrb[0].mxu0 %v314
  %v652 = vpop.f32.mrb[0].mxu0
  %v653 = vadd.f32 %v116, %v652
  %v654 = vpop.f32.mrb[0].mxu0
  %v655 = vpop.f32.mrb[0].mxu0
  %v656 = vadd.f32 %v116, %v655
  %v657 = vpop.f32.mrb[0].mxu0
  %658 = vmatprep.mubr.bf16.mxu0 %v512
  %659 = vmatmul.mubr.bf16.gmra.mrb[0].mxu0 %v316
  %v660 = vpop.f32.mrb[0].mxu0
  %v661 = vadd.f32 %v116, %v660
  %v662 = vpop.f32.mrb[0].mxu0
  %v663 = vpop.f32.mrb[0].mxu0
  %v664 = vadd.f32 %v116, %v663
  %v665 = vpop.f32.mrb[0].mxu0
  %666 = vmatprep.mubr.bf16.mxu0 %v515
  %667 = vmatmul.mubr.bf16.gmra.mrb[0].mxu0 %v318
  %v668 = vpop.f32.mrb[0].mxu0
  %v669 = vadd.f32 %v116, %v668
  %v670 = vpop.f32.mrb[0].mxu0
  %v671 = vpop.f32.mrb[0].mxu0
  %v672 = vadd.f32 %v116, %v671
  %v673 = vpop.f32.mrb[0].mxu0
  %674 = vmatprep.mubr.bf16.mxu0 %v518
  %675 = vmatmul.mubr.bf16.gmra.mrb[0].mxu0 %v320
  %v676 = vpop.f32.mrb[0].mxu0
  %v677 = vadd.f32 %v116, %v676
  %v678 = vpop.f32.mrb[0].mxu0
  %v679 = vpop.f32.mrb[0].mxu0
  %v680 = vadd.f32 %v116, %v679
  %v681 = vpop.f32.mrb[0].mxu0
  %682 = vmatprep.mubr.bf16.mxu0 %v521
  %683 = vmatmul.mubr.bf16.gmra.mrb[0].mxu0 %v322
  %v684 = vpop.f32.mrb[0].mxu0
  %v685 = vadd.f32 %v116, %v684
  %v686 = vpop.f32.mrb[0].mxu0
  %v687 = vpop.f32.mrb[0].mxu0
  %v688 = vadd.f32 %v116, %v687
  %v689 = vpop.f32.mrb[0].mxu0
  %690 = vmatprep.mubr.bf16.mxu0 %v524
  %691 = vmatmul.mubr.bf16.gmra.mrb[0].mxu0 %v324
  %v692 = vpop.f32.mrb[0].mxu0
  %v693 = vadd.f32 %v116, %v692
  %v694 = vpop.f32.mrb[0].mxu0
  %v695 = vpop.f32.mrb[0].mxu0
  %v696 = vadd.f32 %v116, %v695
  %v697 = vpop.f32.mrb[0].mxu0
  %698 = vmatprep.mubr.bf16.mxu0 %v527
  %699 = vmatmul.mubr.bf16.gmra.mrb[0].mxu0 %v326
  %v700 = vpop.f32.mrb[0].mxu0
  %v701 = vadd.f32 %v116, %v700
  %v702 = vpop.f32.mrb[0].mxu0
  %v703 = vpop.f32.mrb[0].mxu0
  %v704 = vadd.f32 %v116, %v703
  %v705 = vpop.f32.mrb[0].mxu0
  %706 = vmatprep.mubr.bf16.mxu0 %v530
  %707 = vmatmul.mubr.bf16.gmra.mrb[0].mxu0 %v328
  %v708 = vpop.f32.mrb[0].mxu0
  %v709 = vadd.f32 %v116, %v708
  %v710 = vpop.f32.mrb[0].mxu0
  %v711 = vpop.f32.mrb[0].mxu0
  %v712 = vadd.f32 %v116, %v711
  %v713 = vpop.f32.mrb[0].mxu0
  %714 = vmatprep.mubr.bf16.mxu0 %v533
  %715 = vmatmul.mubr.bf16.gmra.mrb[0].mxu0 %v330
  %v716 = vpop.f32.mrb[0].mxu0
  %v717 = vadd.f32 %v116, %v716
  %v718 = vpop.f32.mrb[0].mxu0
  %v719 = vpop.f32.mrb[0].mxu0
  %v720 = vadd.f32 %v116, %v719
  %v721 = vpop.f32.mrb[0].mxu0
  %722 = vmatprep.mubr.bf16.mxu0 %v536
  %723 = vmatmul.mubr.bf16.gmra.mrb[0].mxu0 %v332
  %v724 = vpop.f32.mrb[0].mxu0
  %v725 = vadd.f32 %v116, %v724
  %v726 = vpop.f32.mrb[0].mxu0
  %v727 = vpop.f32.mrb[0].mxu0
  %v728 = vadd.f32 %v116, %v727
  %v729 = vpop.f32.mrb[0].mxu0
  %730 = vmatprep.mubr.bf16.mxu0 %v539
  %731 = vmatmul.mubr.bf16.gmra.mrb[0].mxu0 %v334
  %v732 = vpop.f32.mrb[0].mxu0
  %v733 = vadd.f32 %v116, %v732
  %v734 = vpop.f32.mrb[0].mxu0
  %v735 = vpop.f32.mrb[0].mxu0
  %v736 = vadd.f32 %v116, %v735
  %v737 = vpop.f32.mrb[0].mxu0
  %738 = vmatprep.mubr.bf16.mxu0 %v542
  %739 = vmatmul.mubr.bf16.gmra.mrb[0].mxu0 %v336
  %v740 = vpop.f32.mrb[0].mxu0
  %v741 = vadd.f32 %v116, %v740
  %v742 = vpop.f32.mrb[0].mxu0
  %v743 = vpop.f32.mrb[0].mxu0
  %v744 = vadd.f32 %v116, %v743
  %v745 = vpop.f32.mrb[0].mxu0
  %746 = vmatprep.mubr.bf16.mxu0 %v545
  %747 = vmatmul.mubr.bf16.gmra.mrb[0].mxu0 %v338
  %v748 = vpop.f32.mrb[0].mxu0
  %v749 = vadd.f32 %v116, %v748
  %v750 = vpop.f32.mrb[0].mxu0
  %v751 = vpop.f32.mrb[0].mxu0
  %v752 = vadd.f32 %v116, %v751
  %v753 = vpop.f32.mrb[0].mxu0
  %754 = vmatprep.mubr.bf16.mxu0 %v548
  %755 = vmatmul.mubr.bf16.gmra.mrb[0].mxu0 %v340
  %v756 = vpop.f32.mrb[0].mxu0
  %v757 = vadd.f32 %v116, %v756
  %v758 = vpop.f32.mrb[0].mxu0
  %v759 = vpop.f32.mrb[0].mxu0
  %v760 = vadd.f32 %v116, %v759
  %v761 = vpop.f32.mrb[0].mxu0
  %762 = vmatprep.mubr.bf16.mxu0 %v551
  %763 = vmatmul.mubr.bf16.gmra.mrb[0].mxu0 %v342
  %v764 = vpop.f32.mrb[0].mxu0
  %v765 = vadd.f32 %v116, %v764
  %v766 = vpop.f32.mrb[0].mxu0
  %v767 = vpop.f32.mrb[0].mxu0
  %v768 = vadd.f32 %v116, %v767
  %v769 = vpop.f32.mrb[0].mxu0
  %770 = vmatprep.mubr.bf16.mxu0 %v554
  %771 = vmatmul.mubr.bf16.gmra.mrb[0].mxu0 %v344
  %v772 = vpop.f32.mrb[0].mxu0
  %v773 = vadd.f32 %v116, %v772
  %v774 = vpop.f32.mrb[0].mxu0
  %v775 = vpop.f32.mrb[0].mxu0
  %v776 = vadd.f32 %v116, %v775
  %v777 = vpop.f32.mrb[0].mxu0
  %778 = vmatprep.mubr.bf16.mxu0 %v557
  %779 = vmatmul.mubr.bf16.gmra.mrb[0].mxu0 %v346
  %v780 = vpop.f32.mrb[0].mxu0
  %v781 = vadd.f32 %v116, %v780
  %v782 = vpop.f32.mrb[0].mxu0
  %v783 = vpop.f32.mrb[0].mxu0
  %v784 = vadd.f32 %v116, %v783
  %v785 = vpop.f32.mrb[0].mxu0
  %786 = vmatprep.mubr.bf16.mxu0 %v560
  %787 = vmatmul.mubr.bf16.gmra.mrb[0].mxu0 %v348
  %v788 = vpop.f32.mrb[0].mxu0
  %v789 = vadd.f32 %v116, %v788
  %v790 = vpop.f32.mrb[0].mxu0
  %v791 = vpop.f32.mrb[0].mxu0
  %v792 = vadd.f32 %v116, %v791
  %v793 = vpop.f32.mrb[0].mxu0
  %794 = vmatprep.mubr.bf16.mxu0 %v563
  %795 = vmatmul.mubr.bf16.gmra.mrb[0].mxu0 %v350
  %v796 = vpop.f32.mrb[0].mxu0
  %v797 = vadd.f32 %v116, %v796
  %v798 = vpop.f32.mrb[0].mxu0
  %v799 = vpop.f32.mrb[0].mxu0
  %v800 = vadd.f32 %v116, %v799
  %v801 = vpop.f32.mrb[0].mxu0
  %802 = vmatprep.mubr.bf16.mxu0 %v566
  %803 = vmatmul.mubr.bf16.gmra.mrb[0].mxu0 %v352
  %v804 = vpop.f32.mrb[0].mxu0
  %v805 = vadd.f32 %v116, %v804
  %v806 = vpop.f32.mrb[0].mxu0
  %v807 = vpop.f32.mrb[0].mxu0
  %v808 = vadd.f32 %v116, %v807
  %v809 = vpop.f32.mrb[0].mxu0
  %810 = vmatprep.mubr.bf16.mxu0 %v569
  %811 = vmatmul.mubr.bf16.gmra.mrb[0].mxu0 %v354
  %v812 = vpop.f32.mrb[0].mxu0
  %v813 = vadd.f32 %v116, %v812
  %v814 = vpop.f32.mrb[0].mxu0
  %v815 = vpop.f32.mrb[0].mxu0
  %v816 = vadd.f32 %v116, %v815
  %v817 = vpop.f32.mrb[0].mxu0
  %818 = vmatprep.mubr.bf16.mxu0 %v572
  %819 = vmatmul.mubr.bf16.gmra.mrb[0].mxu0 %v356
  %v820 = vpop.f32.mrb[0].mxu0
  %v821 = vadd.f32 %v116, %v820
  %v822 = vpop.f32.mrb[0].mxu0
  %v823 = vpop.f32.mrb[0].mxu0
  %v824 = vadd.f32 %v116, %v823
  %v825 = vpop.f32.mrb[0].mxu0
  %826 = vmatprep.mubr.bf16.mxu0 %v575
  %827 = vmatmul.mubr.bf16.gmra.mrb[0].mxu0 %v358
  %v828 = vpop.f32.mrb[0].mxu0
  %v829 = vadd.f32 %v116, %v828
  %v830 = vpop.f32.mrb[0].mxu0
  %v831 = vpop.f32.mrb[0].mxu0
  %v832 = vadd.f32 %v116, %v831
  %v833 = vpop.f32.mrb[0].mxu0
  %834 = vmatprep.mubr.bf16.mxu0 %v578
  %835 = vmatmul.mubr.bf16.gmra.mrb[0].mxu0 %v360
  %v836 = vpop.f32.mrb[0].mxu0
  %v837 = vadd.f32 %v116, %v836
  %v838 = vpop.f32.mrb[0].mxu0
  %v839 = vpop.f32.mrb[0].mxu0
  %v840 = vadd.f32 %v116, %v839
  %v841 = vpop.f32.mrb[0].mxu0
  %842 = vmatprep.mubr.bf16.mxu0 %v581
  %843 = vmatmul.mubr.bf16.gmra.mrb[0].mxu0 %v362
  %v844 = vpop.f32.mrb[0].mxu0
  %v845 = vadd.f32 %v116, %v844
  %v846 = vpop.f32.mrb[0].mxu0
  %v847 = vpop.f32.mrb[0].mxu0
  %v848 = vadd.f32 %v116, %v847
  %v849 = vpop.f32.mrb[0].mxu0
  %850 = vmatprep.mubr.bf16.mxu0 %v584
  %851 = vmatmul.mubr.bf16.gmra.mrb[0].mxu0 %v364
  %v852 = vpop.f32.mrb[0].mxu0
  %v853 = vadd.f32 %v116, %v852
  %v854 = vpop.f32.mrb[0].mxu0
  %v855 = vpop.f32.mrb[0].mxu0
  %v856 = vadd.f32 %v116, %v855
  %v857 = vpop.f32.mrb[0].mxu0
  %858 = vmatprep.mubr.bf16.mxu0 %v587
  %859 = vmatmul.mubr.bf16.gmra.mrb[0].mxu0 %v366
  %v860 = vpop.f32.mrb[0].mxu0
  %v861 = vadd.f32 %v116, %v860
  %v862 = vpop.f32.mrb[0].mxu0
  %v863 = vpop.f32.mrb[0].mxu0
  %v864 = vadd.f32 %v116, %v863
  %v865 = vpop.f32.mrb[0].mxu0
  %866 = vmatprep.mubr.bf16.mxu0 %v590
  %867 = vmatmul.mubr.bf16.gmra.mrb[0].mxu0 %v368
  %v868 = vpop.f32.mrb[0].mxu0
  %v869 = vadd.f32 %v116, %v868
  %v870 = vpop.f32.mrb[0].mxu0
  %v871 = vpop.f32.mrb[0].mxu0
  %v872 = vadd.f32 %v116, %v871
  %v873 = vpop.f32.mrb[0].mxu0
  %874 = vmatprep.mubr.bf16.mxu0 %v593
  %875 = vmatmul.mubr.bf16.gmra.mrb[0].mxu0 %v370
  %v876 = vpop.f32.mrb[0].mxu0
  %v877 = vadd.f32 %v116, %v876
  %v878 = vpop.f32.mrb[0].mxu0
  %v879 = vpop.f32.mrb[0].mxu0
  %v880 = vadd.f32 %v116, %v879
  %v881 = vpop.f32.mrb[0].mxu0
  %882 = vmatprep.mubr.bf16.mxu0 %v596
  %883 = vmatmul.mubr.bf16.gmra.mrb[0].mxu0 %v372
  %v884 = vpop.f32.mrb[0].mxu0
  %v885 = vadd.f32 %v116, %v884
  %v886 = vpop.f32.mrb[0].mxu0
  %v887 = vpop.f32.mrb[0].mxu0
  %v888 = vadd.f32 %v116, %v887
  %v889 = vpop.f32.mrb[0].mxu0
  %890 = vdwg.mxu0
  %v891 = vmax.f32 %v637, 0.0
  %v892 = vmax.f32 %v640, 0.0
  %v893 = vmax.f32 %v645, 0.0
  %v894 = vmax.f32 %v648, 0.0
  %v895 = vmax.f32 %v653, 0.0
  %v896 = vmax.f32 %v656, 0.0
  %v897 = vmax.f32 %v661, 0.0
  %v898 = vmax.f32 %v664, 0.0
  %v899 = vmax.f32 %v669, 0.0
  %v900 = vmax.f32 %v672, 0.0
  %v901 = vmax.f32 %v677, 0.0
  %v902 = vmax.f32 %v680, 0.0
  %v903 = vmax.f32 %v685, 0.0
  %v904 = vmax.f32 %v688, 0.0
  %v905 = vmax.f32 %v693, 0.0
  %v906 = vmax.f32 %v696, 0.0
  %v907 = vmax.f32 %v701, 0.0
  %v908 = vmax.f32 %v704, 0.0
  %v909 = vmax.f32 %v709, 0.0
  %v910 = vmax.f32 %v712, 0.0
  %v911 = vmax.f32 %v717, 0.0
  %v912 = vmax.f32 %v720, 0.0
  %v913 = vmax.f32 %v725, 0.0
  %v914 = vmax.f32 %v728, 0.0
  %v915 = vmax.f32 %v733, 0.0
  %v916 = vmax.f32 %v736, 0.0
  %v917 = vmax.f32 %v741, 0.0
  %v918 = vmax.f32 %v744, 0.0
  %v919 = vmax.f32 %v749, 0.0
  %v920 = vmax.f32 %v752, 0.0
  %v921 = vmax.f32 %v757, 0.0
  %v922 = vmax.f32 %v760, 0.0
  %v923 = vmax.f32 %v765, 0.0
  %v924 = vmax.f32 %v768, 0.0
  %v925 = vmax.f32 %v773, 0.0
  %v926 = vmax.f32 %v776, 0.0
  %v927 = vmax.f32 %v781, 0.0
  %v928 = vmax.f32 %v784, 0.0
  %v929 = vmax.f32 %v789, 0.0
  %v930 = vmax.f32 %v792, 0.0
  %v931 = vmax.f32 %v797, 0.0
  %v932 = vmax.f32 %v800, 0.0
  %v933 = vmax.f32 %v805, 0.0
  %v934 = vmax.f32 %v808, 0.0
  %v935 = vmax.f32 %v813, 0.0
  %v936 = vmax.f32 %v816, 0.0
  %v937 = vmax.f32 %v821, 0.0
  %v938 = vmax.f32 %v824, 0.0
  %v939 = vmax.f32 %v829, 0.0
  %v940 = vmax.f32 %v832, 0.0
  %v941 = vmax.f32 %v837, 0.0
  %v942 = vmax.f32 %v840, 0.0
  %v943 = vmax.f32 %v845, 0.0
  %v944 = vmax.f32 %v848, 0.0
  %v945 = vmax.f32 %v853, 0.0
  %v946 = vmax.f32 %v856, 0.0
  %v947 = vmax.f32 %v861, 0.0
  %v948 = vmax.f32 %v864, 0.0
  %v949 = vmax.f32 %v869, 0.0
  %v950 = vmax.f32 %v872, 0.0
  %v951 = vmax.f32 %v877, 0.0
  %v952 = vmax.f32 %v880, 0.0
  %v953 = vmax.f32 %v885, 0.0
  %v954 = vmax.f32 %v888, 0.0
  %v955 = vpack.c.bf16 %v892, %v891
  %v956 = vpack.c.bf16 %v894, %v893
  %v957 = vpack.c.bf16 %v896, %v895
  %v958 = vpack.c.bf16 %v898, %v897
  %v959 = vpack.c.bf16 %v900, %v899
  %v960 = vpack.c.bf16 %v902, %v901
  %v961 = vpack.c.bf16 %v904, %v903
  %v962 = vpack.c.bf16 %v906, %v905
  %v963 = vpack.c.bf16 %v908, %v907
  %v964 = vpack.c.bf16 %v910, %v909
  %v965 = vpack.c.bf16 %v912, %v911
  %v966 = vpack.c.bf16 %v914, %v913
  %v967 = vpack.c.bf16 %v916, %v915
  %v968 = vpack.c.bf16 %v918, %v917
  %v969 = vpack.c.bf16 %v920, %v919
  %v970 = vpack.c.bf16 %v922, %v921
  %v971 = vpack.c.bf16 %v924, %v923
  %v972 = vpack.c.bf16 %v926, %v925
  %v973 = vpack.c.bf16 %v928, %v927
  %v974 = vpack.c.bf16 %v930, %v929
  %v975 = vpack.c.bf16 %v932, %v931
  %v976 = vpack.c.bf16 %v934, %v933
  %v977 = vpack.c.bf16 %v936, %v935
  %v978 = vpack.c.bf16 %v938, %v937
  %v979 = vpack.c.bf16 %v940, %v939
  %v980 = vpack.c.bf16 %v942, %v941
  %v981 = vpack.c.bf16 %v944, %v943
  %v982 = vpack.c.bf16 %v946, %v945
  %v983 = vpack.c.bf16 %v948, %v947
  %v984 = vpack.c.bf16 %v950, %v949
  %v985 = vpack.c.bf16 %v952, %v951
  %v986 = vpack.c.bf16 %v954, %v953
  %v1019 = vunpack.c.l.b16 %v955
  %v1020 = vunpack.c.h.b16 %v955
  %v1021 = vunpack.c.l.b16 %v956
  %v1022 = vunpack.c.h.b16 %v956
  %v1023 = vunpack.c.l.b16 %v957
  %v1024 = vunpack.c.h.b16 %v957
  %v1025 = vunpack.c.l.b16 %v958
  %v1026 = vunpack.c.h.b16 %v958
  %v1027 = vunpack.c.l.b16 %v959
  %v1028 = vunpack.c.h.b16 %v959
  %v1029 = vunpack.c.l.b16 %v960
  %v1030 = vunpack.c.h.b16 %v960
  %v1031 = vunpack.c.l.b16 %v961
  %v1032 = vunpack.c.h.b16 %v961
  %v1033 = vunpack.c.l.b16 %v962
  %v1034 = vunpack.c.h.b16 %v962
  %v1035 = vunpack.c.l.b16 %v963
  %v1036 = vunpack.c.h.b16 %v963
  %v1037 = vunpack.c.l.b16 %v964
  %v1038 = vunpack.c.h.b16 %v964
  %v1039 = vunpack.c.l.b16 %v965
  %v1040 = vunpack.c.h.b16 %v965
  %v1041 = vunpack.c.l.b16 %v966
  %v1042 = vunpack.c.h.b16 %v966
  %v1043 = vunpack.c.l.b16 %v967
  %v1044 = vunpack.c.h.b16 %v967
  %v1045 = vunpack.c.l.b16 %v968
  %v1046 = vunpack.c.h.b16 %v968
  %v1047 = vunpack.c.l.b16 %v969
  %v1048 = vunpack.c.h.b16 %v969
  %v1049 = vunpack.c.l.b16 %v970
  %v1050 = vunpack.c.h.b16 %v970
  %v1051 = vunpack.c.l.b16 %v971
  %v1052 = vunpack.c.h.b16 %v971
  %v1053 = vunpack.c.l.b16 %v972
  %v1054 = vunpack.c.h.b16 %v972
  %v1055 = vunpack.c.l.b16 %v973
  %v1056 = vunpack.c.h.b16 %v973
  %v1057 = vunpack.c.l.b16 %v974
  %v1058 = vunpack.c.h.b16 %v974
  %v1059 = vunpack.c.l.b16 %v975
  %v1060 = vunpack.c.h.b16 %v975
  %v1061 = vunpack.c.l.b16 %v976
  %v1062 = vunpack.c.h.b16 %v976
  %v1063 = vunpack.c.l.b16 %v977
  %v1064 = vunpack.c.h.b16 %v977
  %v1065 = vunpack.c.l.b16 %v978
  %v1066 = vunpack.c.h.b16 %v978
  %v1067 = vunpack.c.l.b16 %v979
  %v1068 = vunpack.c.h.b16 %v979
  %v1069 = vunpack.c.l.b16 %v980
  %v1070 = vunpack.c.h.b16 %v980
  %v1071 = vunpack.c.l.b16 %v981
  %v1072 = vunpack.c.h.b16 %v981
  %v1073 = vunpack.c.l.b16 %v982
  %v1074 = vunpack.c.h.b16 %v982
  %v1075 = vunpack.c.l.b16 %v983
  %v1076 = vunpack.c.h.b16 %v983
  %v1077 = vunpack.c.l.b16 %v984
  %v1078 = vunpack.c.h.b16 %v984
  %v1079 = vunpack.c.l.b16 %v985
  %v1080 = vunpack.c.h.b16 %v985
  %v1081 = vunpack.c.l.b16 %v986
  %v1082 = vunpack.c.h.b16 %v986
  %v1083 = vpack.c.b16 %v1019, %v1019
  %v1084 = vpack.c.b16 %v1020, %v1020
  %v1085 = vpack.c.b16 %v1021, %v1021
  %v1086 = vpack.c.b16 %v1022, %v1022
  %v1087 = vpack.c.b16 %v1023, %v1023
  %v1088 = vpack.c.b16 %v1024, %v1024
  %v1089 = vpack.c.b16 %v1025, %v1025
  %v1090 = vpack.c.b16 %v1026, %v1026
  %v1091 = vpack.c.b16 %v1027, %v1027
  %v1092 = vpack.c.b16 %v1028, %v1028
  %v1093 = vpack.c.b16 %v1029, %v1029
  %v1094 = vpack.c.b16 %v1030, %v1030
  %v1095 = vpack.c.b16 %v1031, %v1031
  %v1096 = vpack.c.b16 %v1032, %v1032
  %v1097 = vpack.c.b16 %v1033, %v1033
  %v1098 = vpack.c.b16 %v1034, %v1034
  %v1099 = vpack.c.b16 %v1035, %v1035
  %v1100 = vpack.c.b16 %v1036, %v1036
  %v1101 = vpack.c.b16 %v1037, %v1037
  %v1102 = vpack.c.b16 %v1038, %v1038
  %v1103 = vpack.c.b16 %v1039, %v1039
  %v1104 = vpack.c.b16 %v1040, %v1040
  %v1105 = vpack.c.b16 %v1041, %v1041
  %v1106 = vpack.c.b16 %v1042, %v1042
  %v1107 = vpack.c.b16 %v1043, %v1043
  %v1108 = vpack.c.b16 %v1044, %v1044
  %v1109 = vpack.c.b16 %v1045, %v1045
  %v1110 = vpack.c.b16 %v1046, %v1046
  %v1111 = vpack.c.b16 %v1047, %v1047
  %v1112 = vpack.c.b16 %v1048, %v1048
  %v1113 = vpack.c.b16 %v1049, %v1049
  %v1114 = vpack.c.b16 %v1050, %v1050
  %v1115 = vpack.c.b16 %v1051, %v1051
  %v1116 = vpack.c.b16 %v1052, %v1052
  %v1117 = vpack.c.b16 %v1053, %v1053
  %v1118 = vpack.c.b16 %v1054, %v1054
  %v1119 = vpack.c.b16 %v1055, %v1055
  %v1120 = vpack.c.b16 %v1056, %v1056
  %v1121 = vpack.c.b16 %v1057, %v1057
  %v1122 = vpack.c.b16 %v1058, %v1058
  %v1123 = vpack.c.b16 %v1059, %v1059
  %v1124 = vpack.c.b16 %v1060, %v1060
  %v1125 = vpack.c.b16 %v1061, %v1061
  %v1126 = vpack.c.b16 %v1062, %v1062
  %v1127 = vpack.c.b16 %v1063, %v1063
  %v1128 = vpack.c.b16 %v1064, %v1064
  %v1129 = vpack.c.b16 %v1065, %v1065
  %v1130 = vpack.c.b16 %v1066, %v1066
  %v1131 = vpack.c.b16 %v1067, %v1067
  %v1132 = vpack.c.b16 %v1068, %v1068
  %v1133 = vpack.c.b16 %v1069, %v1069
  %v1134 = vpack.c.b16 %v1070, %v1070
  %v1135 = vpack.c.b16 %v1071, %v1071
  %v1136 = vpack.c.b16 %v1072, %v1072
  %v1137 = vpack.c.b16 %v1073, %v1073
  %v1138 = vpack.c.b16 %v1074, %v1074
  %v1139 = vpack.c.b16 %v1075, %v1075
  %v1140 = vpack.c.b16 %v1076, %v1076
  %v1141 = vpack.c.b16 %v1077, %v1077
  %v1142 = vpack.c.b16 %v1078, %v1078
  %v1143 = vpack.c.b16 %v1079, %v1079
  %v1144 = vpack.c.b16 %v1080, %v1080
  %v1145 = vpack.c.b16 %v1081, %v1081
  %v1146 = vpack.c.b16 %v1082, %v1082
  %1211 = vst [vmem:[%s3] sm:$0xf] %v1083
  %1212 = vst [vmem:[%s3 + $0x4] sm:$0xf] %v1084
  %1213 = vst [vmem:[%s3 + $0x8] sm:$0xf] %v1085
  %1214 = vst [vmem:[%s3 + $0xc] sm:$0xf] %v1086
  %1215 = vst [vmem:[%s3 + $0x10] sm:$0xf] %v1087
  %1216 = vst [vmem:[%s3 + $0x14] sm:$0xf] %v1088
  %1217 = vst [vmem:[%s3 + $0x18] sm:$0xf] %v1089
  %1218 = vst [vmem:[%s3 + $0x1c] sm:$0xf] %v1090
  %1219 = vst [vmem:[%s3 + $0x20] sm:$0xf] %v1091
  %1220 = vst [vmem:[%s3 + $0x24] sm:$0xf] %v1092
  %1221 = vst [vmem:[%s3 + $0x28] sm:$0xf] %v1093
  %1222 = vst [vmem:[%s3 + $0x2c] sm:$0xf] %v1094
  %1223 = vst [vmem:[%s3 + $0x30] sm:$0xf] %v1095
  %1224 = vst [vmem:[%s3 + $0x34] sm:$0xf] %v1096
  %1225 = vst [vmem:[%s3 + $0x38] sm:$0xf] %v1097
  %1226 = vst [vmem:[%s3 + $0x3c] sm:$0xf] %v1098
  %1227 = vst [vmem:[%s3 + $0x40] sm:$0xf] %v1099
  %1228 = vst [vmem:[%s3 + $0x44] sm:$0xf] %v1100
  %1229 = vst [vmem:[%s3 + $0x48] sm:$0xf] %v1101
  %1230 = vst [vmem:[%s3 + $0x4c] sm:$0xf] %v1102
  %1231 = vst [vmem:[%s3 + $0x50] sm:$0xf] %v1103
  %1232 = vst [vmem:[%s3 + $0x54] sm:$0xf] %v1104
  %1233 = vst [vmem:[%s3 + $0x58] sm:$0xf] %v1105
  %1234 = vst [vmem:[%s3 + $0x5c] sm:$0xf] %v1106
  %1235 = vst [vmem:[%s3 + $0x60] sm:$0xf] %v1107
  %1236 = vst [vmem:[%s3 + $0x64] sm:$0xf] %v1108
  %1237 = vst [vmem:[%s3 + $0x68] sm:$0xf] %v1109
  %1238 = vst [vmem:[%s3 + $0x6c] sm:$0xf] %v1110
  %1239 = vst [vmem:[%s3 + $0x70] sm:$0xf] %v1111
  %1240 = vst [vmem:[%s3 + $0x74] sm:$0xf] %v1112
  %1241 = vst [vmem:[%s3 + $0x78] sm:$0xf] %v1113
  %1242 = vst [vmem:[%s3 + $0x7c] sm:$0xf] %v1114
  %1243 = vst [vmem:[%s3 + $0x80] sm:$0xf] %v1115
  %1244 = vst [vmem:[%s3 + $0x84] sm:$0xf] %v1116
  %1245 = vst [vmem:[%s3 + $0x88] sm:$0xf] %v1117
  %1246 = vst [vmem:[%s3 + $0x8c] sm:$0xf] %v1118
  %1247 = vst [vmem:[%s3 + $0x90] sm:$0xf] %v1119
  %1248 = vst [vmem:[%s3 + $0x94] sm:$0xf] %v1120
  %1249 = vst [vmem:[%s3 + $0x98] sm:$0xf] %v1121
  %1250 = vst [vmem:[%s3 + $0x9c] sm:$0xf] %v1122
  %1251 = vst [vmem:[%s3 + $0xa0] sm:$0xf] %v1123
  %1252 = vst [vmem:[%s3 + $0xa4] sm:$0xf] %v1124
  %1253 = vst [vmem:[%s3 + $0xa8] sm:$0xf] %v1125
  %1254 = vst [vmem:[%s3 + $0xac] sm:$0xf] %v1126
  %1255 = vst [vmem:[%s3 + $0xb0] sm:$0xf] %v1127
  %1256 = vst [vmem:[%s3 + $0xb4] sm:$0xf] %v1128
  %1257 = vst [vmem:[%s3 + $0xb8] sm:$0xf] %v1129
  %1258 = vst [vmem:[%s3 + $0xbc] sm:$0xf] %v1130
  %1259 = vst [vmem:[%s3 + $0xc0] sm:$0xf] %v1131
  %1260 = vst [vmem:[%s3 + $0xc4] sm:$0xf] %v1132
  %1261 = vst [vmem:[%s3 + $0xc8] sm:$0xf] %v1133
  %1262 = vst [vmem:[%s3 + $0xcc] sm:$0xf] %v1134
  %1263 = vst [vmem:[%s3 + $0xd0] sm:$0xf] %v1135
  %1264 = vst [vmem:[%s3 + $0xd4] sm:$0xf] %v1136
  %1265 = vst [vmem:[%s3 + $0xd8] sm:$0xf] %v1137
  %1266 = vst [vmem:[%s3 + $0xdc] sm:$0xf] %v1138
  %1267 = vst [vmem:[%s3 + $0xe0] sm:$0xf] %v1139
  %1268 = vst [vmem:[%s3 + $0xe4] sm:$0xf] %v1140
  %1269 = vst [vmem:[%s3 + $0xe8] sm:$0xf] %v1141
  %1270 = vst [vmem:[%s3 + $0xec] sm:$0xf] %v1142
  %1271 = vst [vmem:[%s3 + $0xf0] sm:$0xf] %v1143
  %1272 = vst [vmem:[%s3 + $0xf4] sm:$0xf] %v1144
  %1273 = vst [vmem:[%s3 + $0xf8] sm:$0xf] %v1145
  %1274 = vst [vmem:[%s3 + $0xfc] sm:$0xf] %v1146
  // Predicated region
  $region14: #{net_forward.7} parent=0 // pred_check
    _
  $region15: #{net_forward.7} parent=0 // pred_check_branch
    %1276 = sbr.rel (0) target = $region17
  $region16: #{net_forward.7} parent=0 // pred_region
    _
  $region17: #{net_forward.7} parent=0 // pred_fallthru
    _
  // Predicated region
  $region18: #{net_forward.7} parent=0 // pred_check
    _
  $region19: #{net_forward.7} parent=0 // pred_check_branch
    %1278 = sbr.rel (0) target = $region21
  $region20: #{net_forward.7} parent=0 // pred_region
    _
  $region21: #{net_forward.7} parent=0 // pred_fallthru
    _

// kernel: net_forward.8
$region0: #{net_forward.8}
  #allocation0 [shape = 'u32[]', space=smem, size = 0x4, offset = 0x4, fixed_abs, tag = 'smem constant byte address 0x4 - core index']
  #allocation1 [shape = 'u32[144,128]{1,0:T(1,128)}', space=vmem, size = 0x12000, scoped, tag = 'internal scratch']
  %s0 = inlined_call_operand.vmem [shape: bf16[288,500], index: 0, kind: input, shape index: {}]
  %s1 = inlined_call_operand.vmem [shape: bf16[500,128], index: 1, kind: input, shape index: {}]
  %s2 = inlined_call_operand.vmem [shape: f32[1,128], index: 2, kind: input, shape index: {}]
  %s3 = inlined_call_operand.vmem [shape: bf16[288,128], index: 3, kind: output, shape index: {}]
  %s4 = sld [smem:[#allocation0]]
  $region22: #{net_forward.8} parent=0
    _
  %s6 = ssub.s32 1, %s4
  %s7 = scalar_select 0, %s6, %s4
  // Predicated region
  $region2: #{net_forward.8} parent=0 // pred_check
    _
  $region3: #{net_forward.8} parent=0 // pred_check_branch
    %9 = sbr.rel (0) target = $region5
  $region4: #{net_forward.8} parent=0 // pred_region
    _
  $region5: #{net_forward.8} parent=0 // pred_fallthru
    _
  // Predicated region
  $region6: #{net_forward.8} parent=0 // pred_check
    _
  $region7: #{net_forward.8} parent=0 // pred_check_branch
    %11 = sbr.rel (0) target = $region9
  $region8: #{net_forward.8} parent=0 // pred_region
    _
  $region9: #{net_forward.8} parent=0 // pred_fallthru
    _
  // Predicated region
  $region10: #{net_forward.8} parent=0 // pred_check
    _
  $region11: #{net_forward.8} parent=0 // pred_check_branch
    %13 = sbr.rel (0) target = $region13
  $region12: #{net_forward.8} parent=0 // pred_region
    _
  $region13: #{net_forward.8} parent=0 // pred_fallthru
    _
  %v15 = vld [vmem:[%s0] sm:$0xff]
  %v16 = vld [vmem:[%s0 + $0x8] sm:$0xff]
  %v17 = vld [vmem:[%s0 + $0x10] sm:$0xff]
  %v18 = vld [vmem:[%s0 + $0x18] sm:$0xff]
  %v19 = vld [vmem:[%s0 + $0x20] sm:$0xff]
  %v20 = vld [vmem:[%s0 + $0x28] sm:$0xff]
  %v21 = vld [vmem:[%s0 + $0x30] sm:$0xff]
  %v22 = vld [vmem:[%s0 + $0x38] sm:$0xff]
  %v23 = vld [vmem:[%s0 + $0x40] sm:$0xff]
  %v24 = vld [vmem:[%s0 + $0x48] sm:$0xff]
  %v25 = vld [vmem:[%s0 + $0x50] sm:$0xff]
  %v26 = vld [vmem:[%s0 + $0x58] sm:$0xff]
  %v27 = vld [vmem:[%s0 + $0x60] sm:$0xff]
  %v28 = vld [vmem:[%s0 + $0x68] sm:$0xff]
  %v29 = vld [vmem:[%s0 + $0x70] sm:$0xff]
  %v30 = vld [vmem:[%s0 + $0x78] sm:$0xff]
  %v31 = vld [vmem:[%s0 + $0x80] sm:$0xff]
  %v32 = vld [vmem:[%s0 + $0x88] sm:$0xff]
  %v33 = vld [vmem:[%s0 + $0x90] sm:$0xff]
  %v34 = vld [vmem:[%s0 + $0x98] sm:$0xff]
  %v35 = vld [vmem:[%s0 + $0xa0] sm:$0xff]
  %v36 = vld [vmem:[%s0 + $0xa8] sm:$0xff]
  %v37 = vld [vmem:[%s0 + $0xb0] sm:$0xff]
  %v38 = vld [vmem:[%s0 + $0xb8] sm:$0xff]
  %v39 = vld [vmem:[%s0 + $0xc0] sm:$0xff]
  %v40 = vld [vmem:[%s0 + $0xc8] sm:$0xff]
  %v41 = vld [vmem:[%s0 + $0xd0] sm:$0xff]
  %v42 = vld [vmem:[%s0 + $0xd8] sm:$0xff]
  %v43 = vld [vmem:[%s0 + $0xe0] sm:$0xff]
  %v44 = vld [vmem:[%s0 + $0xe8] sm:$0xff]
  %v45 = vld [vmem:[%s0 + $0xf0] sm:$0xff]
  %v46 = vld [vmem:[%s0 + $0xf8] sm:$0xff]
  %v47 = vld [vmem:[%s0 + $0x100] sm:$0xff]
  %v48 = vld [vmem:[%s0 + $0x108] sm:$0xff]
  %v49 = vld [vmem:[%s0 + $0x110] sm:$0xff]
  %v50 = vld [vmem:[%s0 + $0x118] sm:$0xff]
  %v51 = vld [vmem:[%s0 + $0x120] sm:$0xff]
  %v52 = vld [vmem:[%s0 + $0x128] sm:$0xff]
  %v53 = vld [vmem:[%s0 + $0x130] sm:$0xff]
  %v54 = vld [vmem:[%s0 + $0x138] sm:$0xff]
  %v55 = vld [vmem:[%s0 + $0x140] sm:$0xff]
  %v56 = vld [vmem:[%s0 + $0x148] sm:$0xff]
  %v57 = vld [vmem:[%s0 + $0x150] sm:$0xff]
  %v58 = vld [vmem:[%s0 + $0x158] sm:$0xff]
  %v59 = vld [vmem:[%s0 + $0x160] sm:$0xff]
  %v60 = vld [vmem:[%s0 + $0x168] sm:$0xff]
  %v61 = vld [vmem:[%s0 + $0x170] sm:$0xff]
  %v62 = vld [vmem:[%s0 + $0x178] sm:$0xff]
  %v63 = vld [vmem:[%s0 + $0x180] sm:$0xff]
  %v64 = vld [vmem:[%s0 + $0x188] sm:$0xff]
  %v65 = vld [vmem:[%s0 + $0x190] sm:$0xff]
  %v66 = vld [vmem:[%s0 + $0x198] sm:$0xff]
  %v67 = vld [vmem:[%s0 + $0x1a0] sm:$0xff]
  %v68 = vld [vmem:[%s0 + $0x1a8] sm:$0xff]
  %v69 = vld [vmem:[%s0 + $0x1b0] sm:$0xff]
  %v70 = vld [vmem:[%s0 + $0x1b8] sm:$0xff]
  %v71 = vld [vmem:[%s0 + $0x1c0] sm:$0xff]
  %v72 = vld [vmem:[%s0 + $0x1c8] sm:$0xff]
  %v73 = vld [vmem:[%s0 + $0x1d0] sm:$0xff]
  %v74 = vld [vmem:[%s0 + $0x1d8] sm:$0xff]
  %v75 = vld [vmem:[%s0 + $0x1e0] sm:$0xff]
  %v76 = vld [vmem:[%s0 + $0x1e8] sm:$0xff]
  %v77 = vld [vmem:[%s0 + $0x1f0] sm:$0xff]
  %v78 = vld [vmem:[%s0 + $0x1f8] sm:$0xff]
  %v79 = vld [vmem:[%s0 + $0x200] sm:$0xff]
  %v80 = vld [vmem:[%s0 + $0x208] sm:$0xff]
  %v81 = vld [vmem:[%s0 + $0x210] sm:$0xff]
  %v82 = vld [vmem:[%s0 + $0x218] sm:$0xff]
  %v83 = vld [vmem:[%s0 + $0x220] sm:$0xff]
  %v84 = vld [vmem:[%s0 + $0x228] sm:$0xff]
  %v85 = vld [vmem:[%s0 + $0x230] sm:$0xff]
  %v86 = vld [vmem:[%s0 + $0x238] sm:$0xff]
  %v87 = vld [vmem:[%s1] sm:$0xf]
  %v88 = vld [vmem:[%s1 + $0x4] sm:$0xf]
  %v89 = vld [vmem:[%s1 + $0x8] sm:$0xf]
  %v90 = vld [vmem:[%s1 + $0xc] sm:$0xf]
  %v91 = vld [vmem:[%s1 + $0x10] sm:$0xf]
  %v92 = vld [vmem:[%s1 + $0x14] sm:$0xf]
  %v93 = vld [vmem:[%s1 + $0x18] sm:$0xf]
  %v94 = vld [vmem:[%s1 + $0x1c] sm:$0xf]
  %v95 = vld [vmem:[%s1 + $0x20] sm:$0xf]
  %v96 = vld [vmem:[%s1 + $0x24] sm:$0xf]
  %v97 = vld [vmem:[%s1 + $0x28] sm:$0xf]
  %v98 = vld [vmem:[%s1 + $0x2c] sm:$0xf]
  %v99 = vld [vmem:[%s1 + $0x30] sm:$0xf]
  %v100 = vld [vmem:[%s1 + $0x34] sm:$0xf]
  %v101 = vld [vmem:[%s1 + $0x38] sm:$0xf]
  %v102 = vld [vmem:[%s1 + $0x3c] sm:$0xf]
  %v103 = vld [vmem:[%s1 + $0x40] sm:$0xf]
  %v104 = vld [vmem:[%s1 + $0x44] sm:$0xf]
  %v105 = vld [vmem:[%s1 + $0x48] sm:$0xf]
  %v106 = vld [vmem:[%s1 + $0x4c] sm:$0xf]
  %v107 = vld [vmem:[%s1 + $0x50] sm:$0xf]
  %v108 = vld [vmem:[%s1 + $0x54] sm:$0xf]
  %v109 = vld [vmem:[%s1 + $0x58] sm:$0xf]
  %v110 = vld [vmem:[%s1 + $0x5c] sm:$0xf]
  %v111 = vld [vmem:[%s1 + $0x60] sm:$0xf]
  %v112 = vld [vmem:[%s1 + $0x64] sm:$0xf]
  %v113 = vld [vmem:[%s1 + $0x68] sm:$0xf]
  %v114 = vld [vmem:[%s1 + $0x6c] sm:$0xf]
  %v115 = vld [vmem:[%s1 + $0x70] sm:$0xf]
  %v116 = vld [vmem:[%s1 + $0x74] sm:$0xf]
  %v117 = vld [vmem:[%s1 + $0x78] sm:$0xf]
  %v118 = vld [vmem:[%s1 + $0x7c] sm:$0xf]
  %v119 = vld [vmem:[%s1 + $0x80] sm:$0xf]
  %v120 = vld [vmem:[%s1 + $0x84] sm:$0xf]
  %v121 = vld [vmem:[%s1 + $0x88] sm:$0xf]
  %v122 = vld [vmem:[%s1 + $0x8c] sm:$0xf]
  %v123 = vld [vmem:[%s1 + $0x90] sm:$0xf]
  %v124 = vld [vmem:[%s1 + $0x94] sm:$0xf]
  %v125 = vld [vmem:[%s1 + $0x98] sm:$0xf]
  %v126 = vld [vmem:[%s1 + $0x9c] sm:$0xf]
  %v127 = vld [vmem:[%s1 + $0xa0] sm:$0xf]
  %v128 = vld [vmem:[%s1 + $0xa4] sm:$0xf]
  %v129 = vld [vmem:[%s1 + $0xa8] sm:$0xf]
  %v130 = vld [vmem:[%s1 + $0xac] sm:$0xf]
  %v131 = vld [vmem:[%s1 + $0xb0] sm:$0xf]
  %v132 = vld [vmem:[%s1 + $0xb4] sm:$0xf]
  %v133 = vld [vmem:[%s1 + $0xb8] sm:$0xf]
  %v134 = vld [vmem:[%s1 + $0xbc] sm:$0xf]
  %v135 = vld [vmem:[%s1 + $0xc0] sm:$0xf]
  %v136 = vld [vmem:[%s1 + $0xc4] sm:$0xf]
  %v137 = vld [vmem:[%s1 + $0xc8] sm:$0xf]
  %v138 = vld [vmem:[%s1 + $0xcc] sm:$0xf]
  %v139 = vld [vmem:[%s1 + $0xd0] sm:$0xf]
  %v140 = vld [vmem:[%s1 + $0xd4] sm:$0xf]
  %v141 = vld [vmem:[%s1 + $0xd8] sm:$0xf]
  %v142 = vld [vmem:[%s1 + $0xdc] sm:$0xf]
  %v143 = vld [vmem:[%s1 + $0xe0] sm:$0xf]
  %v144 = vld [vmem:[%s1 + $0xe4] sm:$0xf]
  %v145 = vld [vmem:[%s1 + $0xe8] sm:$0xf]
  %v146 = vld [vmem:[%s1 + $0xec] sm:$0xf]
  %v147 = vld [vmem:[%s1 + $0xf0] sm:$0xf]
  %v148 = vld [vmem:[%s1 + $0xf4] sm:$0xf]
  %v149 = vld [vmem:[%s1 + $0xf8] sm:$0x3]
  %v150 = vld [vmem:[%s2] sm:$0x1]
  %v152 = vlaneseq
  %v153 = vshrl.u32 %v152, 7
  %v154 = vsub.s32 0, %v153
  %v155 = vrot.slane %v150, %v154
  %v229 = vunpack.c.l.b16 %v15
  %v230 = vunpack.c.h.b16 %v15
  %v231 = vunpack.c.l.b16 %v16
  %v232 = vunpack.c.h.b16 %v16
  %v233 = vunpack.c.l.b16 %v17
  %v234 = vunpack.c.h.b16 %v17
  %v235 = vunpack.c.l.b16 %v18
  %v236 = vunpack.c.h.b16 %v18
  %v237 = vunpack.c.l.b16 %v19
  %v238 = vunpack.c.h.b16 %v19
  %v239 = vunpack.c.l.b16 %v20
  %v240 = vunpack.c.h.b16 %v20
  %v241 = vunpack.c.l.b16 %v21
  %v242 = vunpack.c.h.b16 %v21
  %v243 = vunpack.c.l.b16 %v22
  %v244 = vunpack.c.h.b16 %v22
  %v245 = vunpack.c.l.b16 %v23
  %v246 = vunpack.c.h.b16 %v23
  %v247 = vunpack.c.l.b16 %v24
  %v248 = vunpack.c.h.b16 %v24
  %v249 = vunpack.c.l.b16 %v25
  %v250 = vunpack.c.h.b16 %v25
  %v251 = vunpack.c.l.b16 %v26
  %v252 = vunpack.c.h.b16 %v26
  %v253 = vunpack.c.l.b16 %v27
  %v254 = vunpack.c.h.b16 %v27
  %v255 = vunpack.c.l.b16 %v28
  %v256 = vunpack.c.h.b16 %v28
  %v257 = vunpack.c.l.b16 %v29
  %v258 = vunpack.c.h.b16 %v29
  %v259 = vunpack.c.l.b16 %v30
  %v260 = vunpack.c.h.b16 %v30
  %v261 = vunpack.c.l.b16 %v31
  %v262 = vunpack.c.h.b16 %v31
  %v263 = vunpack.c.l.b16 %v32
  %v264 = vunpack.c.h.b16 %v32
  %v265 = vunpack.c.l.b16 %v33
  %v266 = vunpack.c.h.b16 %v33
  %v267 = vunpack.c.l.b16 %v34
  %v268 = vunpack.c.h.b16 %v34
  %v269 = vunpack.c.l.b16 %v35
  %v270 = vunpack.c.h.b16 %v35
  %v271 = vunpack.c.l.b16 %v36
  %v272 = vunpack.c.h.b16 %v36
  %v273 = vunpack.c.l.b16 %v37
  %v274 = vunpack.c.h.b16 %v37
  %v275 = vunpack.c.l.b16 %v38
  %v276 = vunpack.c.h.b16 %v38
  %v277 = vunpack.c.l.b16 %v39
  %v278 = vunpack.c.h.b16 %v39
  %v279 = vunpack.c.l.b16 %v40
  %v280 = vunpack.c.h.b16 %v40
  %v281 = vunpack.c.l.b16 %v41
  %v282 = vunpack.c.h.b16 %v41
  %v283 = vunpack.c.l.b16 %v42
  %v284 = vunpack.c.h.b16 %v42
  %v285 = vunpack.c.l.b16 %v43
  %v286 = vunpack.c.h.b16 %v43
  %v287 = vunpack.c.l.b16 %v44
  %v288 = vunpack.c.h.b16 %v44
  %v289 = vunpack.c.l.b16 %v45
  %v290 = vunpack.c.h.b16 %v45
  %v291 = vunpack.c.l.b16 %v46
  %v292 = vunpack.c.h.b16 %v46
  %v293 = vunpack.c.l.b16 %v47
  %v294 = vunpack.c.h.b16 %v47
  %v295 = vunpack.c.l.b16 %v48
  %v296 = vunpack.c.h.b16 %v48
  %v297 = vunpack.c.l.b16 %v49
  %v298 = vunpack.c.h.b16 %v49
  %v299 = vunpack.c.l.b16 %v50
  %v300 = vunpack.c.h.b16 %v50
  %v301 = vunpack.c.l.b16 %v51
  %v302 = vunpack.c.h.b16 %v51
  %v303 = vunpack.c.l.b16 %v52
  %v304 = vunpack.c.h.b16 %v52
  %v305 = vunpack.c.l.b16 %v53
  %v306 = vunpack.c.h.b16 %v53
  %v307 = vunpack.c.l.b16 %v54
  %v308 = vunpack.c.h.b16 %v54
  %v309 = vunpack.c.l.b16 %v55
  %v310 = vunpack.c.h.b16 %v55
  %v311 = vunpack.c.l.b16 %v56
  %v312 = vunpack.c.h.b16 %v56
  %v313 = vunpack.c.l.b16 %v57
  %v314 = vunpack.c.h.b16 %v57
  %v315 = vunpack.c.l.b16 %v58
  %v316 = vunpack.c.h.b16 %v58
  %v317 = vunpack.c.l.b16 %v59
  %v318 = vunpack.c.h.b16 %v59
  %v319 = vunpack.c.l.b16 %v60
  %v320 = vunpack.c.h.b16 %v60
  %v321 = vunpack.c.l.b16 %v61
  %v322 = vunpack.c.h.b16 %v61
  %v323 = vunpack.c.l.b16 %v62
  %v324 = vunpack.c.h.b16 %v62
  %v325 = vunpack.c.l.b16 %v63
  %v326 = vunpack.c.h.b16 %v63
  %v327 = vunpack.c.l.b16 %v64
  %v328 = vunpack.c.h.b16 %v64
  %v329 = vunpack.c.l.b16 %v65
  %v330 = vunpack.c.h.b16 %v65
  %v331 = vunpack.c.l.b16 %v66
  %v332 = vunpack.c.h.b16 %v66
  %v333 = vunpack.c.l.b16 %v67
  %v334 = vunpack.c.h.b16 %v67
  %v335 = vunpack.c.l.b16 %v68
  %v336 = vunpack.c.h.b16 %v68
  %v337 = vunpack.c.l.b16 %v69
  %v338 = vunpack.c.h.b16 %v69
  %v339 = vunpack.c.l.b16 %v70
  %v340 = vunpack.c.h.b16 %v70
  %v341 = vunpack.c.l.b16 %v71
  %v342 = vunpack.c.h.b16 %v71
  %v343 = vunpack.c.l.b16 %v72
  %v344 = vunpack.c.h.b16 %v72
  %v345 = vunpack.c.l.b16 %v73
  %v346 = vunpack.c.h.b16 %v73
  %v347 = vunpack.c.l.b16 %v74
  %v348 = vunpack.c.h.b16 %v74
  %v349 = vunpack.c.l.b16 %v75
  %v350 = vunpack.c.h.b16 %v75
  %v351 = vunpack.c.l.b16 %v76
  %v352 = vunpack.c.h.b16 %v76
  %v353 = vunpack.c.l.b16 %v77
  %v354 = vunpack.c.h.b16 %v77
  %v355 = vunpack.c.l.b16 %v78
  %v356 = vunpack.c.h.b16 %v78
  %v357 = vunpack.c.l.b16 %v79
  %v358 = vunpack.c.h.b16 %v79
  %v359 = vunpack.c.l.b16 %v80
  %v360 = vunpack.c.h.b16 %v80
  %v361 = vunpack.c.l.b16 %v81
  %v362 = vunpack.c.h.b16 %v81
  %v363 = vunpack.c.l.b16 %v82
  %v364 = vunpack.c.h.b16 %v82
  %v365 = vunpack.c.l.b16 %v83
  %v366 = vunpack.c.h.b16 %v83
  %v367 = vunpack.c.l.b16 %v84
  %v368 = vunpack.c.h.b16 %v84
  %v369 = vunpack.c.l.b16 %v85
  %v370 = vunpack.c.h.b16 %v85
  %v371 = vunpack.c.l.b16 %v86
  %v372 = vunpack.c.h.b16 %v86
  %v373 = vpack.c.b16 %v233, %v229
  %v374 = vpack.c.b16 %v234, %v230
  %v375 = vpack.c.b16 %v235, %v231
  %v376 = vpack.c.b16 %v236, %v232
  %v377 = vpack.c.b16 %v241, %v237
  %v378 = vpack.c.b16 %v242, %v238
  %v379 = vpack.c.b16 %v243, %v239
  %v380 = vpack.c.b16 %v244, %v240
  %v381 = vpack.c.b16 %v249, %v245
  %v382 = vpack.c.b16 %v250, %v246
  %v383 = vpack.c.b16 %v251, %v247
  %v384 = vpack.c.b16 %v252, %v248
  %v385 = vpack.c.b16 %v257, %v253
  %v386 = vpack.c.b16 %v258, %v254
  %v387 = vpack.c.b16 %v259, %v255
  %v388 = vpack.c.b16 %v260, %v256
  %v389 = vpack.c.b16 %v265, %v261
  %v390 = vpack.c.b16 %v266, %v262
  %v391 = vpack.c.b16 %v267, %v263
  %v392 = vpack.c.b16 %v268, %v264
  %v393 = vpack.c.b16 %v273, %v269
  %v394 = vpack.c.b16 %v274, %v270
  %v395 = vpack.c.b16 %v275, %v271
  %v396 = vpack.c.b16 %v276, %v272
  %v397 = vpack.c.b16 %v281, %v277
  %v398 = vpack.c.b16 %v282, %v278
  %v399 = vpack.c.b16 %v283, %v279
  %v400 = vpack.c.b16 %v284, %v280
  %v401 = vpack.c.b16 %v289, %v285
  %v402 = vpack.c.b16 %v290, %v286
  %v403 = vpack.c.b16 %v291, %v287
  %v404 = vpack.c.b16 %v292, %v288
  %v405 = vpack.c.b16 %v297, %v293
  %v406 = vpack.c.b16 %v298, %v294
  %v407 = vpack.c.b16 %v299, %v295
  %v408 = vpack.c.b16 %v300, %v296
  %v409 = vpack.c.b16 %v305, %v301
  %v410 = vpack.c.b16 %v306, %v302
  %v411 = vpack.c.b16 %v307, %v303
  %v412 = vpack.c.b16 %v308, %v304
  %v413 = vpack.c.b16 %v313, %v309
  %v414 = vpack.c.b16 %v314, %v310
  %v415 = vpack.c.b16 %v315, %v311
  %v416 = vpack.c.b16 %v316, %v312
  %v417 = vpack.c.b16 %v321, %v317
  %v418 = vpack.c.b16 %v322, %v318
  %v419 = vpack.c.b16 %v323, %v319
  %v420 = vpack.c.b16 %v324, %v320
  %v421 = vpack.c.b16 %v329, %v325
  %v422 = vpack.c.b16 %v330, %v326
  %v423 = vpack.c.b16 %v331, %v327
  %v424 = vpack.c.b16 %v332, %v328
  %v425 = vpack.c.b16 %v337, %v333
  %v426 = vpack.c.b16 %v338, %v334
  %v427 = vpack.c.b16 %v339, %v335
  %v428 = vpack.c.b16 %v340, %v336
  %v429 = vpack.c.b16 %v345, %v341
  %v430 = vpack.c.b16 %v346, %v342
  %v431 = vpack.c.b16 %v347, %v343
  %v432 = vpack.c.b16 %v348, %v344
  %v433 = vpack.c.b16 %v353, %v349
  %v434 = vpack.c.b16 %v354, %v350
  %v435 = vpack.c.b16 %v355, %v351
  %v436 = vpack.c.b16 %v356, %v352
  %v437 = vpack.c.b16 %v361, %v357
  %v438 = vpack.c.b16 %v362, %v358
  %v439 = vpack.c.b16 %v363, %v359
  %v440 = vpack.c.b16 %v364, %v360
  %v441 = vpack.c.b16 %v369, %v365
  %v442 = vpack.c.b16 %v370, %v366
  %v443 = vpack.c.b16 %v371, %v367
  %v444 = vpack.c.b16 %v372, %v368
  %v562 = vunpack.c.l.b16 %v87
  %v563 = vunpack.c.l.b16 %v88
  %v564 = vunpack.c.l.b16 %v89
  %v565 = vunpack.c.l.b16 %v90
  %v566 = vunpack.c.l.b16 %v91
  %v567 = vunpack.c.l.b16 %v92
  %v568 = vunpack.c.l.b16 %v93
  %v569 = vunpack.c.l.b16 %v94
  %v570 = vunpack.c.l.b16 %v95
  %v571 = vunpack.c.l.b16 %v96
  %v572 = vunpack.c.l.b16 %v97
  %v573 = vunpack.c.l.b16 %v98
  %v574 = vunpack.c.l.b16 %v99
  %v575 = vunpack.c.l.b16 %v100
  %v576 = vunpack.c.l.b16 %v101
  %v577 = vunpack.c.l.b16 %v102
  %v578 = vunpack.c.l.b16 %v103
  %v579 = vunpack.c.l.b16 %v104
  %v580 = vunpack.c.l.b16 %v105
  %v581 = vunpack.c.l.b16 %v106
  %v582 = vunpack.c.l.b16 %v107
  %v583 = vunpack.c.l.b16 %v108
  %v584 = vunpack.c.l.b16 %v109
  %v585 = vunpack.c.l.b16 %v110
  %v586 = vunpack.c.l.b16 %v111
  %v587 = vunpack.c.l.b16 %v112
  %v588 = vunpack.c.l.b16 %v113
  %v589 = vunpack.c.l.b16 %v114
  %v590 = vunpack.c.l.b16 %v115
  %v591 = vunpack.c.l.b16 %v116
  %v592 = vunpack.c.l.b16 %v117
  %v593 = vunpack.c.l.b16 %v118
  %v594 = vunpack.c.l.b16 %v119
  %v595 = vunpack.c.l.b16 %v120
  %v596 = vunpack.c.l.b16 %v121
  %v597 = vunpack.c.l.b16 %v122
  %v598 = vunpack.c.l.b16 %v123
  %v599 = vunpack.c.l.b16 %v124
  %v600 = vunpack.c.l.b16 %v125
  %v601 = vunpack.c.l.b16 %v126
  %v602 = vunpack.c.l.b16 %v127
  %v603 = vunpack.c.l.b16 %v128
  %v604 = vunpack.c.l.b16 %v129
  %v605 = vunpack.c.l.b16 %v130
  %v606 = vunpack.c.l.b16 %v131
  %v607 = vunpack.c.l.b16 %v132
  %v608 = vunpack.c.l.b16 %v133
  %v609 = vunpack.c.l.b16 %v134
  %v610 = vunpack.c.l.b16 %v135
  %v611 = vunpack.c.l.b16 %v136
  %v612 = vunpack.c.l.b16 %v137
  %v613 = vunpack.c.l.b16 %v138
  %v614 = vunpack.c.l.b16 %v139
  %v615 = vunpack.c.l.b16 %v140
  %v616 = vunpack.c.l.b16 %v141
  %v617 = vunpack.c.l.b16 %v142
  %v618 = vunpack.c.l.b16 %v143
  %v619 = vunpack.c.l.b16 %v144
  %v620 = vunpack.c.l.b16 %v145
  %v621 = vunpack.c.l.b16 %v146
  %v622 = vunpack.c.l.b16 %v147
  %v623 = vunpack.c.l.b16 %v148
  %v624 = vunpack.c.l.b16 %v149
  %v625 = vpack.c.b16 %v563, %v562
  %v626 = vpack.c.b16 %v565, %v564
  %v627 = vpack.c.b16 %v567, %v566
  %v628 = vpack.c.b16 %v569, %v568
  %v629 = vpack.c.b16 %v571, %v570
  %v630 = vpack.c.b16 %v573, %v572
  %v631 = vpack.c.b16 %v575, %v574
  %v632 = vpack.c.b16 %v577, %v576
  %v633 = vpack.c.b16 %v579, %v578
  %v634 = vpack.c.b16 %v581, %v580
  %v635 = vpack.c.b16 %v583, %v582
  %v636 = vpack.c.b16 %v585, %v584
  %v637 = vpack.c.b16 %v587, %v586
  %v638 = vpack.c.b16 %v589, %v588
  %v639 = vpack.c.b16 %v591, %v590
  %v640 = vpack.c.b16 %v593, %v592
  %v641 = vpack.c.b16 %v595, %v594
  %v642 = vpack.c.b16 %v597, %v596
  %v643 = vpack.c.b16 %v599, %v598
  %v644 = vpack.c.b16 %v601, %v600
  %v645 = vpack.c.b16 %v603, %v602
  %v646 = vpack.c.b16 %v605, %v604
  %v647 = vpack.c.b16 %v607, %v606
  %v648 = vpack.c.b16 %v609, %v608
  %v649 = vpack.c.b16 %v611, %v610
  %v650 = vpack.c.b16 %v613, %v612
  %v651 = vpack.c.b16 %v615, %v614
  %v652 = vpack.c.b16 %v617, %v616
  %v653 = vpack.c.b16 %v619, %v618
  %v654 = vpack.c.b16 %v621, %v620
  %v655 = vpack.c.b16 %v623, %v622
  %v656 = vpack.c.b16 %v624, %v624
  %vm688 = vcmask 949248
  %v690 = vsel %vm688, %v376, 0
  %v693 = vsel %vm688, %v380, 0
  %v696 = vsel %vm688, %v384, 0
  %v699 = vsel %vm688, %v388, 0
  %v702 = vsel %vm688, %v392, 0
  %v705 = vsel %vm688, %v396, 0
  %v708 = vsel %vm688, %v400, 0
  %v711 = vsel %vm688, %v404, 0
  %v714 = vsel %vm688, %v408, 0
  %v717 = vsel %vm688, %v412, 0
  %v720 = vsel %vm688, %v416, 0
  %v723 = vsel %vm688, %v420, 0
  %v726 = vsel %vm688, %v424, 0
  %v729 = vsel %vm688, %v428, 0
  %v732 = vsel %vm688, %v432, 0
  %v735 = vsel %vm688, %v436, 0
  %v738 = vsel %vm688, %v440, 0
  %v741 = vsel %vm688, %v444, 0
  %vm743 = vcmask 1041408
  %v745 = vsel %vm743, %v656, 0
  %747 = vmatprep.subr.bf16.mxu0 0
  %748 = vmatpush1.bf16.msra.mxu0 %v625
  %749 = vmatprep.subr.bf16.mxu0 0
  %750 = vmatpush1.bf16.msra.mxu0 %v626
  %751 = vmatprep.subr.bf16.mxu0 0
  %752 = vmatpush1.bf16.msra.mxu0 %v627
  %753 = vmatprep.subr.bf16.mxu0 0
  %754 = vmatpush1.bf16.msra.mxu0 %v628
  %755 = vmatprep.subr.bf16.mxu0 0
  %756 = vmatpush1.bf16.msra.mxu0 %v629
  %757 = vmatprep.subr.bf16.mxu0 0
  %758 = vmatpush1.bf16.msra.mxu0 %v630
  %759 = vmatprep.subr.bf16.mxu0 0
  %760 = vmatpush1.bf16.msra.mxu0 %v631
  %761 = vmatprep.subr.bf16.mxu0 0
  %762 = vmatpush1.bf16.msra.mxu0 %v632
  %763 = vmatprep.subr.bf16.mxu0 0
  %764 = vmatpush1.bf16.msra.mxu0 %v633
  %765 = vmatprep.subr.bf16.mxu0 0
  %766 = vmatpush1.bf16.msra.mxu0 %v634
  %767 = vmatprep.subr.bf16.mxu0 0
  %768 = vmatpush1.bf16.msra.mxu0 %v635
  %769 = vmatprep.subr.bf16.mxu0 0
  %770 = vmatpush1.bf16.msra.mxu0 %v636
  %771 = vmatprep.subr.bf16.mxu0 0
  %772 = vmatpush1.bf16.msra.mxu0 %v637
  %773 = vmatprep.subr.bf16.mxu0 0
  %774 = vmatpush1.bf16.msra.mxu0 %v638
  %775 = vmatprep.subr.bf16.mxu0 0
  %776 = vmatpush1.bf16.msra.mxu0 %v639
  %777 = vmatprep.subr.bf16.mxu0 0
  %778 = vmatpush1.bf16.msra.mxu0 %v640
  %779 = vmatprep.mubr.bf16.mxu0 %v374
  %780 = vmatmul.mubr.bf16.gmra.mrb[0].mxu0 %v373
  %v781 = vpop.f32.mrb[0].mxu0
  %v782 = vadd.f32 %v155, %v781
  %v783 = vpop.f32.mrb[0].mxu0
  %v784 = vpop.f32.mrb[0].mxu0
  %v785 = vadd.f32 %v155, %v784
  %v786 = vpop.f32.mrb[0].mxu0
  %787 = vmatprep.mubr.bf16.mxu0 %v378
  %788 = vmatmul.mubr.bf16.gmra.mrb[0].mxu0 %v377
  %v789 = vpop.f32.mrb[0].mxu0
  %v790 = vadd.f32 %v155, %v789
  %v791 = vpop.f32.mrb[0].mxu0
  %v792 = vpop.f32.mrb[0].mxu0
  %v793 = vadd.f32 %v155, %v792
  %v794 = vpop.f32.mrb[0].mxu0
  %795 = vmatprep.mubr.bf16.mxu0 %v382
  %796 = vmatmul.mubr.bf16.gmra.mrb[0].mxu0 %v381
  %v797 = vpop.f32.mrb[0].mxu0
  %v798 = vadd.f32 %v155, %v797
  %v799 = vpop.f32.mrb[0].mxu0
  %v800 = vpop.f32.mrb[0].mxu0
  %v801 = vadd.f32 %v155, %v800
  %v802 = vpop.f32.mrb[0].mxu0
  %803 = vmatprep.mubr.bf16.mxu0 %v386
  %804 = vmatmul.mubr.bf16.gmra.mrb[0].mxu0 %v385
  %v805 = vpop.f32.mrb[0].mxu0
  %v806 = vadd.f32 %v155, %v805
  %v807 = vpop.f32.mrb[0].mxu0
  %v808 = vpop.f32.mrb[0].mxu0
  %v809 = vadd.f32 %v155, %v808
  %v810 = vpop.f32.mrb[0].mxu0
  %811 = vmatprep.mubr.bf16.mxu0 %v390
  %812 = vmatmul.mubr.bf16.gmra.mrb[0].mxu0 %v389
  %v813 = vpop.f32.mrb[0].mxu0
  %v814 = vadd.f32 %v155, %v813
  %v815 = vpop.f32.mrb[0].mxu0
  %v816 = vpop.f32.mrb[0].mxu0
  %v817 = vadd.f32 %v155, %v816
  %v818 = vpop.f32.mrb[0].mxu0
  %819 = vmatprep.mubr.bf16.mxu0 %v394
  %820 = vmatmul.mubr.bf16.gmra.mrb[0].mxu0 %v393
  %v821 = vpop.f32.mrb[0].mxu0
  %v822 = vadd.f32 %v155, %v821
  %v823 = vpop.f32.mrb[0].mxu0
  %v824 = vpop.f32.mrb[0].mxu0
  %v825 = vadd.f32 %v155, %v824
  %v826 = vpop.f32.mrb[0].mxu0
  %827 = vmatprep.mubr.bf16.mxu0 %v398
  %828 = vmatmul.mubr.bf16.gmra.mrb[0].mxu0 %v397
  %v829 = vpop.f32.mrb[0].mxu0
  %v830 = vadd.f32 %v155, %v829
  %v831 = vpop.f32.mrb[0].mxu0
  %v832 = vpop.f32.mrb[0].mxu0
  %v833 = vadd.f32 %v155, %v832
  %v834 = vpop.f32.mrb[0].mxu0
  %835 = vmatprep.mubr.bf16.mxu0 %v402
  %836 = vmatmul.mubr.bf16.gmra.mrb[0].mxu0 %v401
  %v837 = vpop.f32.mrb[0].mxu0
  %v838 = vadd.f32 %v155, %v837
  %v839 = vpop.f32.mrb[0].mxu0
  %v840 = vpop.f32.mrb[0].mxu0
  %v841 = vadd.f32 %v155, %v840
  %v842 = vpop.f32.mrb[0].mxu0
  %843 = vmatprep.mubr.bf16.mxu0 %v406
  %844 = vmatmul.mubr.bf16.gmra.mrb[0].mxu0 %v405
  %v845 = vpop.f32.mrb[0].mxu0
  %v846 = vadd.f32 %v155, %v845
  %v847 = vpop.f32.mrb[0].mxu0
  %v848 = vpop.f32.mrb[0].mxu0
  %v849 = vadd.f32 %v155, %v848
  %v850 = vpop.f32.mrb[0].mxu0
  %851 = vmatprep.mubr.bf16.mxu0 %v410
  %852 = vmatmul.mubr.bf16.gmra.mrb[0].mxu0 %v409
  %v853 = vpop.f32.mrb[0].mxu0
  %v854 = vadd.f32 %v155, %v853
  %v855 = vpop.f32.mrb[0].mxu0
  %v856 = vpop.f32.mrb[0].mxu0
  %v857 = vadd.f32 %v155, %v856
  %v858 = vpop.f32.mrb[0].mxu0
  %859 = vmatprep.mubr.bf16.mxu0 %v414
  %860 = vmatmul.mubr.bf16.gmra.mrb[0].mxu0 %v413
  %v861 = vpop.f32.mrb[0].mxu0
  %v862 = vadd.f32 %v155, %v861
  %v863 = vpop.f32.mrb[0].mxu0
  %v864 = vpop.f32.mrb[0].mxu0
  %v865 = vadd.f32 %v155, %v864
  %v866 = vpop.f32.mrb[0].mxu0
  %867 = vmatprep.mubr.bf16.mxu0 %v418
  %868 = vmatmul.mubr.bf16.gmra.mrb[0].mxu0 %v417
  %v869 = vpop.f32.mrb[0].mxu0
  %v870 = vadd.f32 %v155, %v869
  %v871 = vpop.f32.mrb[0].mxu0
  %v872 = vpop.f32.mrb[0].mxu0
  %v873 = vadd.f32 %v155, %v872
  %v874 = vpop.f32.mrb[0].mxu0
  %875 = vmatprep.mubr.bf16.mxu0 %v422
  %876 = vmatmul.mubr.bf16.gmra.mrb[0].mxu0 %v421
  %v877 = vpop.f32.mrb[0].mxu0
  %v878 = vadd.f32 %v155, %v877
  %v879 = vpop.f32.mrb[0].mxu0
  %v880 = vpop.f32.mrb[0].mxu0
  %v881 = vadd.f32 %v155, %v880
  %v882 = vpop.f32.mrb[0].mxu0
  %883 = vmatprep.mubr.bf16.mxu0 %v426
  %884 = vmatmul.mubr.bf16.gmra.mrb[0].mxu0 %v425
  %v885 = vpop.f32.mrb[0].mxu0
  %v886 = vadd.f32 %v155, %v885
  %v887 = vpop.f32.mrb[0].mxu0
  %v888 = vpop.f32.mrb[0].mxu0
  %v889 = vadd.f32 %v155, %v888
  %v890 = vpop.f32.mrb[0].mxu0
  %891 = vmatprep.mubr.bf16.mxu0 %v430
  %892 = vmatmul.mubr.bf16.gmra.mrb[0].mxu0 %v429
  %v893 = vpop.f32.mrb[0].mxu0
  %v894 = vadd.f32 %v155, %v893
  %v895 = vpop.f32.mrb[0].mxu0
  %v896 = vpop.f32.mrb[0].mxu0
  %v897 = vadd.f32 %v155, %v896
  %v898 = vpop.f32.mrb[0].mxu0
  %899 = vmatprep.mubr.bf16.mxu0 %v434
  %900 = vmatmul.mubr.bf16.gmra.mrb[0].mxu0 %v433
  %v901 = vpop.f32.mrb[0].mxu0
  %v902 = vadd.f32 %v155, %v901
  %v903 = vpop.f32.mrb[0].mxu0
  %v904 = vpop.f32.mrb[0].mxu0
  %v905 = vadd.f32 %v155, %v904
  %v906 = vpop.f32.mrb[0].mxu0
  %907 = vmatprep.mubr.bf16.mxu0 %v438
  %908 = vmatmul.mubr.bf16.gmra.mrb[0].mxu0 %v437
  %v909 = vpop.f32.mrb[0].mxu0
  %v910 = vadd.f32 %v155, %v909
  %v911 = vpop.f32.mrb[0].mxu0
  %v912 = vpop.f32.mrb[0].mxu0
  %v913 = vadd.f32 %v155, %v912
  %v914 = vpop.f32.mrb[0].mxu0
  %915 = vmatprep.mubr.bf16.mxu0 %v442
  %916 = vmatmul.mubr.bf16.gmra.mrb[0].mxu0 %v441
  %v917 = vpop.f32.mrb[0].mxu0
  %v918 = vadd.f32 %v155, %v917
  %v919 = vpop.f32.mrb[0].mxu0
  %v920 = vpop.f32.mrb[0].mxu0
  %v921 = vadd.f32 %v155, %v920
  %v922 = vpop.f32.mrb[0].mxu0
  %923 = vdwg.mxu0
  %924 = vmatprep.subr.bf16.mxu0 0
  %925 = vmatpush1.bf16.msra.mxu0 %v641
  %926 = vmatprep.subr.bf16.mxu0 0
  %927 = vmatpush1.bf16.msra.mxu0 %v642
  %928 = vmatprep.subr.bf16.mxu0 0
  %929 = vmatpush1.bf16.msra.mxu0 %v643
  %930 = vmatprep.subr.bf16.mxu0 0
  %931 = vmatpush1.bf16.msra.mxu0 %v644
  %932 = vmatprep.subr.bf16.mxu0 0
  %933 = vmatpush1.bf16.msra.mxu0 %v645
  %934 = vmatprep.subr.bf16.mxu0 0
  %935 = vmatpush1.bf16.msra.mxu0 %v646
  %936 = vmatprep.subr.bf16.mxu0 0
  %937 = vmatpush1.bf16.msra.mxu0 %v647
  %938 = vmatprep.subr.bf16.mxu0 0
  %939 = vmatpush1.bf16.msra.mxu0 %v648
  %940 = vmatprep.subr.bf16.mxu0 0
  %941 = vmatpush1.bf16.msra.mxu0 %v649
  %942 = vmatprep.subr.bf16.mxu0 0
  %943 = vmatpush1.bf16.msra.mxu0 %v650
  %944 = vmatprep.subr.bf16.mxu0 0
  %945 = vmatpush1.bf16.msra.mxu0 %v651
  %946 = vmatprep.subr.bf16.mxu0 0
  %947 = vmatpush1.bf16.msra.mxu0 %v652
  %948 = vmatprep.subr.bf16.mxu0 0
  %949 = vmatpush1.bf16.msra.mxu0 %v653
  %950 = vmatprep.subr.bf16.mxu0 0
  %951 = vmatpush1.bf16.msra.mxu0 %v654
  %952 = vmatprep.subr.bf16.mxu0 0
  %953 = vmatpush1.bf16.msra.mxu0 %v655
  %954 = vmatprep.subr.bf16.mxu0 0
  %955 = vmatpush1.bf16.msra.mxu0 %v745
  %956 = vmatprep.mubr.bf16.mxu0 %v690
  %957 = vmatmul.mubr.bf16.gmra.mrb[0].mxu0 %v375
  %v958 = vpop.f32.mrb[0].mxu0
  %v959 = vadd.f32 %v782, %v958
  %v960 = vpop.f32.mrb[0].mxu0
  %v961 = vpop.f32.mrb[0].mxu0
  %v962 = vadd.f32 %v785, %v961
  %v963 = vpop.f32.mrb[0].mxu0
  %964 = vmatprep.mubr.bf16.mxu0 %v693
  %965 = vmatmul.mubr.bf16.gmra.mrb[0].mxu0 %v379
  %v966 = vpop.f32.mrb[0].mxu0
  %v967 = vadd.f32 %v790, %v966
  %v968 = vpop.f32.mrb[0].mxu0
  %v969 = vpop.f32.mrb[0].mxu0
  %v970 = vadd.f32 %v793, %v969
  %v971 = vpop.f32.mrb[0].mxu0
  %972 = vmatprep.mubr.bf16.mxu0 %v696
  %973 = vmatmul.mubr.bf16.gmra.mrb[0].mxu0 %v383
  %v974 = vpop.f32.mrb[0].mxu0
  %v975 = vadd.f32 %v798, %v974
  %v976 = vpop.f32.mrb[0].mxu0
  %v977 = vpop.f32.mrb[0].mxu0
  %v978 = vadd.f32 %v801, %v977
  %v979 = vpop.f32.mrb[0].mxu0
  %980 = vmatprep.mubr.bf16.mxu0 %v699
  %981 = vmatmul.mubr.bf16.gmra.mrb[0].mxu0 %v387
  %v982 = vpop.f32.mrb[0].mxu0
  %v983 = vadd.f32 %v806, %v982
  %v984 = vpop.f32.mrb[0].mxu0
  %v985 = vpop.f32.mrb[0].mxu0
  %v986 = vadd.f32 %v809, %v985
  %v987 = vpop.f32.mrb[0].mxu0
  %988 = vmatprep.mubr.bf16.mxu0 %v702
  %989 = vmatmul.mubr.bf16.gmra.mrb[0].mxu0 %v391
  %v990 = vpop.f32.mrb[0].mxu0
  %v991 = vadd.f32 %v814, %v990
  %v992 = vpop.f32.mrb[0].mxu0
  %v993 = vpop.f32.mrb[0].mxu0
  %v994 = vadd.f32 %v817, %v993
  %v995 = vpop.f32.mrb[0].mxu0
  %996 = vmatprep.mubr.bf16.mxu0 %v705
  %997 = vmatmul.mubr.bf16.gmra.mrb[0].mxu0 %v395
  %v998 = vpop.f32.mrb[0].mxu0
  %v999 = vadd.f32 %v822, %v998
  %v1000 = vpop.f32.mrb[0].mxu0
  %v1001 = vpop.f32.mrb[0].mxu0
  %v1002 = vadd.f32 %v825, %v1001
  %v1003 = vpop.f32.mrb[0].mxu0
  %1004 = vmatprep.mubr.bf16.mxu0 %v708
  %1005 = vmatmul.mubr.bf16.gmra.mrb[0].mxu0 %v399
  %v1006 = vpop.f32.mrb[0].mxu0
  %v1007 = vadd.f32 %v830, %v1006
  %v1008 = vpop.f32.mrb[0].mxu0
  %v1009 = vpop.f32.mrb[0].mxu0
  %v1010 = vadd.f32 %v833, %v1009
  %v1011 = vpop.f32.mrb[0].mxu0
  %1012 = vmatprep.mubr.bf16.mxu0 %v711
  %1013 = vmatmul.mubr.bf16.gmra.mrb[0].mxu0 %v403
  %v1014 = vpop.f32.mrb[0].mxu0
  %v1015 = vadd.f32 %v838, %v1014
  %v1016 = vpop.f32.mrb[0].mxu0
  %v1017 = vpop.f32.mrb[0].mxu0
  %v1018 = vadd.f32 %v841, %v1017
  %v1019 = vpop.f32.mrb[0].mxu0
  %1020 = vmatprep.mubr.bf16.mxu0 %v714
  %1021 = vmatmul.mubr.bf16.gmra.mrb[0].mxu0 %v407
  %v1022 = vpop.f32.mrb[0].mxu0
  %v1023 = vadd.f32 %v846, %v1022
  %v1024 = vpop.f32.mrb[0].mxu0
  %v1025 = vpop.f32.mrb[0].mxu0
  %v1026 = vadd.f32 %v849, %v1025
  %v1027 = vpop.f32.mrb[0].mxu0
  %1028 = vmatprep.mubr.bf16.mxu0 %v717
  %1029 = vmatmul.mubr.bf16.gmra.mrb[0].mxu0 %v411
  %v1030 = vpop.f32.mrb[0].mxu0
  %v1031 = vadd.f32 %v854, %v1030
  %v1032 = vpop.f32.mrb[0].mxu0
  %v1033 = vpop.f32.mrb[0].mxu0
  %v1034 = vadd.f32 %v857, %v1033
  %v1035 = vpop.f32.mrb[0].mxu0
  %1036 = vmatprep.mubr.bf16.mxu0 %v720
  %1037 = vmatmul.mubr.bf16.gmra.mrb[0].mxu0 %v415
  %v1038 = vpop.f32.mrb[0].mxu0
  %v1039 = vadd.f32 %v862, %v1038
  %v1040 = vpop.f32.mrb[0].mxu0
  %v1041 = vpop.f32.mrb[0].mxu0
  %v1042 = vadd.f32 %v865, %v1041
  %v1043 = vpop.f32.mrb[0].mxu0
  %1044 = vmatprep.mubr.bf16.mxu0 %v723
  %1045 = vmatmul.mubr.bf16.gmra.mrb[0].mxu0 %v419
  %v1046 = vpop.f32.mrb[0].mxu0
  %v1047 = vadd.f32 %v870, %v1046
  %v1048 = vpop.f32.mrb[0].mxu0
  %v1049 = vpop.f32.mrb[0].mxu0
  %v1050 = vadd.f32 %v873, %v1049
  %v1051 = vpop.f32.mrb[0].mxu0
  %1052 = vmatprep.mubr.bf16.mxu0 %v726
  %1053 = vmatmul.mubr.bf16.gmra.mrb[0].mxu0 %v423
  %v1054 = vpop.f32.mrb[0].mxu0
  %v1055 = vadd.f32 %v878, %v1054
  %v1056 = vpop.f32.mrb[0].mxu0
  %v1057 = vpop.f32.mrb[0].mxu0
  %v1058 = vadd.f32 %v881, %v1057
  %v1059 = vpop.f32.mrb[0].mxu0
  %1060 = vmatprep.mubr.bf16.mxu0 %v729
  %1061 = vmatmul.mubr.bf16.gmra.mrb[0].mxu0 %v427
  %v1062 = vpop.f32.mrb[0].mxu0
  %v1063 = vadd.f32 %v886, %v1062
  %v1064 = vpop.f32.mrb[0].mxu0
  %v1065 = vpop.f32.mrb[0].mxu0
  %v1066 = vadd.f32 %v889, %v1065
  %v1067 = vpop.f32.mrb[0].mxu0
  %1068 = vmatprep.mubr.bf16.mxu0 %v732
  %1069 = vmatmul.mubr.bf16.gmra.mrb[0].mxu0 %v431
  %v1070 = vpop.f32.mrb[0].mxu0
  %v1071 = vadd.f32 %v894, %v1070
  %v1072 = vpop.f32.mrb[0].mxu0
  %v1073 = vpop.f32.mrb[0].mxu0
  %v1074 = vadd.f32 %v897, %v1073
  %v1075 = vpop.f32.mrb[0].mxu0
  %1076 = vmatprep.mubr.bf16.mxu0 %v735
  %1077 = vmatmul.mubr.bf16.gmra.mrb[0].mxu0 %v435
  %v1078 = vpop.f32.mrb[0].mxu0
  %v1079 = vadd.f32 %v902, %v1078
  %v1080 = vpop.f32.mrb[0].mxu0
  %v1081 = vpop.f32.mrb[0].mxu0
  %v1082 = vadd.f32 %v905, %v1081
  %v1083 = vpop.f32.mrb[0].mxu0
  %1084 = vmatprep.mubr.bf16.mxu0 %v738
  %1085 = vmatmul.mubr.bf16.gmra.mrb[0].mxu0 %v439
  %v1086 = vpop.f32.mrb[0].mxu0
  %v1087 = vadd.f32 %v910, %v1086
  %v1088 = vpop.f32.mrb[0].mxu0
  %v1089 = vpop.f32.mrb[0].mxu0
  %v1090 = vadd.f32 %v913, %v1089
  %v1091 = vpop.f32.mrb[0].mxu0
  %1092 = vmatprep.mubr.bf16.mxu0 %v741
  %1093 = vmatmul.mubr.bf16.gmra.mrb[0].mxu0 %v443
  %v1094 = vpop.f32.mrb[0].mxu0
  %v1095 = vadd.f32 %v918, %v1094
  %v1096 = vpop.f32.mrb[0].mxu0
  %v1097 = vpop.f32.mrb[0].mxu0
  %v1098 = vadd.f32 %v921, %v1097
  %v1099 = vpop.f32.mrb[0].mxu0
  %1100 = vdwg.mxu0
  %v1101 = vmax.f32 %v959, 0.0
  %v1102 = vmax.f32 %v962, 0.0
  %v1103 = vmax.f32 %v967, 0.0
  %v1104 = vmax.f32 %v970, 0.0
  %v1105 = vmax.f32 %v975, 0.0
  %v1106 = vmax.f32 %v978, 0.0
  %v1107 = vmax.f32 %v983, 0.0
  %v1108 = vmax.f32 %v986, 0.0
  %v1109 = vmax.f32 %v991, 0.0
  %v1110 = vmax.f32 %v994, 0.0
  %v1111 = vmax.f32 %v999, 0.0
  %v1112 = vmax.f32 %v1002, 0.0
  %v1113 = vmax.f32 %v1007, 0.0
  %v1114 = vmax.f32 %v1010, 0.0
  %v1115 = vmax.f32 %v1015, 0.0
  %v1116 = vmax.f32 %v1018, 0.0
  %v1117 = vmax.f32 %v1023, 0.0
  %v1118 = vmax.f32 %v1026, 0.0
  %v1119 = vmax.f32 %v1031, 0.0
  %v1120 = vmax.f32 %v1034, 0.0
  %v1121 = vmax.f32 %v1039, 0.0
  %v1122 = vmax.f32 %v1042, 0.0
  %v1123 = vmax.f32 %v1047, 0.0
  %v1124 = vmax.f32 %v1050, 0.0
  %v1125 = vmax.f32 %v1055, 0.0
  %v1126 = vmax.f32 %v1058, 0.0
  %v1127 = vmax.f32 %v1063, 0.0
  %v1128 = vmax.f32 %v1066, 0.0
  %v1129 = vmax.f32 %v1071, 0.0
  %v1130 = vmax.f32 %v1074, 0.0
  %v1131 = vmax.f32 %v1079, 0.0
  %v1132 = vmax.f32 %v1082, 0.0
  %v1133 = vmax.f32 %v1087, 0.0
  %v1134 = vmax.f32 %v1090, 0.0
  %v1135 = vmax.f32 %v1095, 0.0
  %v1136 = vmax.f32 %v1098, 0.0
  %v1137 = vpack.c.bf16 %v1102, %v1101
  %v1138 = vpack.c.bf16 %v1104, %v1103
  %v1139 = vpack.c.bf16 %v1106, %v1105
  %v1140 = vpack.c.bf16 %v1108, %v1107
  %v1141 = vpack.c.bf16 %v1110, %v1109
  %v1142 = vpack.c.bf16 %v1112, %v1111
  %v1143 = vpack.c.bf16 %v1114, %v1113
  %v1144 = vpack.c.bf16 %v1116, %v1115
  %v1145 = vpack.c.bf16 %v1118, %v1117
  %v1146 = vpack.c.bf16 %v1120, %v1119
  %v1147 = vpack.c.bf16 %v1122, %v1121
  %v1148 = vpack.c.bf16 %v1124, %v1123
  %v1149 = vpack.c.bf16 %v1126, %v1125
  %v1150 = vpack.c.bf16 %v1128, %v1127
  %v1151 = vpack.c.bf16 %v1130, %v1129
  %v1152 = vpack.c.bf16 %v1132, %v1131
  %v1153 = vpack.c.bf16 %v1134, %v1133
  %v1154 = vpack.c.bf16 %v1136, %v1135
  %v1173 = vunpack.c.l.b16 %v1137
  %v1174 = vunpack.c.h.b16 %v1137
  %v1175 = vunpack.c.l.b16 %v1138
  %v1176 = vunpack.c.h.b16 %v1138
  %v1177 = vunpack.c.l.b16 %v1139
  %v1178 = vunpack.c.h.b16 %v1139
  %v1179 = vunpack.c.l.b16 %v1140
  %v1180 = vunpack.c.h.b16 %v1140
  %v1181 = vunpack.c.l.b16 %v1141
  %v1182 = vunpack.c.h.b16 %v1141
  %v1183 = vunpack.c.l.b16 %v1142
  %v1184 = vunpack.c.h.b16 %v1142
  %v1185 = vunpack.c.l.b16 %v1143
  %v1186 = vunpack.c.h.b16 %v1143
  %v1187 = vunpack.c.l.b16 %v1144
  %v1188 = vunpack.c.h.b16 %v1144
  %v1189 = vunpack.c.l.b16 %v1145
  %v1190 = vunpack.c.h.b16 %v1145
  %v1191 = vunpack.c.l.b16 %v1146
  %v1192 = vunpack.c.h.b16 %v1146
  %v1193 = vunpack.c.l.b16 %v1147
  %v1194 = vunpack.c.h.b16 %v1147
  %v1195 = vunpack.c.l.b16 %v1148
  %v1196 = vunpack.c.h.b16 %v1148
  %v1197 = vunpack.c.l.b16 %v1149
  %v1198 = vunpack.c.h.b16 %v1149
  %v1199 = vunpack.c.l.b16 %v1150
  %v1200 = vunpack.c.h.b16 %v1150
  %v1201 = vunpack.c.l.b16 %v1151
  %v1202 = vunpack.c.h.b16 %v1151
  %v1203 = vunpack.c.l.b16 %v1152
  %v1204 = vunpack.c.h.b16 %v1152
  %v1205 = vunpack.c.l.b16 %v1153
  %v1206 = vunpack.c.h.b16 %v1153
  %v1207 = vunpack.c.l.b16 %v1154
  %v1208 = vunpack.c.h.b16 %v1154
  %v1209 = vpack.c.b16 %v1173, %v1173
  %v1210 = vpack.c.b16 %v1174, %v1174
  %v1211 = vpack.c.b16 %v1175, %v1175
  %v1212 = vpack.c.b16 %v1176, %v1176
  %v1213 = vpack.c.b16 %v1177, %v1177
  %v1214 = vpack.c.b16 %v1178, %v1178
  %v1215 = vpack.c.b16 %v1179, %v1179
  %v1216 = vpack.c.b16 %v1180, %v1180
  %v1217 = vpack.c.b16 %v1181, %v1181
  %v1218 = vpack.c.b16 %v1182, %v1182
  %v1219 = vpack.c.b16 %v1183, %v1183
  %v1220 = vpack.c.b16 %v1184, %v1184
  %v1221 = vpack.c.b16 %v1185, %v1185
  %v1222 = vpack.c.b16 %v1186, %v1186
  %v1223 = vpack.c.b16 %v1187, %v1187
  %v1224 = vpack.c.b16 %v1188, %v1188
  %v1225 = vpack.c.b16 %v1189, %v1189
  %v1226 = vpack.c.b16 %v1190, %v1190
  %v1227 = vpack.c.b16 %v1191, %v1191
  %v1228 = vpack.c.b16 %v1192, %v1192
  %v1229 = vpack.c.b16 %v1193, %v1193
  %v1230 = vpack.c.b16 %v1194, %v1194
  %v1231 = vpack.c.b16 %v1195, %v1195
  %v1232 = vpack.c.b16 %v1196, %v1196
  %v1233 = vpack.c.b16 %v1197, %v1197
  %v1234 = vpack.c.b16 %v1198, %v1198
  %v1235 = vpack.c.b16 %v1199, %v1199
  %v1236 = vpack.c.b16 %v1200, %v1200
  %v1237 = vpack.c.b16 %v1201, %v1201
  %v1238 = vpack.c.b16 %v1202, %v1202
  %v1239 = vpack.c.b16 %v1203, %v1203
  %v1240 = vpack.c.b16 %v1204, %v1204
  %v1241 = vpack.c.b16 %v1205, %v1205
  %v1242 = vpack.c.b16 %v1206, %v1206
  %v1243 = vpack.c.b16 %v1207, %v1207
  %v1244 = vpack.c.b16 %v1208, %v1208
  %1281 = vst [vmem:[%s3] sm:$0xf] %v1209
  %1282 = vst [vmem:[%s3 + $0x4] sm:$0xf] %v1210
  %1283 = vst [vmem:[%s3 + $0x8] sm:$0xf] %v1211
  %1284 = vst [vmem:[%s3 + $0xc] sm:$0xf] %v1212
  %1285 = vst [vmem:[%s3 + $0x10] sm:$0xf] %v1213
  %1286 = vst [vmem:[%s3 + $0x14] sm:$0xf] %v1214
  %1287 = vst [vmem:[%s3 + $0x18] sm:$0xf] %v1215
  %1288 = vst [vmem:[%s3 + $0x1c] sm:$0xf] %v1216
  %1289 = vst [vmem:[%s3 + $0x20] sm:$0xf] %v1217
  %1290 = vst [vmem:[%s3 + $0x24] sm:$0xf] %v1218
  %1291 = vst [vmem:[%s3 + $0x28] sm:$0xf] %v1219
  %1292 = vst [vmem:[%s3 + $0x2c] sm:$0xf] %v1220
  %1293 = vst [vmem:[%s3 + $0x30] sm:$0xf] %v1221
  %1294 = vst [vmem:[%s3 + $0x34] sm:$0xf] %v1222
  %1295 = vst [vmem:[%s3 + $0x38] sm:$0xf] %v1223
  %1296 = vst [vmem:[%s3 + $0x3c] sm:$0xf] %v1224
  %1297 = vst [vmem:[%s3 + $0x40] sm:$0xf] %v1225
  %1298 = vst [vmem:[%s3 + $0x44] sm:$0xf] %v1226
  %1299 = vst [vmem:[%s3 + $0x48] sm:$0xf] %v1227
  %1300 = vst [vmem:[%s3 + $0x4c] sm:$0xf] %v1228
  %1301 = vst [vmem:[%s3 + $0x50] sm:$0xf] %v1229
  %1302 = vst [vmem:[%s3 + $0x54] sm:$0xf] %v1230
  %1303 = vst [vmem:[%s3 + $0x58] sm:$0xf] %v1231
  %1304 = vst [vmem:[%s3 + $0x5c] sm:$0xf] %v1232
  %1305 = vst [vmem:[%s3 + $0x60] sm:$0xf] %v1233
  %1306 = vst [vmem:[%s3 + $0x64] sm:$0xf] %v1234
  %1307 = vst [vmem:[%s3 + $0x68] sm:$0xf] %v1235
  %1308 = vst [vmem:[%s3 + $0x6c] sm:$0xf] %v1236
  %1309 = vst [vmem:[%s3 + $0x70] sm:$0xf] %v1237
  %1310 = vst [vmem:[%s3 + $0x74] sm:$0xf] %v1238
  %1311 = vst [vmem:[%s3 + $0x78] sm:$0xf] %v1239
  %1312 = vst [vmem:[%s3 + $0x7c] sm:$0xf] %v1240
  %1313 = vst [vmem:[%s3 + $0x80] sm:$0xf] %v1241
  %1314 = vst [vmem:[%s3 + $0x84] sm:$0xf] %v1242
  %1315 = vst [vmem:[%s3 + $0x88] sm:$0xf] %v1243
  %1316 = vst [vmem:[%s3 + $0x8c] sm:$0xf] %v1244
  // Predicated region
  $region14: #{net_forward.8} parent=0 // pred_check
    _
  $region15: #{net_forward.8} parent=0 // pred_check_branch
    %1318 = sbr.rel (0) target = $region17
  $region16: #{net_forward.8} parent=0 // pred_region
    _
  $region17: #{net_forward.8} parent=0 // pred_fallthru
    _
  // Predicated region
  $region18: #{net_forward.8} parent=0 // pred_check
    _
  $region19: #{net_forward.8} parent=0 // pred_check_branch
    %1320 = sbr.rel (0) target = $region21
  $region20: #{net_forward.8} parent=0 // pred_region
    _
  $region21: #{net_forward.8} parent=0 // pred_fallthru
    _

// kernel: net_forward.9
$region0: #{net_forward.9}
  #allocation0 [shape = 'u32[]', space=smem, size = 0x4, offset = 0x4, fixed_abs, tag = 'smem constant byte address 0x4 - core index']
  #allocation1 [shape = 'u32[144,128]{1,0:T(1,128)}', space=vmem, size = 0x12000, scoped, tag = 'internal scratch']
  %s0 = inlined_call_operand.vmem [shape: bf16[8,1440], index: 0, kind: input, shape index: {}]
  %s1 = inlined_call_operand.vmem [shape: bf16[1440,128], index: 1, kind: input, shape index: {}]
  %s2 = inlined_call_operand.vmem [shape: f32[1,128], index: 2, kind: input, shape index: {}]
  %s3 = inlined_call_operand.vmem [shape: bf16[128,128], index: 3, kind: input, shape index: {}]
  %s4 = inlined_call_operand.vmem [shape: f32[1,128], index: 4, kind: input, shape index: {}]
  %s5 = inlined_call_operand.vmem [shape: f32[8,128], index: 5, kind: output, shape index: {}]
  %s6 = sld [smem:[#allocation0]]
  $region30: #{net_forward.9} parent=0
    _
  %s8 = ssub.s32 1, %s6
  %s9 = scalar_select 0, %s8, %s6
  // Predicated region
  $region2: #{net_forward.9} parent=0 // pred_check
    _
  $region3: #{net_forward.9} parent=0 // pred_check_branch
    %11 = sbr.rel (0) target = $region5
  $region4: #{net_forward.9} parent=0 // pred_region
    _
  $region5: #{net_forward.9} parent=0 // pred_fallthru
    _
  // Predicated region
  $region6: #{net_forward.9} parent=0 // pred_check
    _
  $region7: #{net_forward.9} parent=0 // pred_check_branch
    %13 = sbr.rel (0) target = $region9
  $region8: #{net_forward.9} parent=0 // pred_region
    _
  $region9: #{net_forward.9} parent=0 // pred_fallthru
    _
  // Predicated region
  $region10: #{net_forward.9} parent=0 // pred_check
    _
  $region11: #{net_forward.9} parent=0 // pred_check_branch
    %15 = sbr.rel (0) target = $region13
  $region12: #{net_forward.9} parent=0 // pred_region
    _
  $region13: #{net_forward.9} parent=0 // pred_fallthru
    _
  // Predicated region
  $region14: #{net_forward.9} parent=0 // pred_check
    _
  $region15: #{net_forward.9} parent=0 // pred_check_branch
    %17 = sbr.rel (0) target = $region17
  $region16: #{net_forward.9} parent=0 // pred_region
    _
  $region17: #{net_forward.9} parent=0 // pred_fallthru
    _
  // Predicated region
  $region18: #{net_forward.9} parent=0 // pred_check
    _
  $region19: #{net_forward.9} parent=0 // pred_check_branch
    %19 = sbr.rel (0) target = $region21
  $region20: #{net_forward.9} parent=0 // pred_region
    _
  $region21: #{net_forward.9} parent=0 // pred_fallthru
    _
  %v21 = vld [vmem:[%s0] sm:$0xff]
  %v22 = vld [vmem:[%s0 + $0x8] sm:$0xff]
  %v23 = vld [vmem:[%s0 + $0x10] sm:$0xff]
  %v24 = vld [vmem:[%s0 + $0x18] sm:$0xff]
  %v25 = vld [vmem:[%s0 + $0x20] sm:$0xff]
  %v26 = vld [vmem:[%s0 + $0x28] sm:$0xff]
  %v27 = vld [vmem:[%s1] sm:$0xf]
  %v28 = vld [vmem:[%s1 + $0x4] sm:$0xf]
  %v29 = vld [vmem:[%s1 + $0x8] sm:$0xf]
  %v30 = vld [vmem:[%s1 + $0xc] sm:$0xf]
  %v31 = vld [vmem:[%s1 + $0x10] sm:$0xf]
  %v32 = vld [vmem:[%s1 + $0x14] sm:$0xf]
  %v33 = vld [vmem:[%s1 + $0x18] sm:$0xf]
  %v34 = vld [vmem:[%s1 + $0x1c] sm:$0xf]
  %v35 = vld [vmem:[%s1 + $0x20] sm:$0xf]
  %v36 = vld [vmem:[%s1 + $0x24] sm:$0xf]
  %v37 = vld [vmem:[%s1 + $0x28] sm:$0xf]
  %v38 = vld [vmem:[%s1 + $0x2c] sm:$0xf]
  %v39 = vld [vmem:[%s1 + $0x30] sm:$0xf]
  %v40 = vld [vmem:[%s1 + $0x34] sm:$0xf]
  %v41 = vld [vmem:[%s1 + $0x38] sm:$0xf]
  %v42 = vld [vmem:[%s1 + $0x3c] sm:$0xf]
  %v43 = vld [vmem:[%s1 + $0x40] sm:$0xf]
  %v44 = vld [vmem:[%s1 + $0x44] sm:$0xf]
  %v45 = vld [vmem:[%s1 + $0x48] sm:$0xf]
  %v46 = vld [vmem:[%s1 + $0x4c] sm:$0xf]
  %v47 = vld [vmem:[%s1 + $0x50] sm:$0xf]
  %v48 = vld [vmem:[%s1 + $0x54] sm:$0xf]
  %v49 = vld [vmem:[%s1 + $0x58] sm:$0xf]
  %v50 = vld [vmem:[%s1 + $0x5c] sm:$0xf]
  %v51 = vld [vmem:[%s1 + $0x60] sm:$0xf]
  %v52 = vld [vmem:[%s1 + $0x64] sm:$0xf]
  %v53 = vld [vmem:[%s1 + $0x68] sm:$0xf]
  %v54 = vld [vmem:[%s1 + $0x6c] sm:$0xf]
  %v55 = vld [vmem:[%s1 + $0x70] sm:$0xf]
  %v56 = vld [vmem:[%s1 + $0x74] sm:$0xf]
  %v57 = vld [vmem:[%s1 + $0x78] sm:$0xf]
  %v58 = vld [vmem:[%s1 + $0x7c] sm:$0xf]
  %v59 = vld [vmem:[%s1 + $0x80] sm:$0xf]
  %v60 = vld [vmem:[%s1 + $0x84] sm:$0xf]
  %v61 = vld [vmem:[%s1 + $0x88] sm:$0xf]
  %v62 = vld [vmem:[%s1 + $0x8c] sm:$0xf]
  %v63 = vld [vmem:[%s1 + $0x90] sm:$0xf]
  %v64 = vld [vmem:[%s1 + $0x94] sm:$0xf]
  %v65 = vld [vmem:[%s1 + $0x98] sm:$0xf]
  %v66 = vld [vmem:[%s1 + $0x9c] sm:$0xf]
  %v67 = vld [vmem:[%s1 + $0xa0] sm:$0xf]
  %v68 = vld [vmem:[%s1 + $0xa4] sm:$0xf]
  %v69 = vld [vmem:[%s1 + $0xa8] sm:$0xf]
  %v70 = vld [vmem:[%s1 + $0xac] sm:$0xf]
  %v71 = vld [vmem:[%s1 + $0xb0] sm:$0xf]
  %v72 = vld [vmem:[%s1 + $0xb4] sm:$0xf]
  %v73 = vld [vmem:[%s1 + $0xb8] sm:$0xf]
  %v74 = vld [vmem:[%s1 + $0xbc] sm:$0xf]
  %v75 = vld [vmem:[%s1 + $0xc0] sm:$0xf]
  %v76 = vld [vmem:[%s1 + $0xc4] sm:$0xf]
  %v77 = vld [vmem:[%s1 + $0xc8] sm:$0xf]
  %v78 = vld [vmem:[%s1 + $0xcc] sm:$0xf]
  %v79 = vld [vmem:[%s1 + $0xd0] sm:$0xf]
  %v80 = vld [vmem:[%s1 + $0xd4] sm:$0xf]
  %v81 = vld [vmem:[%s1 + $0xd8] sm:$0xf]
  %v82 = vld [vmem:[%s1 + $0xdc] sm:$0xf]
  %v83 = vld [vmem:[%s1 + $0xe0] sm:$0xf]
  %v84 = vld [vmem:[%s1 + $0xe4] sm:$0xf]
  %v85 = vld [vmem:[%s1 + $0xe8] sm:$0xf]
  %v86 = vld [vmem:[%s1 + $0xec] sm:$0xf]
  %v87 = vld [vmem:[%s1 + $0xf0] sm:$0xf]
  %v88 = vld [vmem:[%s1 + $0xf4] sm:$0xf]
  %v89 = vld [vmem:[%s1 + $0xf8] sm:$0xf]
  %v90 = vld [vmem:[%s1 + $0xfc] sm:$0xf]
  %v91 = vld [vmem:[%s1 + $0x100] sm:$0xf]
  %v92 = vld [vmem:[%s1 + $0x104] sm:$0xf]
  %v93 = vld [vmem:[%s1 + $0x108] sm:$0xf]
  %v94 = vld [vmem:[%s1 + $0x10c] sm:$0xf]
  %v95 = vld [vmem:[%s1 + $0x110] sm:$0xf]
  %v96 = vld [vmem:[%s1 + $0x114] sm:$0xf]
  %v97 = vld [vmem:[%s1 + $0x118] sm:$0xf]
  %v98 = vld [vmem:[%s1 + $0x11c] sm:$0xf]
  %v99 = vld [vmem:[%s1 + $0x120] sm:$0xf]
  %v100 = vld [vmem:[%s1 + $0x124] sm:$0xf]
  %v101 = vld [vmem:[%s1 + $0x128] sm:$0xf]
  %v102 = vld [vmem:[%s1 + $0x12c] sm:$0xf]
  %v103 = vld [vmem:[%s1 + $0x130] sm:$0xf]
  %v104 = vld [vmem:[%s1 + $0x134] sm:$0xf]
  %v105 = vld [vmem:[%s1 + $0x138] sm:$0xf]
  %v106 = vld [vmem:[%s1 + $0x13c] sm:$0xf]
  %v107 = vld [vmem:[%s1 + $0x140] sm:$0xf]
  %v108 = vld [vmem:[%s1 + $0x144] sm:$0xf]
  %v109 = vld [vmem:[%s1 + $0x148] sm:$0xf]
  %v110 = vld [vmem:[%s1 + $0x14c] sm:$0xf]
  %v111 = vld [vmem:[%s1 + $0x150] sm:$0xf]
  %v112 = vld [vmem:[%s1 + $0x154] sm:$0xf]
  %v113 = vld [vmem:[%s1 + $0x158] sm:$0xf]
  %v114 = vld [vmem:[%s1 + $0x15c] sm:$0xf]
  %v115 = vld [vmem:[%s1 + $0x160] sm:$0xf]
  %v116 = vld [vmem:[%s1 + $0x164] sm:$0xf]
  %v117 = vld [vmem:[%s1 + $0x168] sm:$0xf]
  %v118 = vld [vmem:[%s1 + $0x16c] sm:$0xf]
  %v119 = vld [vmem:[%s1 + $0x170] sm:$0xf]
  %v120 = vld [vmem:[%s1 + $0x174] sm:$0xf]
  %v121 = vld [vmem:[%s1 + $0x178] sm:$0xf]
  %v122 = vld [vmem:[%s1 + $0x17c] sm:$0xf]
  %v123 = vld [vmem:[%s1 + $0x180] sm:$0xf]
  %v124 = vld [vmem:[%s1 + $0x184] sm:$0xf]
  %v125 = vld [vmem:[%s1 + $0x188] sm:$0xf]
  %v126 = vld [vmem:[%s1 + $0x18c] sm:$0xf]
  %v127 = vld [vmem:[%s1 + $0x190] sm:$0xf]
  %v128 = vld [vmem:[%s1 + $0x194] sm:$0xf]
  %v129 = vld [vmem:[%s1 + $0x198] sm:$0xf]
  %v130 = vld [vmem:[%s1 + $0x19c] sm:$0xf]
  %v131 = vld [vmem:[%s1 + $0x1a0] sm:$0xf]
  %v132 = vld [vmem:[%s1 + $0x1a4] sm:$0xf]
  %v133 = vld [vmem:[%s1 + $0x1a8] sm:$0xf]
  %v134 = vld [vmem:[%s1 + $0x1ac] sm:$0xf]
  %v135 = vld [vmem:[%s1 + $0x1b0] sm:$0xf]
  %v136 = vld [vmem:[%s1 + $0x1b4] sm:$0xf]
  %v137 = vld [vmem:[%s1 + $0x1b8] sm:$0xf]
  %v138 = vld [vmem:[%s1 + $0x1bc] sm:$0xf]
  %v139 = vld [vmem:[%s1 + $0x1c0] sm:$0xf]
  %v140 = vld [vmem:[%s1 + $0x1c4] sm:$0xf]
  %v141 = vld [vmem:[%s1 + $0x1c8] sm:$0xf]
  %v142 = vld [vmem:[%s1 + $0x1cc] sm:$0xf]
  %v143 = vld [vmem:[%s1 + $0x1d0] sm:$0xf]
  %v144 = vld [vmem:[%s1 + $0x1d4] sm:$0xf]
  %v145 = vld [vmem:[%s1 + $0x1d8] sm:$0xf]
  %v146 = vld [vmem:[%s1 + $0x1dc] sm:$0xf]
  %v147 = vld [vmem:[%s1 + $0x1e0] sm:$0xf]
  %v148 = vld [vmem:[%s1 + $0x1e4] sm:$0xf]
  %v149 = vld [vmem:[%s1 + $0x1e8] sm:$0xf]
  %v150 = vld [vmem:[%s1 + $0x1ec] sm:$0xf]
  %v151 = vld [vmem:[%s1 + $0x1f0] sm:$0xf]
  %v152 = vld [vmem:[%s1 + $0x1f4] sm:$0xf]
  %v153 = vld [vmem:[%s1 + $0x1f8] sm:$0xf]
  %v154 = vld [vmem:[%s1 + $0x1fc] sm:$0xf]
  %v155 = vld [vmem:[%s1 + $0x200] sm:$0xf]
  %v156 = vld [vmem:[%s1 + $0x204] sm:$0xf]
  %v157 = vld [vmem:[%s1 + $0x208] sm:$0xf]
  %v158 = vld [vmem:[%s1 + $0x20c] sm:$0xf]
  %v159 = vld [vmem:[%s1 + $0x210] sm:$0xf]
  %v160 = vld [vmem:[%s1 + $0x214] sm:$0xf]
  %v161 = vld [vmem:[%s1 + $0x218] sm:$0xf]
  %v162 = vld [vmem:[%s1 + $0x21c] sm:$0xf]
  %v163 = vld [vmem:[%s1 + $0x220] sm:$0xf]
  %v164 = vld [vmem:[%s1 + $0x224] sm:$0xf]
  %v165 = vld [vmem:[%s1 + $0x228] sm:$0xf]
  %v166 = vld [vmem:[%s1 + $0x22c] sm:$0xf]
  %v167 = vld [vmem:[%s1 + $0x230] sm:$0xf]
  %v168 = vld [vmem:[%s1 + $0x234] sm:$0xf]
  %v169 = vld [vmem:[%s1 + $0x238] sm:$0xf]
  %v170 = vld [vmem:[%s1 + $0x23c] sm:$0xf]
  %v171 = vld [vmem:[%s1 + $0x240] sm:$0xf]
  %v172 = vld [vmem:[%s1 + $0x244] sm:$0xf]
  %v173 = vld [vmem:[%s1 + $0x248] sm:$0xf]
  %v174 = vld [vmem:[%s1 + $0x24c] sm:$0xf]
  %v175 = vld [vmem:[%s1 + $0x250] sm:$0xf]
  %v176 = vld [vmem:[%s1 + $0x254] sm:$0xf]
  %v177 = vld [vmem:[%s1 + $0x258] sm:$0xf]
  %v178 = vld [vmem:[%s1 + $0x25c] sm:$0xf]
  %v179 = vld [vmem:[%s1 + $0x260] sm:$0xf]
  %v180 = vld [vmem:[%s1 + $0x264] sm:$0xf]
  %v181 = vld [vmem:[%s1 + $0x268] sm:$0xf]
  %v182 = vld [vmem:[%s1 + $0x26c] sm:$0xf]
  %v183 = vld [vmem:[%s1 + $0x270] sm:$0xf]
  %v184 = vld [vmem:[%s1 + $0x274] sm:$0xf]
  %v185 = vld [vmem:[%s1 + $0x278] sm:$0xf]
  %v186 = vld [vmem:[%s1 + $0x27c] sm:$0xf]
  %v187 = vld [vmem:[%s1 + $0x280] sm:$0xf]
  %v188 = vld [vmem:[%s1 + $0x284] sm:$0xf]
  %v189 = vld [vmem:[%s1 + $0x288] sm:$0xf]
  %v190 = vld [vmem:[%s1 + $0x28c] sm:$0xf]
  %v191 = vld [vmem:[%s1 + $0x290] sm:$0xf]
  %v192 = vld [vmem:[%s1 + $0x294] sm:$0xf]
  %v193 = vld [vmem:[%s1 + $0x298] sm:$0xf]
  %v194 = vld [vmem:[%s1 + $0x29c] sm:$0xf]
  %v195 = vld [vmem:[%s1 + $0x2a0] sm:$0xf]
  %v196 = vld [vmem:[%s1 + $0x2a4] sm:$0xf]
  %v197 = vld [vmem:[%s1 + $0x2a8] sm:$0xf]
  %v198 = vld [vmem:[%s1 + $0x2ac] sm:$0xf]
  %v199 = vld [vmem:[%s1 + $0x2b0] sm:$0xf]
  %v200 = vld [vmem:[%s1 + $0x2b4] sm:$0xf]
  %v201 = vld [vmem:[%s1 + $0x2b8] sm:$0xf]
  %v202 = vld [vmem:[%s1 + $0x2bc] sm:$0xf]
  %v203 = vld [vmem:[%s1 + $0x2c0] sm:$0xf]
  %v204 = vld [vmem:[%s1 + $0x2c4] sm:$0xf]
  %v205 = vld [vmem:[%s1 + $0x2c8] sm:$0xf]
  %v206 = vld [vmem:[%s1 + $0x2cc] sm:$0xf]
  %v207 = vld [vmem:[%s2] sm:$0x1]
  %v209 = vlaneseq
  %v210 = vshrl.u32 %v209, 7
  %v211 = vsub.s32 0, %v210
  %v212 = vrot.slane %v207, %v211
  %v220 = vunpack.c.l.b16 %v21
  %v221 = vunpack.c.h.b16 %v21
  %v222 = vunpack.c.l.b16 %v22
  %v223 = vunpack.c.h.b16 %v22
  %v224 = vunpack.c.l.b16 %v23
  %v225 = vunpack.c.h.b16 %v23
  %v226 = vunpack.c.l.b16 %v24
  %v227 = vunpack.c.h.b16 %v24
  %v228 = vunpack.c.l.b16 %v25
  %v229 = vunpack.c.h.b16 %v25
  %v230 = vunpack.c.l.b16 %v26
  %v231 = vunpack.c.h.b16 %v26
  %v232 = vpack.c.b16 %v220, %v220
  %v233 = vpack.c.b16 %v221, %v221
  %v234 = vpack.c.b16 %v222, %v222
  %v235 = vpack.c.b16 %v223, %v223
  %v236 = vpack.c.b16 %v224, %v224
  %v237 = vpack.c.b16 %v225, %v225
  %v238 = vpack.c.b16 %v226, %v226
  %v239 = vpack.c.b16 %v227, %v227
  %v240 = vpack.c.b16 %v228, %v228
  %v241 = vpack.c.b16 %v229, %v229
  %v242 = vpack.c.b16 %v230, %v230
  %v243 = vpack.c.b16 %v231, %v231
  %v435 = vunpack.c.l.b16 %v27
  %v436 = vunpack.c.l.b16 %v28
  %v437 = vunpack.c.l.b16 %v29
  %v438 = vunpack.c.l.b16 %v30
  %v439 = vunpack.c.l.b16 %v31
  %v440 = vunpack.c.l.b16 %v32
  %v441 = vunpack.c.l.b16 %v33
  %v442 = vunpack.c.l.b16 %v34
  %v443 = vunpack.c.l.b16 %v35
  %v444 = vunpack.c.l.b16 %v36
  %v445 = vunpack.c.l.b16 %v37
  %v446 = vunpack.c.l.b16 %v38
  %v447 = vunpack.c.l.b16 %v39
  %v448 = vunpack.c.l.b16 %v40
  %v449 = vunpack.c.l.b16 %v41
  %v450 = vunpack.c.l.b16 %v42
  %v451 = vunpack.c.l.b16 %v43
  %v452 = vunpack.c.l.b16 %v44
  %v453 = vunpack.c.l.b16 %v45
  %v454 = vunpack.c.l.b16 %v46
  %v455 = vunpack.c.l.b16 %v47
  %v456 = vunpack.c.l.b16 %v48
  %v457 = vunpack.c.l.b16 %v49
  %v458 = vunpack.c.l.b16 %v50
  %v459 = vunpack.c.l.b16 %v51
  %v460 = vunpack.c.l.b16 %v52
  %v461 = vunpack.c.l.b16 %v53
  %v462 = vunpack.c.l.b16 %v54
  %v463 = vunpack.c.l.b16 %v55
  %v464 = vunpack.c.l.b16 %v56
  %v465 = vunpack.c.l.b16 %v57
  %v466 = vunpack.c.l.b16 %v58
  %v467 = vunpack.c.l.b16 %v59
  %v468 = vunpack.c.l.b16 %v60
  %v469 = vunpack.c.l.b16 %v61
  %v470 = vunpack.c.l.b16 %v62
  %v471 = vunpack.c.l.b16 %v63
  %v472 = vunpack.c.l.b16 %v64
  %v473 = vunpack.c.l.b16 %v65
  %v474 = vunpack.c.l.b16 %v66
  %v475 = vunpack.c.l.b16 %v67
  %v476 = vunpack.c.l.b16 %v68
  %v477 = vunpack.c.l.b16 %v69
  %v478 = vunpack.c.l.b16 %v70
  %v479 = vunpack.c.l.b16 %v71
  %v480 = vunpack.c.l.b16 %v72
  %v481 = vunpack.c.l.b16 %v73
  %v482 = vunpack.c.l.b16 %v74
  %v483 = vunpack.c.l.b16 %v75
  %v484 = vunpack.c.l.b16 %v76
  %v485 = vunpack.c.l.b16 %v77
  %v486 = vunpack.c.l.b16 %v78
  %v487 = vunpack.c.l.b16 %v79
  %v488 = vunpack.c.l.b16 %v80
  %v489 = vunpack.c.l.b16 %v81
  %v490 = vunpack.c.l.b16 %v82
  %v491 = vunpack.c.l.b16 %v83
  %v492 = vunpack.c.l.b16 %v84
  %v493 = vunpack.c.l.b16 %v85
  %v494 = vunpack.c.l.b16 %v86
  %v495 = vunpack.c.l.b16 %v87
  %v496 = vunpack.c.l.b16 %v88
  %v497 = vunpack.c.l.b16 %v89
  %v498 = vunpack.c.l.b16 %v90
  %v499 = vunpack.c.l.b16 %v91
  %v500 = vunpack.c.l.b16 %v92
  %v501 = vunpack.c.l.b16 %v93
  %v502 = vunpack.c.l.b16 %v94
  %v503 = vunpack.c.l.b16 %v95
  %v504 = vunpack.c.l.b16 %v96
  %v505 = vunpack.c.l.b16 %v97
  %v506 = vunpack.c.l.b16 %v98
  %v507 = vunpack.c.l.b16 %v99
  %v508 = vunpack.c.l.b16 %v100
  %v509 = vunpack.c.l.b16 %v101
  %v510 = vunpack.c.l.b16 %v102
  %v511 = vunpack.c.l.b16 %v103
  %v512 = vunpack.c.l.b16 %v104
  %v513 = vunpack.c.l.b16 %v105
  %v514 = vunpack.c.l.b16 %v106
  %v515 = vunpack.c.l.b16 %v107
  %v516 = vunpack.c.l.b16 %v108
  %v517 = vunpack.c.l.b16 %v109
  %v518 = vunpack.c.l.b16 %v110
  %v519 = vunpack.c.l.b16 %v111
  %v520 = vunpack.c.l.b16 %v112
  %v521 = vunpack.c.l.b16 %v113
  %v522 = vunpack.c.l.b16 %v114
  %v523 = vunpack.c.l.b16 %v115
  %v524 = vunpack.c.l.b16 %v116
  %v525 = vunpack.c.l.b16 %v117
  %v526 = vunpack.c.l.b16 %v118
  %v527 = vunpack.c.l.b16 %v119
  %v528 = vunpack.c.l.b16 %v120
  %v529 = vunpack.c.l.b16 %v121
  %v530 = vunpack.c.l.b16 %v122
  %v531 = vunpack.c.l.b16 %v123
  %v532 = vunpack.c.l.b16 %v124
  %v533 = vunpack.c.l.b16 %v125
  %v534 = vunpack.c.l.b16 %v126
  %v535 = vunpack.c.l.b16 %v127
  %v536 = vunpack.c.l.b16 %v128
  %v537 = vunpack.c.l.b16 %v129
  %v538 = vunpack.c.l.b16 %v130
  %v539 = vunpack.c.l.b16 %v131
  %v540 = vunpack.c.l.b16 %v132
  %v541 = vunpack.c.l.b16 %v133
  %v542 = vunpack.c.l.b16 %v134
  %v543 = vunpack.c.l.b16 %v135
  %v544 = vunpack.c.l.b16 %v136
  %v545 = vunpack.c.l.b16 %v137
  %v546 = vunpack.c.l.b16 %v138
  %v547 = vunpack.c.l.b16 %v139
  %v548 = vunpack.c.l.b16 %v140
  %v549 = vunpack.c.l.b16 %v141
  %v550 = vunpack.c.l.b16 %v142
  %v551 = vunpack.c.l.b16 %v143
  %v552 = vunpack.c.l.b16 %v144
  %v553 = vunpack.c.l.b16 %v145
  %v554 = vunpack.c.l.b16 %v146
  %v555 = vunpack.c.l.b16 %v147
  %v556 = vunpack.c.l.b16 %v148
  %v557 = vunpack.c.l.b16 %v149
  %v558 = vunpack.c.l.b16 %v150
  %v559 = vunpack.c.l.b16 %v151
  %v560 = vunpack.c.l.b16 %v152
  %v561 = vunpack.c.l.b16 %v153
  %v562 = vunpack.c.l.b16 %v154
  %v563 = vunpack.c.l.b16 %v155
  %v564 = vunpack.c.l.b16 %v156
  %v565 = vunpack.c.l.b16 %v157
  %v566 = vunpack.c.l.b16 %v158
  %v567 = vunpack.c.l.b16 %v159
  %v568 = vunpack.c.l.b16 %v160
  %v569 = vunpack.c.l.b16 %v161
  %v570 = vunpack.c.l.b16 %v162
  %v571 = vunpack.c.l.b16 %v163
  %v572 = vunpack.c.l.b16 %v164
  %v573 = vunpack.c.l.b16 %v165
  %v574 = vunpack.c.l.b16 %v166
  %v575 = vunpack.c.l.b16 %v167
  %v576 = vunpack.c.l.b16 %v168
  %v577 = vunpack.c.l.b16 %v169
  %v578 = vunpack.c.l.b16 %v170
  %v579 = vunpack.c.l.b16 %v171
  %v580 = vunpack.c.l.b16 %v172
  %v581 = vunpack.c.l.b16 %v173
  %v582 = vunpack.c.l.b16 %v174
  %v583 = vunpack.c.l.b16 %v175
  %v584 = vunpack.c.l.b16 %v176
  %v585 = vunpack.c.l.b16 %v177
  %v586 = vunpack.c.l.b16 %v178
  %v587 = vunpack.c.l.b16 %v179
  %v588 = vunpack.c.l.b16 %v180
  %v589 = vunpack.c.l.b16 %v181
  %v590 = vunpack.c.l.b16 %v182
  %v591 = vunpack.c.l.b16 %v183
  %v592 = vunpack.c.l.b16 %v184
  %v593 = vunpack.c.l.b16 %v185
  %v594 = vunpack.c.l.b16 %v186
  %v595 = vunpack.c.l.b16 %v187
  %v596 = vunpack.c.l.b16 %v188
  %v597 = vunpack.c.l.b16 %v189
  %v598 = vunpack.c.l.b16 %v190
  %v599 = vunpack.c.l.b16 %v191
  %v600 = vunpack.c.l.b16 %v192
  %v601 = vunpack.c.l.b16 %v193
  %v602 = vunpack.c.l.b16 %v194
  %v603 = vunpack.c.l.b16 %v195
  %v604 = vunpack.c.l.b16 %v196
  %v605 = vunpack.c.l.b16 %v197
  %v606 = vunpack.c.l.b16 %v198
  %v607 = vunpack.c.l.b16 %v199
  %v608 = vunpack.c.l.b16 %v200
  %v609 = vunpack.c.l.b16 %v201
  %v610 = vunpack.c.l.b16 %v202
  %v611 = vunpack.c.l.b16 %v203
  %v612 = vunpack.c.l.b16 %v204
  %v613 = vunpack.c.l.b16 %v205
  %v614 = vunpack.c.l.b16 %v206
  %v615 = vpack.c.b16 %v436, %v435
  %v616 = vpack.c.b16 %v438, %v437
  %v617 = vpack.c.b16 %v440, %v439
  %v618 = vpack.c.b16 %v442, %v441
  %v619 = vpack.c.b16 %v444, %v443
  %v620 = vpack.c.b16 %v446, %v445
  %v621 = vpack.c.b16 %v448, %v447
  %v622 = vpack.c.b16 %v450, %v449
  %v623 = vpack.c.b16 %v452, %v451
  %v624 = vpack.c.b16 %v454, %v453
  %v625 = vpack.c.b16 %v456, %v455
  %v626 = vpack.c.b16 %v458, %v457
  %v627 = vpack.c.b16 %v460, %v459
  %v628 = vpack.c.b16 %v462, %v461
  %v629 = vpack.c.b16 %v464, %v463
  %v630 = vpack.c.b16 %v466, %v465
  %v631 = vpack.c.b16 %v468, %v467
  %v632 = vpack.c.b16 %v470, %v469
  %v633 = vpack.c.b16 %v472, %v471
  %v634 = vpack.c.b16 %v474, %v473
  %v635 = vpack.c.b16 %v476, %v475
  %v636 = vpack.c.b16 %v478, %v477
  %v637 = vpack.c.b16 %v480, %v479
  %v638 = vpack.c.b16 %v482, %v481
  %v639 = vpack.c.b16 %v484, %v483
  %v640 = vpack.c.b16 %v486, %v485
  %v641 = vpack.c.b16 %v488, %v487
  %v642 = vpack.c.b16 %v490, %v489
  %v643 = vpack.c.b16 %v492, %v491
  %v644 = vpack.c.b16 %v494, %v493
  %v645 = vpack.c.b16 %v496, %v495
  %v646 = vpack.c.b16 %v498, %v497
  %v647 = vpack.c.b16 %v500, %v499
  %v648 = vpack.c.b16 %v502, %v501
  %v649 = vpack.c.b16 %v504, %v503
  %v650 = vpack.c.b16 %v506, %v505
  %v651 = vpack.c.b16 %v508, %v507
  %v652 = vpack.c.b16 %v510, %v509
  %v653 = vpack.c.b16 %v512, %v511
  %v654 = vpack.c.b16 %v514, %v513
  %v655 = vpack.c.b16 %v516, %v515
  %v656 = vpack.c.b16 %v518, %v517
  %v657 = vpack.c.b16 %v520, %v519
  %v658 = vpack.c.b16 %v522, %v521
  %v659 = vpack.c.b16 %v524, %v523
  %v660 = vpack.c.b16 %v526, %v525
  %v661 = vpack.c.b16 %v528, %v527
  %v662 = vpack.c.b16 %v530, %v529
  %v663 = vpack.c.b16 %v532, %v531
  %v664 = vpack.c.b16 %v534, %v533
  %v665 = vpack.c.b16 %v536, %v535
  %v666 = vpack.c.b16 %v538, %v537
  %v667 = vpack.c.b16 %v540, %v539
  %v668 = vpack.c.b16 %v542, %v541
  %v669 = vpack.c.b16 %v544, %v543
  %v670 = vpack.c.b16 %v546, %v545
  %v671 = vpack.c.b16 %v548, %v547
  %v672 = vpack.c.b16 %v550, %v549
  %v673 = vpack.c.b16 %v552, %v551
  %v674 = vpack.c.b16 %v554, %v553
  %v675 = vpack.c.b16 %v556, %v555
  %v676 = vpack.c.b16 %v558, %v557
  %v677 = vpack.c.b16 %v560, %v559
  %v678 = vpack.c.b16 %v562, %v561
  %v679 = vpack.c.b16 %v564, %v563
  %v680 = vpack.c.b16 %v566, %v565
  %v681 = vpack.c.b16 %v568, %v567
  %v682 = vpack.c.b16 %v570, %v569
  %v683 = vpack.c.b16 %v572, %v571
  %v684 = vpack.c.b16 %v574, %v573
  %v685 = vpack.c.b16 %v576, %v575
  %v686 = vpack.c.b16 %v578, %v577
  %v687 = vpack.c.b16 %v580, %v579
  %v688 = vpack.c.b16 %v582, %v581
  %v689 = vpack.c.b16 %v584, %v583
  %v690 = vpack.c.b16 %v586, %v585
  %v691 = vpack.c.b16 %v588, %v587
  %v692 = vpack.c.b16 %v590, %v589
  %v693 = vpack.c.b16 %v592, %v591
  %v694 = vpack.c.b16 %v594, %v593
  %v695 = vpack.c.b16 %v596, %v595
  %v696 = vpack.c.b16 %v598, %v597
  %v697 = vpack.c.b16 %v600, %v599
  %v698 = vpack.c.b16 %v602, %v601
  %v699 = vpack.c.b16 %v604, %v603
  %v700 = vpack.c.b16 %v606, %v605
  %v701 = vpack.c.b16 %v608, %v607
  %v702 = vpack.c.b16 %v610, %v609
  %v703 = vpack.c.b16 %v612, %v611
  %v704 = vpack.c.b16 %v614, %v613
  %vm795 = vcmask 261120
  %v797 = vsel %vm795, %v243, 0
  %799 = vmatprep.subr.bf16.mxu0 0
  %800 = vmatpush1.bf16.msra.mxu0 %v615
  %801 = vmatprep.subr.bf16.mxu0 0
  %802 = vmatpush1.bf16.msra.mxu0 %v616
  %803 = vmatprep.subr.bf16.mxu0 0
  %804 = vmatpush1.bf16.msra.mxu0 %v617
  %805 = vmatprep.subr.bf16.mxu0 0
  %806 = vmatpush1.bf16.msra.mxu0 %v618
  %807 = vmatprep.subr.bf16.mxu0 0
  %808 = vmatpush1.bf16.msra.mxu0 %v619
  %809 = vmatprep.subr.bf16.mxu0 0
  %810 = vmatpush1.bf16.msra.mxu0 %v620
  %811 = vmatprep.subr.bf16.mxu0 0
  %812 = vmatpush1.bf16.msra.mxu0 %v621
  %813 = vmatprep.subr.bf16.mxu0 0
  %814 = vmatpush1.bf16.msra.mxu0 %v622
  %815 = vmatprep.subr.bf16.mxu0 0
  %816 = vmatpush1.bf16.msra.mxu0 %v623
  %817 = vmatprep.subr.bf16.mxu0 0
  %818 = vmatpush1.bf16.msra.mxu0 %v624
  %819 = vmatprep.subr.bf16.mxu0 0
  %820 = vmatpush1.bf16.msra.mxu0 %v625
  %821 = vmatprep.subr.bf16.mxu0 0
  %822 = vmatpush1.bf16.msra.mxu0 %v626
  %823 = vmatprep.subr.bf16.mxu0 0
  %824 = vmatpush1.bf16.msra.mxu0 %v627
  %825 = vmatprep.subr.bf16.mxu0 0
  %826 = vmatpush1.bf16.msra.mxu0 %v628
  %827 = vmatprep.subr.bf16.mxu0 0
  %828 = vmatpush1.bf16.msra.mxu0 %v629
  %829 = vmatprep.subr.bf16.mxu0 0
  %830 = vmatpush1.bf16.msra.mxu0 %v630
  %831 = vmatprep.mubr.bf16.mxu0 %v233
  %832 = vmatmul.mubr.bf16.gmra.mrb[0].mxu0 %v232
  %v833 = vpop.f32.mrb[0].mxu0
  %v834 = vadd.f32 %v212, %v833
  %v835 = vpop.f32.mrb[0].mxu0
  %v836 = vpop.f32.mrb[0].mxu0
  %v837 = vpop.f32.mrb[0].mxu0
  %838 = vdwg.mxu0
  %839 = vmatprep.subr.bf16.mxu0 0
  %840 = vmatpush1.bf16.msra.mxu0 %v631
  %841 = vmatprep.subr.bf16.mxu0 0
  %842 = vmatpush1.bf16.msra.mxu0 %v632
  %843 = vmatprep.subr.bf16.mxu0 0
  %844 = vmatpush1.bf16.msra.mxu0 %v633
  %845 = vmatprep.subr.bf16.mxu0 0
  %846 = vmatpush1.bf16.msra.mxu0 %v634
  %847 = vmatprep.subr.bf16.mxu0 0
  %848 = vmatpush1.bf16.msra.mxu0 %v635
  %849 = vmatprep.subr.bf16.mxu0 0
  %850 = vmatpush1.bf16.msra.mxu0 %v636
  %851 = vmatprep.subr.bf16.mxu0 0
  %852 = vmatpush1.bf16.msra.mxu0 %v637
  %853 = vmatprep.subr.bf16.mxu0 0
  %854 = vmatpush1.bf16.msra.mxu0 %v638
  %855 = vmatprep.subr.bf16.mxu0 0
  %856 = vmatpush1.bf16.msra.mxu0 %v639
  %857 = vmatprep.subr.bf16.mxu0 0
  %858 = vmatpush1.bf16.msra.mxu0 %v640
  %859 = vmatprep.subr.bf16.mxu0 0
  %860 = vmatpush1.bf16.msra.mxu0 %v641
  %861 = vmatprep.subr.bf16.mxu0 0
  %862 = vmatpush1.bf16.msra.mxu0 %v642
  %863 = vmatprep.subr.bf16.mxu0 0
  %864 = vmatpush1.bf16.msra.mxu0 %v643
  %865 = vmatprep.subr.bf16.mxu0 0
  %866 = vmatpush1.bf16.msra.mxu0 %v644
  %867 = vmatprep.subr.bf16.mxu0 0
  %868 = vmatpush1.bf16.msra.mxu0 %v645
  %869 = vmatprep.subr.bf16.mxu0 0
  %870 = vmatpush1.bf16.msra.mxu0 %v646
  %871 = vmatprep.mubr.bf16.mxu0 %v235
  %872 = vmatmul.mubr.bf16.gmra.mrb[0].mxu0 %v234
  %v873 = vpop.f32.mrb[0].mxu0
  %v874 = vadd.f32 %v834, %v873
  %v875 = vpop.f32.mrb[0].mxu0
  %v876 = vpop.f32.mrb[0].mxu0
  %v877 = vpop.f32.mrb[0].mxu0
  %878 = vdwg.mxu0
  %879 = vmatprep.subr.bf16.mxu0 0
  %880 = vmatpush1.bf16.msra.mxu0 %v647
  %881 = vmatprep.subr.bf16.mxu0 0
  %882 = vmatpush1.bf16.msra.mxu0 %v648
  %883 = vmatprep.subr.bf16.mxu0 0
  %884 = vmatpush1.bf16.msra.mxu0 %v649
  %885 = vmatprep.subr.bf16.mxu0 0
  %886 = vmatpush1.bf16.msra.mxu0 %v650
  %887 = vmatprep.subr.bf16.mxu0 0
  %888 = vmatpush1.bf16.msra.mxu0 %v651
  %889 = vmatprep.subr.bf16.mxu0 0
  %890 = vmatpush1.bf16.msra.mxu0 %v652
  %891 = vmatprep.subr.bf16.mxu0 0
  %892 = vmatpush1.bf16.msra.mxu0 %v653
  %893 = vmatprep.subr.bf16.mxu0 0
  %894 = vmatpush1.bf16.msra.mxu0 %v654
  %895 = vmatprep.subr.bf16.mxu0 0
  %896 = vmatpush1.bf16.msra.mxu0 %v655
  %897 = vmatprep.subr.bf16.mxu0 0
  %898 = vmatpush1.bf16.msra.mxu0 %v656
  %899 = vmatprep.subr.bf16.mxu0 0
  %900 = vmatpush1.bf16.msra.mxu0 %v657
  %901 = vmatprep.subr.bf16.mxu0 0
  %902 = vmatpush1.bf16.msra.mxu0 %v658
  %903 = vmatprep.subr.bf16.mxu0 0
  %904 = vmatpush1.bf16.msra.mxu0 %v659
  %905 = vmatprep.subr.bf16.mxu0 0
  %906 = vmatpush1.bf16.msra.mxu0 %v660
  %907 = vmatprep.subr.bf16.mxu0 0
  %908 = vmatpush1.bf16.msra.mxu0 %v661
  %909 = vmatprep.subr.bf16.mxu0 0
  %910 = vmatpush1.bf16.msra.mxu0 %v662
  %911 = vmatprep.mubr.bf16.mxu0 %v237
  %912 = vmatmul.mubr.bf16.gmra.mrb[0].mxu0 %v236
  %v913 = vpop.f32.mrb[0].mxu0
  %v914 = vadd.f32 %v874, %v913
  %v915 = vpop.f32.mrb[0].mxu0
  %v916 = vpop.f32.mrb[0].mxu0
  %v917 = vpop.f32.mrb[0].mxu0
  %918 = vdwg.mxu0
  %919 = vmatprep.subr.bf16.mxu0 0
  %920 = vmatpush1.bf16.msra.mxu0 %v663
  %921 = vmatprep.subr.bf16.mxu0 0
  %922 = vmatpush1.bf16.msra.mxu0 %v664
  %923 = vmatprep.subr.bf16.mxu0 0
  %924 = vmatpush1.bf16.msra.mxu0 %v665
  %925 = vmatprep.subr.bf16.mxu0 0
  %926 = vmatpush1.bf16.msra.mxu0 %v666
  %927 = vmatprep.subr.bf16.mxu0 0
  %928 = vmatpush1.bf16.msra.mxu0 %v667
  %929 = vmatprep.subr.bf16.mxu0 0
  %930 = vmatpush1.bf16.msra.mxu0 %v668
  %931 = vmatprep.subr.bf16.mxu0 0
  %932 = vmatpush1.bf16.msra.mxu0 %v669
  %933 = vmatprep.subr.bf16.mxu0 0
  %934 = vmatpush1.bf16.msra.mxu0 %v670
  %935 = vmatprep.subr.bf16.mxu0 0
  %936 = vmatpush1.bf16.msra.mxu0 %v671
  %937 = vmatprep.subr.bf16.mxu0 0
  %938 = vmatpush1.bf16.msra.mxu0 %v672
  %939 = vmatprep.subr.bf16.mxu0 0
  %940 = vmatpush1.bf16.msra.mxu0 %v673
  %941 = vmatprep.subr.bf16.mxu0 0
  %942 = vmatpush1.bf16.msra.mxu0 %v674
  %943 = vmatprep.subr.bf16.mxu0 0
  %944 = vmatpush1.bf16.msra.mxu0 %v675
  %945 = vmatprep.subr.bf16.mxu0 0
  %946 = vmatpush1.bf16.msra.mxu0 %v676
  %947 = vmatprep.subr.bf16.mxu0 0
  %948 = vmatpush1.bf16.msra.mxu0 %v677
  %949 = vmatprep.subr.bf16.mxu0 0
  %950 = vmatpush1.bf16.msra.mxu0 %v678
  %951 = vmatprep.mubr.bf16.mxu0 %v239
  %952 = vmatmul.mubr.bf16.gmra.mrb[0].mxu0 %v238
  %v953 = vpop.f32.mrb[0].mxu0
  %v954 = vadd.f32 %v914, %v953
  %v955 = vpop.f32.mrb[0].mxu0
  %v956 = vpop.f32.mrb[0].mxu0
  %v957 = vpop.f32.mrb[0].mxu0
  %958 = vdwg.mxu0
  %959 = vmatprep.subr.bf16.mxu0 0
  %960 = vmatpush1.bf16.msra.mxu0 %v679
  %961 = vmatprep.subr.bf16.mxu0 0
  %962 = vmatpush1.bf16.msra.mxu0 %v680
  %963 = vmatprep.subr.bf16.mxu0 0
  %964 = vmatpush1.bf16.msra.mxu0 %v681
  %965 = vmatprep.subr.bf16.mxu0 0
  %966 = vmatpush1.bf16.msra.mxu0 %v682
  %967 = vmatprep.subr.bf16.mxu0 0
  %968 = vmatpush1.bf16.msra.mxu0 %v683
  %969 = vmatprep.subr.bf16.mxu0 0
  %970 = vmatpush1.bf16.msra.mxu0 %v684
  %971 = vmatprep.subr.bf16.mxu0 0
  %972 = vmatpush1.bf16.msra.mxu0 %v685
  %973 = vmatprep.subr.bf16.mxu0 0
  %974 = vmatpush1.bf16.msra.mxu0 %v686
  %975 = vmatprep.subr.bf16.mxu0 0
  %976 = vmatpush1.bf16.msra.mxu0 %v687
  %977 = vmatprep.subr.bf16.mxu0 0
  %978 = vmatpush1.bf16.msra.mxu0 %v688
  %979 = vmatprep.subr.bf16.mxu0 0
  %980 = vmatpush1.bf16.msra.mxu0 %v689
  %981 = vmatprep.subr.bf16.mxu0 0
  %982 = vmatpush1.bf16.msra.mxu0 %v690
  %983 = vmatprep.subr.bf16.mxu0 0
  %984 = vmatpush1.bf16.msra.mxu0 %v691
  %985 = vmatprep.subr.bf16.mxu0 0
  %986 = vmatpush1.bf16.msra.mxu0 %v692
  %987 = vmatprep.subr.bf16.mxu0 0
  %988 = vmatpush1.bf16.msra.mxu0 %v693
  %989 = vmatprep.subr.bf16.mxu0 0
  %990 = vmatpush1.bf16.msra.mxu0 %v694
  %991 = vmatprep.mubr.bf16.mxu0 %v241
  %992 = vmatmul.mubr.bf16.gmra.mrb[0].mxu0 %v240
  %v993 = vpop.f32.mrb[0].mxu0
  %v994 = vadd.f32 %v954, %v993
  %v995 = vpop.f32.mrb[0].mxu0
  %v996 = vpop.f32.mrb[0].mxu0
  %v997 = vpop.f32.mrb[0].mxu0
  %998 = vdwg.mxu0
  %999 = vmatprep.subr.bf16.mxu0 0
  %1000 = vmatpush1.bf16.msra.mxu0 %v695
  %1001 = vmatprep.subr.bf16.mxu0 0
  %1002 = vmatpush1.bf16.msra.mxu0 %v696
  %1003 = vmatprep.subr.bf16.mxu0 0
  %1004 = vmatpush1.bf16.msra.mxu0 %v697
  %1005 = vmatprep.subr.bf16.mxu0 0
  %1006 = vmatpush1.bf16.msra.mxu0 %v698
  %1007 = vmatprep.subr.bf16.mxu0 0
  %1008 = vmatpush1.bf16.msra.mxu0 %v699
  %1009 = vmatprep.subr.bf16.mxu0 0
  %1010 = vmatpush1.bf16.msra.mxu0 %v700
  %1011 = vmatprep.subr.bf16.mxu0 0
  %1012 = vmatpush1.bf16.msra.mxu0 %v701
  %1013 = vmatprep.subr.bf16.mxu0 0
  %1014 = vmatpush1.bf16.msra.mxu0 %v702
  %1015 = vmatprep.subr.bf16.mxu0 0
  %1016 = vmatpush1.bf16.msra.mxu0 %v703
  %1017 = vmatprep.subr.bf16.mxu0 0
  %1018 = vmatpush1.bf16.msra.mxu0 %v704
  %1019 = vmatprep.subr.bf16.mxu0 0
  %1020 = vmatpush1.bf16.msra.mxu0 0
  %1021 = vmatprep.subr.bf16.mxu0 0
  %1022 = vmatpush1.bf16.msra.mxu0 0
  %1023 = vmatprep.subr.bf16.mxu0 0
  %1024 = vmatpush1.bf16.msra.mxu0 0
  %1025 = vmatprep.subr.bf16.mxu0 0
  %1026 = vmatpush1.bf16.msra.mxu0 0
  %1027 = vmatprep.subr.bf16.mxu0 0
  %1028 = vmatpush1.bf16.msra.mxu0 0
  %1029 = vmatprep.subr.bf16.mxu0 0
  %1030 = vmatpush1.bf16.msra.mxu0 0
  %1031 = vmatprep.mubr.bf16.mxu0 %v797
  %1032 = vmatmul.mubr.bf16.gmra.mrb[0].mxu0 %v242
  %v1033 = vpop.f32.mrb[0].mxu0
  %v1034 = vadd.f32 %v994, %v1033
  %v1035 = vpop.f32.mrb[0].mxu0
  %v1036 = vpop.f32.mrb[0].mxu0
  %v1037 = vpop.f32.mrb[0].mxu0
  %1038 = vdwg.mxu0
  %v1039 = vmax.f32 %v1034, 0.0
  %v1040 = vpack.c.bf16 %v1039, %v1039
  %v1041 = vld [vmem:[%s3] sm:$0xf]
  %v1042 = vld [vmem:[%s3 + $0x4] sm:$0xf]
  %v1043 = vld [vmem:[%s3 + $0x8] sm:$0xf]
  %v1044 = vld [vmem:[%s3 + $0xc] sm:$0xf]
  %v1045 = vld [vmem:[%s3 + $0x10] sm:$0xf]
  %v1046 = vld [vmem:[%s3 + $0x14] sm:$0xf]
  %v1047 = vld [vmem:[%s3 + $0x18] sm:$0xf]
  %v1048 = vld [vmem:[%s3 + $0x1c] sm:$0xf]
  %v1049 = vld [vmem:[%s3 + $0x20] sm:$0xf]
  %v1050 = vld [vmem:[%s3 + $0x24] sm:$0xf]
  %v1051 = vld [vmem:[%s3 + $0x28] sm:$0xf]
  %v1052 = vld [vmem:[%s3 + $0x2c] sm:$0xf]
  %v1053 = vld [vmem:[%s3 + $0x30] sm:$0xf]
  %v1054 = vld [vmem:[%s3 + $0x34] sm:$0xf]
  %v1055 = vld [vmem:[%s3 + $0x38] sm:$0xf]
  %v1056 = vld [vmem:[%s3 + $0x3c] sm:$0xf]
  %v1057 = vld [vmem:[%s4] sm:$0x1]
  %v1059 = vlaneseq
  %v1060 = vshrl.u32 %v1059, 7
  %v1061 = vsub.s32 0, %v1060
  %v1062 = vrot.slane %v1057, %v1061
  %v1080 = vunpack.c.l.b16 %v1041
  %v1081 = vunpack.c.l.b16 %v1042
  %v1082 = vunpack.c.l.b16 %v1043
  %v1083 = vunpack.c.l.b16 %v1044
  %v1084 = vunpack.c.l.b16 %v1045
  %v1085 = vunpack.c.l.b16 %v1046
  %v1086 = vunpack.c.l.b16 %v1047
  %v1087 = vunpack.c.l.b16 %v1048
  %v1088 = vunpack.c.l.b16 %v1049
  %v1089 = vunpack.c.l.b16 %v1050
  %v1090 = vunpack.c.l.b16 %v1051
  %v1091 = vunpack.c.l.b16 %v1052
  %v1092 = vunpack.c.l.b16 %v1053
  %v1093 = vunpack.c.l.b16 %v1054
  %v1094 = vunpack.c.l.b16 %v1055
  %v1095 = vunpack.c.l.b16 %v1056
  %v1096 = vpack.c.b16 %v1081, %v1080
  %v1097 = vpack.c.b16 %v1083, %v1082
  %v1098 = vpack.c.b16 %v1085, %v1084
  %v1099 = vpack.c.b16 %v1087, %v1086
  %v1100 = vpack.c.b16 %v1089, %v1088
  %v1101 = vpack.c.b16 %v1091, %v1090
  %v1102 = vpack.c.b16 %v1093, %v1092
  %v1103 = vpack.c.b16 %v1095, %v1094
  %1112 = vmatprep.subr.bf16.mxu0 0
  %1113 = vmatpush1.bf16.msra.mxu0 %v1096
  %1114 = vmatprep.subr.bf16.mxu0 0
  %1115 = vmatpush1.bf16.msra.mxu0 %v1097
  %1116 = vmatprep.subr.bf16.mxu0 0
  %1117 = vmatpush1.bf16.msra.mxu0 %v1098
  %1118 = vmatprep.subr.bf16.mxu0 0
  %1119 = vmatpush1.bf16.msra.mxu0 %v1099
  %1120 = vmatprep.subr.bf16.mxu0 0
  %1121 = vmatpush1.bf16.msra.mxu0 %v1100
  %1122 = vmatprep.subr.bf16.mxu0 0
  %1123 = vmatpush1.bf16.msra.mxu0 %v1101
  %1124 = vmatprep.subr.bf16.mxu0 0
  %1125 = vmatpush1.bf16.msra.mxu0 %v1102
  %1126 = vmatprep.subr.bf16.mxu0 0
  %1127 = vmatpush1.bf16.msra.mxu0 %v1103
  %1128 = vmatprep.subr.bf16.mxu0 0
  %1129 = vmatpush1.bf16.msra.mxu0 0
  %1130 = vmatprep.subr.bf16.mxu0 0
  %1131 = vmatpush1.bf16.msra.mxu0 0
  %1132 = vmatprep.subr.bf16.mxu0 0
  %1133 = vmatpush1.bf16.msra.mxu0 0
  %1134 = vmatprep.subr.bf16.mxu0 0
  %1135 = vmatpush1.bf16.msra.mxu0 0
  %1136 = vmatprep.subr.bf16.mxu0 0
  %1137 = vmatpush1.bf16.msra.mxu0 0
  %1138 = vmatprep.subr.bf16.mxu0 0
  %1139 = vmatpush1.bf16.msra.mxu0 0
  %1140 = vmatprep.subr.bf16.mxu0 0
  %1141 = vmatpush1.bf16.msra.mxu0 0
  %1142 = vmatprep.subr.bf16.mxu0 0
  %1143 = vmatpush1.bf16.msra.mxu0 0
  %1144 = vmatprep.mubr.bf16.mxu0 0
  %1145 = vmatmul.mubr.bf16.gmra.mrb[0].mxu0 %v1040
  %v1146 = vpop.f32.mrb[0].mxu0
  %v1147 = vadd.f32 %v1062, %v1146
  %v1148 = vpop.f32.mrb[0].mxu0
  %v1149 = vpop.f32.mrb[0].mxu0
  %v1150 = vpop.f32.mrb[0].mxu0
  %1151 = vdwg.mxu0
  %1152 = vst [vmem:[%s5] sm:$0xff] %v1147
  // Predicated region
  $region22: #{net_forward.9} parent=0 // pred_check
    _
  $region23: #{net_forward.9} parent=0 // pred_check_branch
    %1154 = sbr.rel (0) target = $region25
  $region24: #{net_forward.9} parent=0 // pred_region
    _
  $region25: #{net_forward.9} parent=0 // pred_fallthru
    _
  // Predicated region
  $region26: #{net_forward.9} parent=0 // pred_check
    _
  $region27: #{net_forward.9} parent=0 // pred_check_branch
    %1156 = sbr.rel (0) target = $region29
  $region28: #{net_forward.9} parent=0 // pred_region
    _
  $region29: #{net_forward.9} parent=0 // pred_fallthru
    _

</llo_original>
